<compile_context>
chip_gen: v7x
topology: tpu7x:2x2x1
jax: 0.10.0
libtpu: 0.0.40
codegen_flags: <defaults>
</compile_context>

<pallas_src>
import jax
import jax.numpy as jnp
from jax import lax
from jax.experimental import pallas as pl
from jax.experimental.pallas import tpu as pltpu


def _round_up(v, m):
    return ((v + m - 1) // m) * m


def _conv3x3_taps(inp, w_ref, rows, width, cp):
    """sum over 9 taps of  inp[ky:ky+rows, kx:kx+width] @ w[ky*3+kx]  (bf16 -> f32 acc).

    inp   : Ref or array of shape (rows+2, >= width+2, cp), bfloat16
    w_ref : Ref of shape (9, cp, cp), bfloat16 (tap-major ky*3+kx)
    returns f32 array of shape (rows*width, cp)
    """
    acc = None
    for ky in range(3):
        for kx in range(3):
            win = inp[ky:ky + rows, kx:kx + width, :]
            win = win.reshape(rows * width, cp)
            part = jnp.dot(win, w_ref[ky * 3 + kx],
                           preferred_element_type=jnp.float32)
            acc = part if acc is None else acc + part
    return acc


def basic_block_kernel(x_hbm, w1_ref, w2_ref, b1_ref, b2_ref, o_ref,
                       xbuf, dma_sem):
    # x_hbm : (N, H+4, WP, CP) bf16 in HBM (H padded by 2 rows/side, W left-padded by 1 and
    #         right-padded to WP, channels padded to CP; all padding is exact zeros)
    # w1/w2 : (9, CP, CP) bf16, BN scale folded in
    # b1/b2 : (1, CP) f32 folded BN bias
    # o_ref : (1, TH, W, CP) f32 output strip
    # xbuf  : (TH+4, WP, CP) bf16 VMEM strip buffer (+/-2-row halo)
    TH, W, CP = o_ref.shape[1], o_ref.shape[2], o_ref.shape[3]
    WP = xbuf.shape[1]
    n = pl.program_id(0)
    s = pl.program_id(1)
    H = pl.num_programs(1) * TH

    # Fetch this strip's input window (TH output rows + 2-row halo each side).
    row0 = pl.multiple_of(s * TH, TH)
    cp_in = pltpu.make_async_copy(x_hbm.at[n, pl.ds(row0, TH + 4)], xbuf, dma_sem)
    cp_in.start()
    cp_in.wait()

    # conv1 (+ folded BN1 scale) on TH+2 rows (the rows conv2 needs, incl. its halo).
    acc1 = _conv3x3_taps(xbuf, w1_ref, TH + 2, W, CP)            # ((TH+2)*W, CP) f32
    mid = jnp.maximum(acc1 + b1_ref[...], 0.0).reshape(TH + 2, W, CP)

    # conv2's SAME padding: conv1-output rows outside [0, H) must be exact zeros
    # (not conv1 applied to zero-padded input), so mask the image-boundary halo rows.
    r = s * TH - 1 + lax.broadcasted_iota(jnp.int32, (TH + 2, 1, 1), 0)
    mid = jnp.where((r >= 0) & (r < H), mid, 0.0)

    # SAME column padding for conv2 (zero col on the left, zeros up to WP on the right);
    # back to bf16 for the MXU.
    zl = jnp.zeros((TH + 2, 1, CP), jnp.float32)
    zr = jnp.zeros((TH + 2, WP - W - 1, CP), jnp.float32)
    mid_p = jnp.concatenate([zl, mid, zr], axis=1).astype(jnp.bfloat16)

    # conv2 (+ folded BN2 scale) + bias + residual + ReLU on the TH output rows.
    acc2 = _conv3x3_taps(mid_p, w2_ref, TH, W, CP)               # (TH*W, CP) f32
    ident = xbuf[2:2 + TH, 1:1 + W, :].astype(jnp.float32).reshape(TH * W, CP)
    out = jnp.maximum(acc2 + b2_ref[...] + ident, 0.0)
    o_ref[0] = out.reshape(TH, W, CP)                            # dense lane-aligned store


def basic_block_pallas(x_nchw, params, eps=1e-5, strip_h=8):
    """x_nchw: (N, C, H, W) float32. Returns (N, P, H, W) float32."""
    x = jnp.transpose(x_nchw, (0, 2, 3, 1)).astype(jnp.float32)   # NCHW -> NHWC
    N, H, W, C = x.shape

    # PyTorch conv weight (O, I, kH, kW) -> HWIO
    w1 = jnp.transpose(params['conv1_w'], (2, 3, 1, 0)).astype(jnp.float32)  # (3,3,C,P)
    w2 = jnp.transpose(params['conv2_w'], (2, 3, 1, 0)).astype(jnp.float32)  # (3,3,P,P)
    P = w1.shape[-1]
    assert C == P, "BasicBlock without downsample requires inplanes == planes"

    # Fold inference-mode BN into per-channel scale/bias (f32); fold scale into weights.
    s1 = params['bn1_gamma'] / jnp.sqrt(params['bn1_var'] + eps)
    b1 = params['bn1_beta'] - params['bn1_mean'] * s1
    s2 = params['bn2_gamma'] / jnp.sqrt(params['bn2_var'] + eps)
    b2 = params['bn2_beta'] - params['bn2_mean'] * s2
    w1f = w1 * s1[None, None, None, :]
    w2f = w2 * s2[None, None, None, :]

    # Lane/sublane-dense padding (all padding exact zeros, sliced off at the end).
    CP = max(128, _round_up(C, 128))            # channels -> multiple of 128 (lanes)
    WP = _round_up(W + 2, 8)                    # width + SAME halo -> multiple of 8 (sublanes)
    TH = strip_h if (H % strip_h == 0) else H   # H-strip height (fallback: whole image)

    x_p = jnp.pad(x, ((0, 0), (2, 2), (1, WP - W - 1), (0, CP - C))).astype(jnp.bfloat16)
    w1p = jnp.pad(w1f, ((0, 0), (0, 0), (0, CP - C), (0, CP - P))
                  ).reshape(9, CP, CP).astype(jnp.bfloat16)
    w2p = jnp.pad(w2f, ((0, 0), (0, 0), (0, CP - P), (0, CP - P))
                  ).reshape(9, CP, CP).astype(jnp.bfloat16)
    b1p = jnp.pad(b1, (0, CP - P)).reshape(1, CP).astype(jnp.float32)
    b2p = jnp.pad(b2, (0, CP - P)).reshape(1, CP).astype(jnp.float32)

    out = pl.pallas_call(
        basic_block_kernel,
        out_shape=jax.ShapeDtypeStruct((N, H, W, CP), jnp.float32),
        grid_spec=pltpu.PrefetchScalarGridSpec(
            num_scalar_prefetch=0,
            grid=(N, H // TH),
            in_specs=[
                pl.BlockSpec(memory_space=pl.ANY),                   # x: HBM, manual halo DMA
                pl.BlockSpec((9, CP, CP), lambda n, s: (0, 0, 0)),   # w1 (resident)
                pl.BlockSpec((9, CP, CP), lambda n, s: (0, 0, 0)),   # w2 (resident)
                pl.BlockSpec((1, CP), lambda n, s: (0, 0)),          # b1
                pl.BlockSpec((1, CP), lambda n, s: (0, 0)),          # b2
            ],
            out_specs=pl.BlockSpec((1, TH, W, CP), lambda n, s: (n, s, 0, 0)),
            scratch_shapes=[
                pltpu.VMEM((TH + 4, WP, CP), jnp.bfloat16),          # strip + halo buffer
                pltpu.SemaphoreType.DMA,
            ],
        ),
        compiler_params=pltpu.CompilerParams(
            dimension_semantics=("parallel", "parallel"),
            vmem_limit_bytes=48 * 1024 * 1024),
    )(x_p, w1p, w2p, b1p, b2p)

    out = out[..., :P]                                 # drop padded channels
    return jnp.transpose(out, (0, 3, 1, 2))            # NHWC -> NCHW


def basic_block_reference(x_nchw, params, eps=1e-5):
    """Pure-JAX f32 reference (NHWC convs via lax.conv_general_dilated)."""
    x = jnp.transpose(x_nchw, (0, 2, 3, 1))
    w1 = jnp.transpose(params['conv1_w'], (2, 3, 1, 0))
    w2 = jnp.transpose(params['conv2_w'], (2, 3, 1, 0))
    dn = ('NHWC', 'HWIO', 'NHWC')

    y = lax.conv_general_dilated(x, w1, (1, 1), 'SAME', dimension_numbers=dn)
    y = (y - params['bn1_mean']) / jnp.sqrt(params['bn1_var'] + eps) \
        * params['bn1_gamma'] + params['bn1_beta']
    y = jnp.maximum(y, 0.0)
    y = lax.conv_general_dilated(y, w2, (1, 1), 'SAME', dimension_numbers=dn)
    y = (y - params['bn2_mean']) / jnp.sqrt(params['bn2_var'] + eps) \
        * params['bn2_gamma'] + params['bn2_beta']
    y = jnp.maximum(y + x, 0.0)
    return jnp.transpose(y, (0, 3, 1, 2))


if __name__ == "__main__":
    # Small shapes consistent with BasicBlock(inplanes=8, planes=8, stride=1).
    N, C, H, W = 2, 8, 16, 16
    planes = C  # no downsample -> inplanes == planes

    keys = jax.random.split(jax.random.PRNGKey(0), 9)
    params = {
        'conv1_w': 0.1 * jax.random.normal(keys[0], (planes, C, 3, 3), jnp.float32),
        'conv2_w': 0.1 * jax.random.normal(keys[1], (planes, planes, 3, 3), jnp.float32),
        'bn1_gamma': 0.5 + jnp.abs(jax.random.normal(keys[2], (planes,), jnp.float32)),
        'bn1_beta': 0.1 * jax.random.normal(keys[3], (planes,), jnp.float32),
        'bn1_mean': 0.1 * jax.random.normal(keys[4], (planes,), jnp.float32),
        'bn1_var': 0.5 + jnp.abs(jax.random.normal(keys[5], (planes,), jnp.float32)),
        'bn2_gamma': 0.5 + jnp.abs(jax.random.normal(keys[6], (planes,), jnp.float32)),
        'bn2_beta': 0.1 * jax.random.normal(keys[7], (planes,), jnp.float32),
        'bn2_mean': jnp.zeros((planes,), jnp.float32),
        'bn2_var': jnp.ones((planes,), jnp.float32),
    }
    x = jax.random.normal(keys[8], (N, C, H, W), jnp.float32)

    out = jax.block_until_ready(basic_block_pallas(x, params))
    ref = jax.block_until_ready(basic_block_reference(x, params))

    assert out.shape == (N, planes, H, W)
    # bf16 MXU operands vs. f32 reference -> relaxed tolerance.
    max_err = jnp.max(jnp.abs(out - ref))
    assert jnp.allclose(out, ref, atol=5e-2, rtol=5e-2), f"max abs err = {max_err}"
    print("KERNEL_OK")
</pallas_src>

<mosaic_0001>
module attributes {stable_mosaic.version = 11 : i64} {
  func.func @basic_block_kernel(%arg0: i32, %arg1: i32, %arg2: memref<2x20x24x128xbf16, #tpu.memory_space<any>>, %arg3: memref<9x128x128xbf16, #tpu.memory_space<vmem>>, %arg4: memref<9x128x128xbf16, #tpu.memory_space<vmem>>, %arg5: memref<1x128xf32, #tpu.memory_space<vmem>>, %arg6: memref<1x128xf32, #tpu.memory_space<vmem>>, %arg7: memref<1x8x16x128xf32, #tpu.memory_space<vmem>>, %arg8: memref<12x24x128xbf16, #tpu.memory_space<vmem>>, %arg9: memref<!tpu.dma_semaphore, #tpu.memory_space<semaphore_mem>>) attributes {dimension_semantics = [#tpu.dimension_semantics<parallel>, #tpu.dimension_semantics<parallel>], iteration_bounds = array<i64: 2, 2>, scalar_prefetch = 0 : i64, scratch_operands = 2 : i64, tpu.core_type = #tpu.core_type<tc>, window_params = [{}, {pipeline_mode = #tpu.pipeline_mode<synchronous>, transform_indices = @transform_1, window_bounds = array<i64: 9, 128, 128>}, {pipeline_mode = #tpu.pipeline_mode<synchronous>, transform_indices = @transform_2, window_bounds = array<i64: 9, 128, 128>}, {pipeline_mode = #tpu.pipeline_mode<synchronous>, transform_indices = @transform_3, window_bounds = array<i64: 1, 128>}, {pipeline_mode = #tpu.pipeline_mode<synchronous>, transform_indices = @transform_4, window_bounds = array<i64: 1, 128>}, {transform_indices = @transform_5, window_bounds = array<i64: 1, 8, 16, 128>}]} {
    %c8_i32 = arith.constant 8 : i32
    %0 = arith.muli %arg1, %c8_i32 : i32
    %1 = tpu.assume_multiple %0, 8 : i32
    %c0_i32 = arith.constant 0 : i32
    %c0_i32_0 = arith.constant 0 : i32
    %2 = tpu.memref_slice %arg2[%arg0, %1, %c0_i32, %c0_i32_0] : memref<2x20x24x128xbf16, #tpu.memory_space<any>> -> memref<1x12x24x128xbf16, #tpu.memory_space<any>>
    %3 = tpu.memref_squeeze %2 : memref<1x12x24x128xbf16, #tpu.memory_space<any>> -> memref<12x24x128xbf16, #tpu.memory_space<any>>
    tpu.enqueue_dma source(%3 : memref<12x24x128xbf16, #tpu.memory_space<any>>) target(%arg8 : memref<12x24x128xbf16, #tpu.memory_space<vmem>>) target_semaphore(%arg9 : memref<!tpu.dma_semaphore, #tpu.memory_space<semaphore_mem>>)
    %c0_i32_1 = arith.constant 0 : i32
    %c0_i32_2 = arith.constant 0 : i32
    %4 = tpu.memref_slice %arg2[%arg0, %1, %c0_i32_1, %c0_i32_2] : memref<2x20x24x128xbf16, #tpu.memory_space<any>> -> memref<1x12x24x128xbf16, #tpu.memory_space<any>>
    %5 = tpu.memref_squeeze %4 : memref<1x12x24x128xbf16, #tpu.memory_space<any>> -> memref<12x24x128xbf16, #tpu.memory_space<any>>
    tpu.wait_dma2 semaphore(%arg9 : memref<!tpu.dma_semaphore, #tpu.memory_space<semaphore_mem>>) src(%5 : memref<12x24x128xbf16, #tpu.memory_space<any>>) dst(%arg8 : memref<12x24x128xbf16, #tpu.memory_space<vmem>>)
    %c0 = arith.constant 0 : index
    %c0_3 = arith.constant 0 : index
    %c0_4 = arith.constant 0 : index
    %6 = vector.load %arg8[%c0, %c0_3, %c0_4] : memref<12x24x128xbf16, #tpu.memory_space<vmem>>, vector<10x16x128xbf16>
    %7 = vector.shape_cast %6 : vector<10x16x128xbf16> to vector<160x128xbf16>
    %c0_5 = arith.constant 0 : index
    %c0_6 = arith.constant 0 : index
    %c0_7 = arith.constant 0 : index
    %8 = vector.load %arg3[%c0_5, %c0_6, %c0_7] : memref<9x128x128xbf16, #tpu.memory_space<vmem>>, vector<1x128x128xbf16>
    %9 = vector.shape_cast %8 : vector<1x128x128xbf16> to vector<128x128xbf16>
    %cst = arith.constant dense<0.000000e+00> : vector<160x128xf32>
    %10 = tpu.matmul %7, %9, %cst {dimension_numbers = #tpu.dot_dimension_numbers<[1], [0], [0], [1], [0, 0, 1, 1], [], []>} : vector<160x128xbf16>, vector<128x128xbf16>, vector<160x128xf32> -> vector<160x128xf32>
    %c0_8 = arith.constant 0 : index
    %c1 = arith.constant 1 : index
    %c0_9 = arith.constant 0 : index
    %11 = vector.load %arg8[%c0_8, %c1, %c0_9] : memref<12x24x128xbf16, #tpu.memory_space<vmem>>, vector<10x16x128xbf16>
    %12 = vector.shape_cast %11 : vector<10x16x128xbf16> to vector<160x128xbf16>
    %c1_10 = arith.constant 1 : index
    %c0_11 = arith.constant 0 : index
    %c0_12 = arith.constant 0 : index
    %13 = vector.load %arg3[%c1_10, %c0_11, %c0_12] : memref<9x128x128xbf16, #tpu.memory_space<vmem>>, vector<1x128x128xbf16>
    %14 = vector.shape_cast %13 : vector<1x128x128xbf16> to vector<128x128xbf16>
    %cst_13 = arith.constant dense<0.000000e+00> : vector<160x128xf32>
    %15 = tpu.matmul %12, %14, %cst_13 {dimension_numbers = #tpu.dot_dimension_numbers<[1], [0], [0], [1], [0, 0, 1, 1], [], []>} : vector<160x128xbf16>, vector<128x128xbf16>, vector<160x128xf32> -> vector<160x128xf32>
    %16 = arith.addf %10, %15 : vector<160x128xf32>
    %c0_14 = arith.constant 0 : index
    %c2 = arith.constant 2 : index
    %c0_15 = arith.constant 0 : index
    %17 = vector.load %arg8[%c0_14, %c2, %c0_15] : memref<12x24x128xbf16, #tpu.memory_space<vmem>>, vector<10x16x128xbf16>
    %18 = vector.shape_cast %17 : vector<10x16x128xbf16> to vector<160x128xbf16>
    %c2_16 = arith.constant 2 : index
    %c0_17 = arith.constant 0 : index
    %c0_18 = arith.constant 0 : index
    %19 = vector.load %arg3[%c2_16, %c0_17, %c0_18] : memref<9x128x128xbf16, #tpu.memory_space<vmem>>, vector<1x128x128xbf16>
    %20 = vector.shape_cast %19 : vector<1x128x128xbf16> to vector<128x128xbf16>
    %cst_19 = arith.constant dense<0.000000e+00> : vector<160x128xf32>
    %21 = tpu.matmul %18, %20, %cst_19 {dimension_numbers = #tpu.dot_dimension_numbers<[1], [0], [0], [1], [0, 0, 1, 1], [], []>} : vector<160x128xbf16>, vector<128x128xbf16>, vector<160x128xf32> -> vector<160x128xf32>
    %22 = arith.addf %16, %21 : vector<160x128xf32>
    %c1_20 = arith.constant 1 : index
    %c0_21 = arith.constant 0 : index
    %c0_22 = arith.constant 0 : index
    %23 = vector.load %arg8[%c1_20, %c0_21, %c0_22] : memref<12x24x128xbf16, #tpu.memory_space<vmem>>, vector<10x16x128xbf16>
    %24 = vector.shape_cast %23 : vector<10x16x128xbf16> to vector<160x128xbf16>
    %c3 = arith.constant 3 : index
    %c0_23 = arith.constant 0 : index
    %c0_24 = arith.constant 0 : index
    %25 = vector.load %arg3[%c3, %c0_23, %c0_24] : memref<9x128x128xbf16, #tpu.memory_space<vmem>>, vector<1x128x128xbf16>
    %26 = vector.shape_cast %25 : vector<1x128x128xbf16> to vector<128x128xbf16>
    %cst_25 = arith.constant dense<0.000000e+00> : vector<160x128xf32>
    %27 = tpu.matmul %24, %26, %cst_25 {dimension_numbers = #tpu.dot_dimension_numbers<[1], [0], [0], [1], [0, 0, 1, 1], [], []>} : vector<160x128xbf16>, vector<128x128xbf16>, vector<160x128xf32> -> vector<160x128xf32>
    %28 = arith.addf %22, %27 : vector<160x128xf32>
    %c1_26 = arith.constant 1 : index
    %c1_27 = arith.constant 1 : index
    %c0_28 = arith.constant 0 : index
    %29 = vector.load %arg8[%c1_26, %c1_27, %c0_28] : memref<12x24x128xbf16, #tpu.memory_space<vmem>>, vector<10x16x128xbf16>
    %30 = vector.shape_cast %29 : vector<10x16x128xbf16> to vector<160x128xbf16>
    %c4 = arith.constant 4 : index
    %c0_29 = arith.constant 0 : index
    %c0_30 = arith.constant 0 : index
    %31 = vector.load %arg3[%c4, %c0_29, %c0_30] : memref<9x128x128xbf16, #tpu.memory_space<vmem>>, vector<1x128x128xbf16>
    %32 = vector.shape_cast %31 : vector<1x128x128xbf16> to vector<128x128xbf16>
    %cst_31 = arith.constant dense<0.000000e+00> : vector<160x128xf32>
    %33 = tpu.matmul %30, %32, %cst_31 {dimension_numbers = #tpu.dot_dimension_numbers<[1], [0], [0], [1], [0, 0, 1, 1], [], []>} : vector<160x128xbf16>, vector<128x128xbf16>, vector<160x128xf32> -> vector<160x128xf32>
    %34 = arith.addf %28, %33 : vector<160x128xf32>
    %c1_32 = arith.constant 1 : index
    %c2_33 = arith.constant 2 : index
    %c0_34 = arith.constant 0 : index
    %35 = vector.load %arg8[%c1_32, %c2_33, %c0_34] : memref<12x24x128xbf16, #tpu.memory_space<vmem>>, vector<10x16x128xbf16>
    %36 = vector.shape_cast %35 : vector<10x16x128xbf16> to vector<160x128xbf16>
    %c5 = arith.constant 5 : index
    %c0_35 = arith.constant 0 : index
    %c0_36 = arith.constant 0 : index
    %37 = vector.load %arg3[%c5, %c0_35, %c0_36] : memref<9x128x128xbf16, #tpu.memory_space<vmem>>, vector<1x128x128xbf16>
    %38 = vector.shape_cast %37 : vector<1x128x128xbf16> to vector<128x128xbf16>
    %cst_37 = arith.constant dense<0.000000e+00> : vector<160x128xf32>
    %39 = tpu.matmul %36, %38, %cst_37 {dimension_numbers = #tpu.dot_dimension_numbers<[1], [0], [0], [1], [0, 0, 1, 1], [], []>} : vector<160x128xbf16>, vector<128x128xbf16>, vector<160x128xf32> -> vector<160x128xf32>
    %40 = arith.addf %34, %39 : vector<160x128xf32>
    %c2_38 = arith.constant 2 : index
    %c0_39 = arith.constant 0 : index
    %c0_40 = arith.constant 0 : index
    %41 = vector.load %arg8[%c2_38, %c0_39, %c0_40] : memref<12x24x128xbf16, #tpu.memory_space<vmem>>, vector<10x16x128xbf16>
    %42 = vector.shape_cast %41 : vector<10x16x128xbf16> to vector<160x128xbf16>
    %c6 = arith.constant 6 : index
    %c0_41 = arith.constant 0 : index
    %c0_42 = arith.constant 0 : index
    %43 = vector.load %arg3[%c6, %c0_41, %c0_42] : memref<9x128x128xbf16, #tpu.memory_space<vmem>>, vector<1x128x128xbf16>
    %44 = vector.shape_cast %43 : vector<1x128x128xbf16> to vector<128x128xbf16>
    %cst_43 = arith.constant dense<0.000000e+00> : vector<160x128xf32>
    %45 = tpu.matmul %42, %44, %cst_43 {dimension_numbers = #tpu.dot_dimension_numbers<[1], [0], [0], [1], [0, 0, 1, 1], [], []>} : vector<160x128xbf16>, vector<128x128xbf16>, vector<160x128xf32> -> vector<160x128xf32>
    %46 = arith.addf %40, %45 : vector<160x128xf32>
    %c2_44 = arith.constant 2 : index
    %c1_45 = arith.constant 1 : index
    %c0_46 = arith.constant 0 : index
    %47 = vector.load %arg8[%c2_44, %c1_45, %c0_46] : memref<12x24x128xbf16, #tpu.memory_space<vmem>>, vector<10x16x128xbf16>
    %48 = vector.shape_cast %47 : vector<10x16x128xbf16> to vector<160x128xbf16>
    %c7 = arith.constant 7 : index
    %c0_47 = arith.constant 0 : index
    %c0_48 = arith.constant 0 : index
    %49 = vector.load %arg3[%c7, %c0_47, %c0_48] : memref<9x128x128xbf16, #tpu.memory_space<vmem>>, vector<1x128x128xbf16>
    %50 = vector.shape_cast %49 : vector<1x128x128xbf16> to vector<128x128xbf16>
    %cst_49 = arith.constant dense<0.000000e+00> : vector<160x128xf32>
    %51 = tpu.matmul %48, %50, %cst_49 {dimension_numbers = #tpu.dot_dimension_numbers<[1], [0], [0], [1], [0, 0, 1, 1], [], []>} : vector<160x128xbf16>, vector<128x128xbf16>, vector<160x128xf32> -> vector<160x128xf32>
    %52 = arith.addf %46, %51 : vector<160x128xf32>
    %c2_50 = arith.constant 2 : index
    %c2_51 = arith.constant 2 : index
    %c0_52 = arith.constant 0 : index
    %53 = vector.load %arg8[%c2_50, %c2_51, %c0_52] : memref<12x24x128xbf16, #tpu.memory_space<vmem>>, vector<10x16x128xbf16>
    %54 = vector.shape_cast %53 : vector<10x16x128xbf16> to vector<160x128xbf16>
    %c8 = arith.constant 8 : index
    %c0_53 = arith.constant 0 : index
    %c0_54 = arith.constant 0 : index
    %55 = vector.load %arg3[%c8, %c0_53, %c0_54] : memref<9x128x128xbf16, #tpu.memory_space<vmem>>, vector<1x128x128xbf16>
    %56 = vector.shape_cast %55 : vector<1x128x128xbf16> to vector<128x128xbf16>
    %cst_55 = arith.constant dense<0.000000e+00> : vector<160x128xf32>
    %57 = tpu.matmul %54, %56, %cst_55 {dimension_numbers = #tpu.dot_dimension_numbers<[1], [0], [0], [1], [0, 0, 1, 1], [], []>} : vector<160x128xbf16>, vector<128x128xbf16>, vector<160x128xf32> -> vector<160x128xf32>
    %58 = arith.addf %52, %57 : vector<160x128xf32>
    %c0_56 = arith.constant 0 : index
    %c0_57 = arith.constant 0 : index
    %59 = vector.load %arg5[%c0_56, %c0_57] : memref<1x128xf32, #tpu.memory_space<vmem>>, vector<1x128xf32>
    %60 = vector.broadcast %59 : vector<1x128xf32> to vector<160x128xf32>
    %61 = arith.addf %58, %60 : vector<160x128xf32>
    %cst_58 = arith.constant 0.000000e+00 : f32
    %62 = vector.broadcast %cst_58 : f32 to vector<160x128xf32>
    %63 = arith.maximumf %61, %62 : vector<160x128xf32>
    %64 = vector.shape_cast %63 : vector<160x128xf32> to vector<10x16x128xf32>
    %c8_i32_59 = arith.constant 8 : i32
    %65 = arith.muli %arg1, %c8_i32_59 : i32
    %c1_i32 = arith.constant 1 : i32
    %66 = arith.subi %65, %c1_i32 : i32
    %67 = tpu.iota {dimensions = array<i32: 0>} : vector<10x1x1xi32>
    %68 = vector.broadcast %66 : i32 to vector<10x1x1xi32>
    %69 = arith.addi %68, %67 : vector<10x1x1xi32>
    %c0_i32_60 = arith.constant 0 : i32
    %70 = vector.broadcast %c0_i32_60 : i32 to vector<10x1x1xi32>
    %71 = arith.cmpi sge, %69, %70 : vector<10x1x1xi32>
    %c16_i32 = arith.constant 16 : i32
    %72 = vector.broadcast %c16_i32 : i32 to vector<10x1x1xi32>
    %73 = arith.cmpi slt, %69, %72 : vector<10x1x1xi32>
    %74 = arith.andi %71, %73 : vector<10x1x1xi1>
    %cst_61 = arith.constant 0.000000e+00 : f32
    %75 = vector.shape_cast %74 : vector<10x1x1xi1> to vector<10x1x1xi1>
    %76 = vector.broadcast %75 : vector<10x1x1xi1> to vector<10x16x128xi1>
    %77 = vector.broadcast %cst_61 : f32 to vector<10x16x128xf32>
    %78 = arith.select %76, %64, %77 : vector<10x16x128xi1>, vector<10x16x128xf32>
    %cst_62 = arith.constant 0.000000e+00 : f32
    %79 = vector.broadcast %cst_62 : f32 to vector<10x1x128xf32>
    %cst_63 = arith.constant 0.000000e+00 : f32
    %80 = vector.broadcast %cst_63 : f32 to vector<10x7x128xf32>
    %81 = tpu.concatenate %79, %78, %80 in 1 : vector<10x1x128xf32>, vector<10x16x128xf32>, vector<10x7x128xf32> -> vector<10x24x128xf32>
    %82 = arith.truncf %81 : vector<10x24x128xf32> to vector<10x24x128xbf16>
    %83 = vector.extract_strided_slice %82 {offsets = [0, 0, 0], sizes = [8, 16, 128], strides = [1, 1, 1]} : vector<10x24x128xbf16> to vector<8x16x128xbf16>
    %84 = vector.shape_cast %83 : vector<8x16x128xbf16> to vector<128x128xbf16>
    %c0_64 = arith.constant 0 : index
    %c0_65 = arith.constant 0 : index
    %c0_66 = arith.constant 0 : index
    %85 = vector.load %arg4[%c0_64, %c0_65, %c0_66] : memref<9x128x128xbf16, #tpu.memory_space<vmem>>, vector<1x128x128xbf16>
    %86 = vector.shape_cast %85 : vector<1x128x128xbf16> to vector<128x128xbf16>
    %cst_67 = arith.constant dense<0.000000e+00> : vector<128x128xf32>
    %87 = tpu.matmul %84, %86, %cst_67 {dimension_numbers = #tpu.dot_dimension_numbers<[1], [0], [0], [1], [0, 0, 1, 1], [], []>} : vector<128x128xbf16>, vector<128x128xbf16>, vector<128x128xf32> -> vector<128x128xf32>
    %88 = vector.extract_strided_slice %82 {offsets = [0, 1, 0], sizes = [8, 16, 128], strides = [1, 1, 1]} : vector<10x24x128xbf16> to vector<8x16x128xbf16>
    %89 = vector.shape_cast %88 : vector<8x16x128xbf16> to vector<128x128xbf16>
    %c1_68 = arith.constant 1 : index
    %c0_69 = arith.constant 0 : index
    %c0_70 = arith.constant 0 : index
    %90 = vector.load %arg4[%c1_68, %c0_69, %c0_70] : memref<9x128x128xbf16, #tpu.memory_space<vmem>>, vector<1x128x128xbf16>
    %91 = vector.shape_cast %90 : vector<1x128x128xbf16> to vector<128x128xbf16>
    %cst_71 = arith.constant dense<0.000000e+00> : vector<128x128xf32>
    %92 = tpu.matmul %89, %91, %cst_71 {dimension_numbers = #tpu.dot_dimension_numbers<[1], [0], [0], [1], [0, 0, 1, 1], [], []>} : vector<128x128xbf16>, vector<128x128xbf16>, vector<128x128xf32> -> vector<128x128xf32>
    %93 = arith.addf %87, %92 : vector<128x128xf32>
    %94 = vector.extract_strided_slice %82 {offsets = [0, 2, 0], sizes = [8, 16, 128], strides = [1, 1, 1]} : vector<10x24x128xbf16> to vector<8x16x128xbf16>
    %95 = vector.shape_cast %94 : vector<8x16x128xbf16> to vector<128x128xbf16>
    %c2_72 = arith.constant 2 : index
    %c0_73 = arith.constant 0 : index
    %c0_74 = arith.constant 0 : index
    %96 = vector.load %arg4[%c2_72, %c0_73, %c0_74] : memref<9x128x128xbf16, #tpu.memory_space<vmem>>, vector<1x128x128xbf16>
    %97 = vector.shape_cast %96 : vector<1x128x128xbf16> to vector<128x128xbf16>
    %cst_75 = arith.constant dense<0.000000e+00> : vector<128x128xf32>
    %98 = tpu.matmul %95, %97, %cst_75 {dimension_numbers = #tpu.dot_dimension_numbers<[1], [0], [0], [1], [0, 0, 1, 1], [], []>} : vector<128x128xbf16>, vector<128x128xbf16>, vector<128x128xf32> -> vector<128x128xf32>
    %99 = arith.addf %93, %98 : vector<128x128xf32>
    %100 = vector.extract_strided_slice %82 {offsets = [1, 0, 0], sizes = [8, 16, 128], strides = [1, 1, 1]} : vector<10x24x128xbf16> to vector<8x16x128xbf16>
    %101 = vector.shape_cast %100 : vector<8x16x128xbf16> to vector<128x128xbf16>
    %c3_76 = arith.constant 3 : index
    %c0_77 = arith.constant 0 : index
    %c0_78 = arith.constant 0 : index
    %102 = vector.load %arg4[%c3_76, %c0_77, %c0_78] : memref<9x128x128xbf16, #tpu.memory_space<vmem>>, vector<1x128x128xbf16>
    %103 = vector.shape_cast %102 : vector<1x128x128xbf16> to vector<128x128xbf16>
    %cst_79 = arith.constant dense<0.000000e+00> : vector<128x128xf32>
    %104 = tpu.matmul %101, %103, %cst_79 {dimension_numbers = #tpu.dot_dimension_numbers<[1], [0], [0], [1], [0, 0, 1, 1], [], []>} : vector<128x128xbf16>, vector<128x128xbf16>, vector<128x128xf32> -> vector<128x128xf32>
    %105 = arith.addf %99, %104 : vector<128x128xf32>
    %106 = vector.extract_strided_slice %82 {offsets = [1, 1, 0], sizes = [8, 16, 128], strides = [1, 1, 1]} : vector<10x24x128xbf16> to vector<8x16x128xbf16>
    %107 = vector.shape_cast %106 : vector<8x16x128xbf16> to vector<128x128xbf16>
    %c4_80 = arith.constant 4 : index
    %c0_81 = arith.constant 0 : index
    %c0_82 = arith.constant 0 : index
    %108 = vector.load %arg4[%c4_80, %c0_81, %c0_82] : memref<9x128x128xbf16, #tpu.memory_space<vmem>>, vector<1x128x128xbf16>
    %109 = vector.shape_cast %108 : vector<1x128x128xbf16> to vector<128x128xbf16>
    %cst_83 = arith.constant dense<0.000000e+00> : vector<128x128xf32>
    %110 = tpu.matmul %107, %109, %cst_83 {dimension_numbers = #tpu.dot_dimension_numbers<[1], [0], [0], [1], [0, 0, 1, 1], [], []>} : vector<128x128xbf16>, vector<128x128xbf16>, vector<128x128xf32> -> vector<128x128xf32>
    %111 = arith.addf %105, %110 : vector<128x128xf32>
    %112 = vector.extract_strided_slice %82 {offsets = [1, 2, 0], sizes = [8, 16, 128], strides = [1, 1, 1]} : vector<10x24x128xbf16> to vector<8x16x128xbf16>
    %113 = vector.shape_cast %112 : vector<8x16x128xbf16> to vector<128x128xbf16>
    %c5_84 = arith.constant 5 : index
    %c0_85 = arith.constant 0 : index
    %c0_86 = arith.constant 0 : index
    %114 = vector.load %arg4[%c5_84, %c0_85, %c0_86] : memref<9x128x128xbf16, #tpu.memory_space<vmem>>, vector<1x128x128xbf16>
    %115 = vector.shape_cast %114 : vector<1x128x128xbf16> to vector<128x128xbf16>
    %cst_87 = arith.constant dense<0.000000e+00> : vector<128x128xf32>
    %116 = tpu.matmul %113, %115, %cst_87 {dimension_numbers = #tpu.dot_dimension_numbers<[1], [0], [0], [1], [0, 0, 1, 1], [], []>} : vector<128x128xbf16>, vector<128x128xbf16>, vector<128x128xf32> -> vector<128x128xf32>
    %117 = arith.addf %111, %116 : vector<128x128xf32>
    %118 = vector.extract_strided_slice %82 {offsets = [2, 0, 0], sizes = [8, 16, 128], strides = [1, 1, 1]} : vector<10x24x128xbf16> to vector<8x16x128xbf16>
    %119 = vector.shape_cast %118 : vector<8x16x128xbf16> to vector<128x128xbf16>
    %c6_88 = arith.constant 6 : index
    %c0_89 = arith.constant 0 : index
    %c0_90 = arith.constant 0 : index
    %120 = vector.load %arg4[%c6_88, %c0_89, %c0_90] : memref<9x128x128xbf16, #tpu.memory_space<vmem>>, vector<1x128x128xbf16>
    %121 = vector.shape_cast %120 : vector<1x128x128xbf16> to vector<128x128xbf16>
    %cst_91 = arith.constant dense<0.000000e+00> : vector<128x128xf32>
    %122 = tpu.matmul %119, %121, %cst_91 {dimension_numbers = #tpu.dot_dimension_numbers<[1], [0], [0], [1], [0, 0, 1, 1], [], []>} : vector<128x128xbf16>, vector<128x128xbf16>, vector<128x128xf32> -> vector<128x128xf32>
    %123 = arith.addf %117, %122 : vector<128x128xf32>
    %124 = vector.extract_strided_slice %82 {offsets = [2, 1, 0], sizes = [8, 16, 128], strides = [1, 1, 1]} : vector<10x24x128xbf16> to vector<8x16x128xbf16>
    %125 = vector.shape_cast %124 : vector<8x16x128xbf16> to vector<128x128xbf16>
    %c7_92 = arith.constant 7 : index
    %c0_93 = arith.constant 0 : index
    %c0_94 = arith.constant 0 : index
    %126 = vector.load %arg4[%c7_92, %c0_93, %c0_94] : memref<9x128x128xbf16, #tpu.memory_space<vmem>>, vector<1x128x128xbf16>
    %127 = vector.shape_cast %126 : vector<1x128x128xbf16> to vector<128x128xbf16>
    %cst_95 = arith.constant dense<0.000000e+00> : vector<128x128xf32>
    %128 = tpu.matmul %125, %127, %cst_95 {dimension_numbers = #tpu.dot_dimension_numbers<[1], [0], [0], [1], [0, 0, 1, 1], [], []>} : vector<128x128xbf16>, vector<128x128xbf16>, vector<128x128xf32> -> vector<128x128xf32>
    %129 = arith.addf %123, %128 : vector<128x128xf32>
    %130 = vector.extract_strided_slice %82 {offsets = [2, 2, 0], sizes = [8, 16, 128], strides = [1, 1, 1]} : vector<10x24x128xbf16> to vector<8x16x128xbf16>
    %131 = vector.shape_cast %130 : vector<8x16x128xbf16> to vector<128x128xbf16>
    %c8_96 = arith.constant 8 : index
    %c0_97 = arith.constant 0 : index
    %c0_98 = arith.constant 0 : index
    %132 = vector.load %arg4[%c8_96, %c0_97, %c0_98] : memref<9x128x128xbf16, #tpu.memory_space<vmem>>, vector<1x128x128xbf16>
    %133 = vector.shape_cast %132 : vector<1x128x128xbf16> to vector<128x128xbf16>
    %cst_99 = arith.constant dense<0.000000e+00> : vector<128x128xf32>
    %134 = tpu.matmul %131, %133, %cst_99 {dimension_numbers = #tpu.dot_dimension_numbers<[1], [0], [0], [1], [0, 0, 1, 1], [], []>} : vector<128x128xbf16>, vector<128x128xbf16>, vector<128x128xf32> -> vector<128x128xf32>
    %135 = arith.addf %129, %134 : vector<128x128xf32>
    %c2_100 = arith.constant 2 : index
    %c1_101 = arith.constant 1 : index
    %c0_102 = arith.constant 0 : index
    %136 = vector.load %arg8[%c2_100, %c1_101, %c0_102] : memref<12x24x128xbf16, #tpu.memory_space<vmem>>, vector<8x16x128xbf16>
    %137 = arith.extf %136 : vector<8x16x128xbf16> to vector<8x16x128xf32>
    %138 = vector.shape_cast %137 : vector<8x16x128xf32> to vector<128x128xf32>
    %c0_103 = arith.constant 0 : index
    %c0_104 = arith.constant 0 : index
    %139 = vector.load %arg6[%c0_103, %c0_104] : memref<1x128xf32, #tpu.memory_space<vmem>>, vector<1x128xf32>
    %140 = vector.broadcast %139 : vector<1x128xf32> to vector<128x128xf32>
    %141 = arith.addf %135, %140 : vector<128x128xf32>
    %142 = arith.addf %141, %138 : vector<128x128xf32>
    %cst_105 = arith.constant 0.000000e+00 : f32
    %143 = vector.broadcast %cst_105 : f32 to vector<128x128xf32>
    %144 = arith.maximumf %142, %143 : vector<128x128xf32>
    %145 = vector.shape_cast %144 : vector<128x128xf32> to vector<8x16x128xf32>
    %c0_106 = arith.constant 0 : index
    %c0_107 = arith.constant 0 : index
    %c0_108 = arith.constant 0 : index
    %c0_109 = arith.constant 0 : index
    %146 = vector.load %arg7[%c0_106, %c0_107, %c0_108, %c0_109] : memref<1x8x16x128xf32, #tpu.memory_space<vmem>>, vector<1x8x16x128xf32>
    %147 = vector.shape_cast %146 : vector<1x8x16x128xf32> to vector<8x16x128xf32>
    %148 = vector.shape_cast %145 : vector<8x16x128xf32> to vector<1x8x16x128xf32>
    tpu.vector_store %arg7[%c0_106, %c0_107, %c0_108, %c0_109], %148 {strides = array<i32>} : memref<1x8x16x128xf32, #tpu.memory_space<vmem>>, vector<1x8x16x128xf32>,
    return
  }
  func.func @transform_1(%arg0: i32, %arg1: i32) -> (i32, i32, i32) {
    %c0_i32 = arith.constant 0 : i32
    %c0_i32_0 = arith.constant 0 : i32
    %c0_i32_1 = arith.constant 0 : i32
    %c0_i32_2 = arith.constant 0 : i32
    return %c0_i32, %c0_i32_0, %c0_i32_1 : i32, i32, i32
  }
  func.func @transform_2(%arg0: i32, %arg1: i32) -> (i32, i32, i32) {
    %c0_i32 = arith.constant 0 : i32
    %c0_i32_0 = arith.constant 0 : i32
    %c0_i32_1 = arith.constant 0 : i32
    %c0_i32_2 = arith.constant 0 : i32
    return %c0_i32, %c0_i32_0, %c0_i32_1 : i32, i32, i32
  }
  func.func @transform_3(%arg0: i32, %arg1: i32) -> (i32, i32) {
    %c0_i32 = arith.constant 0 : i32
    %c0_i32_0 = arith.constant 0 : i32
    %c0_i32_1 = arith.constant 0 : i32
    return %c0_i32, %c0_i32_0 : i32, i32
  }
  func.func @transform_4(%arg0: i32, %arg1: i32) -> (i32, i32) {
    %c0_i32 = arith.constant 0 : i32
    %c0_i32_0 = arith.constant 0 : i32
    %c0_i32_1 = arith.constant 0 : i32
    return %c0_i32, %c0_i32_0 : i32, i32
  }
  func.func @transform_5(%arg0: i32, %arg1: i32) -> (i32, i32, i32, i32) {
    %c0_i32 = arith.constant 0 : i32
    %c0_i32_0 = arith.constant 0 : i32
    %c0_i32_1 = arith.constant 0 : i32
    return %arg0, %arg1, %c0_i32, %c0_i32_0 : i32, i32, i32, i32
  }
}

</mosaic_0001>

<llo_original>
// kernel: tpu_custom_call.1
$region0: #{tpu_custom_call.1}
  #allocation0 [shape = 'u32[]', space=smem, size = 0x4, offset = 0x4, fixed_abs, tag = 'smem constant byte address 0x4 - core index']
  #allocation1 [shape = 'u32[144,128]{1,0:T(1,128)}', space=vmem, size = 0x12000, scoped, tag = 'internal scratch']
  #allocation2 [shape = 'bf16[12,24,128]{2,1,0:T(8,128)(2,1)}', space=vmem, size = 0x12000, scoped, tag = 'scratch operand']
  #allocation3 [shape = 's32[1]{0}', space=sflag, size = 0x4, scoped, tag = 'scratch operand']
  #allocation10 [shape = 's32[]', space=sflag, size = 0x4, offset = 0, fixed_abs, tag = 'sflag constant byte address 0x0 - dummy sync flag']
  #allocation11 [shape = 's32[]', space=sflag, size = 0x4, offset = 0, fixed_abs, tag = 'sflag constant byte address 0x0 - dummy sync flag']
  #allocation12 [shape = 'u32[]', space=smem, size = 0x4, offset = 0x44, fixed_abs, tag = 'smem constant byte address 0x44 - assertion arg 0']
  #allocation13 [shape = 'u32[]', space=smem, size = 0x4, offset = 0x48, fixed_abs, tag = 'smem constant byte address 0x48 - assertion arg 1']
  %s0 = inlined_call_operand.hbm [shape: bf16[2,20,24,128], index: 0, kind: input, shape index: {}]
  %s1 = inlined_call_operand.hbm [shape: bf16[9,128,128], index: 1, kind: input, shape index: {}]
  %s2 = inlined_call_operand.hbm [shape: bf16[9,128,128], index: 2, kind: input, shape index: {}]
  %s3 = inlined_call_operand.vmem [shape: f32[1,128], index: 3, kind: input, shape index: {}]
  %s4 = inlined_call_operand.vmem [shape: f32[1,128], index: 4, kind: input, shape index: {}]
  %s5 = inlined_call_operand.hbm [shape: f32[2,16,16,128], index: 5, kind: output, shape index: {}]
  %s6 = sld [smem:[#allocation0]]
  $region61: #{tpu_custom_call.1} parent=0
    _
  %s8 = ssub.s32 1, %s6
  %s9 = scalar_select 0, %s8, %s6
  $region1: #{tpu_custom_call.1} parent=0
    #allocation4 [shape = 'u8[294912]{0}', space=vmem, size = 0x48000, scoped, tag = 'input window, operand 1, single buffered']
    #allocation5 [shape = 's32[2]{0}', space=sflag, size = 0x8, scoped, tag = 'scoped memory for tpu_custom_call.1']
    #allocation6 [shape = 's32[2]{0}', space=sflag, size = 0x8, scoped, tag = 'scoped memory for tpu_custom_call.1']
    #allocation7 [shape = 'u8[294912]{0}', space=vmem, size = 0x48000, scoped, tag = 'input window, operand 2, single buffered']
    #allocation8 [shape = 's32[1]{0}', space=sflag, size = 0x4, scoped, tag = 'scoped memory for tpu_custom_call.1']
    #allocation9 [shape = 'u8[131072]{0}', space=vmem, size = 0x20000, scoped, tag = 'output window, operand 0']
    %10 = vsyncpa [#allocation5], 0
    %11 = vsyncpa [#allocation8], 0
    %12 = vsyncpa [#allocation6], 0
    %s13 = scalar_lea.sflag [#allocation6], 1
    %14 = vsyncpa %s13, 0
    loop: start=0, step=1, limit=6
    $region2: #{tpu_custom_call.1} parent=1 // loop_pre_header
      _
    $region3: #{tpu_custom_call.1} parent=1 // loop_header
      %s16 = sphi 0, %s20
      %p17 = scmp.ge.s32.totalorder %s16, 6
      %s23 = sphi 0, %s35
      %s24 = sphi 0, %s31
      %s25 = sphi 0, %s23
      %s26 = sphi 0, %s24
      %s27 = sphi 0, %s25
      %s28 = sphi 0, %s26
      %s36 = sphi 0, %s36
      %s38 = sphi 0, %s36
      %s39 = sphi 0, %s38
      %s53 = sphi 0, %s39
      %s57 = sphi 0, %s57
      %s59 = sphi 0, %s57
      %s60 = sphi 0, %s59
      %s74 = sphi 0, %s60
      %s78 = sphi 0, %s78
      %s80 = sphi 0, %s78
      %s81 = sphi 0, %s80
      %s95 = sphi 0, %s81
      %s99 = sphi 0, %s99
      %s101 = sphi 0, %s99
      %s102 = sphi 0, %s101
      %s116 = sphi 0, %s102
      %s124 = sphi 0, %s126
      %s127 = sphi 0, %s124
      %s128 = sphi 0, %s127
      %s144 = sphi 0, %s128
    $region4: #{tpu_custom_call.1} parent=1 // loop_header_branch
      %19 = sbr.rel (%p17) target = $region8
    $region5: #{tpu_custom_call.1} parent=1 // loop_body
      %s21 = ssub.s32 %s16, 1
      %s22 = ssub.s32 %s16, 2
      %s29 = sadd.s32 1, %s24
      %p30 = scmp.ge.s32.totalorder %s29, 2
      %s31 = scalar_select %p30, 0, %s29
      %s32 = sadd.s32 1, %s23
      %s33 = scalar_select %p30, %s32, %s23
      %p34 = scmp.ge.s32.totalorder %s33, 2
      %s35 = scalar_select %p34, 0, %s33
      %s37 = sadd.s32 %s36, 1
      %p40 = scmp.eq.s32.totalorder %s16, 3
      %p41 = scmp.ne.s32.totalorder %s36, %s38
      %p42 = scmp.eq.s32.totalorder %s16, 0
      %p43 = por %p41, %p42
      %p44 = scmp.ne.s32.totalorder %s36, %s38
      %p45 = scmp.eq.s32.totalorder %s21, 3
      %p46 = por %p44, %p45
      %p47 = scmp.ne.s32.totalorder %s38, %s39
      %p48 = scmp.eq.s32.totalorder %s21, 0
      %p49 = por %p47, %p48
      %p50 = scmp.ne.s32.totalorder %s38, %s39
      %p51 = scmp.eq.s32.totalorder %s22, 3
      %p52 = por %p50, %p51
      %p54 = scmp.ne.s32.totalorder %s39, %s53
      %p55 = scmp.eq.s32.totalorder %s22, 0
      %p56 = por %p54, %p55
      %s58 = sadd.s32 %s57, 1
      %p61 = scmp.eq.s32.totalorder %s16, 3
      %p62 = scmp.ne.s32.totalorder %s57, %s59
      %p63 = scmp.eq.s32.totalorder %s16, 0
      %p64 = por %p62, %p63
      %p65 = scmp.ne.s32.totalorder %s57, %s59
      %p66 = scmp.eq.s32.totalorder %s21, 3
      %p67 = por %p65, %p66
      %p68 = scmp.ne.s32.totalorder %s59, %s60
      %p69 = scmp.eq.s32.totalorder %s21, 0
      %p70 = por %p68, %p69
      %p71 = scmp.ne.s32.totalorder %s59, %s60
      %p72 = scmp.eq.s32.totalorder %s22, 3
      %p73 = por %p71, %p72
      %p75 = scmp.ne.s32.totalorder %s60, %s74
      %p76 = scmp.eq.s32.totalorder %s22, 0
      %p77 = por %p75, %p76
      %s79 = sadd.s32 %s78, 1
      %p82 = scmp.eq.s32.totalorder %s16, 3
      %p83 = scmp.ne.s32.totalorder %s78, %s80
      %p84 = scmp.eq.s32.totalorder %s16, 0
      %p85 = por %p83, %p84
      %p86 = scmp.ne.s32.totalorder %s78, %s80
      %p87 = scmp.eq.s32.totalorder %s21, 3
      %p88 = por %p86, %p87
      %p89 = scmp.ne.s32.totalorder %s80, %s81
      %p90 = scmp.eq.s32.totalorder %s21, 0
      %p91 = por %p89, %p90
      %p92 = scmp.ne.s32.totalorder %s80, %s81
      %p93 = scmp.eq.s32.totalorder %s22, 3
      %p94 = por %p92, %p93
      %p96 = scmp.ne.s32.totalorder %s81, %s95
      %p97 = scmp.eq.s32.totalorder %s22, 0
      %p98 = por %p96, %p97
      %s100 = sadd.s32 %s99, 1
      %p103 = scmp.eq.s32.totalorder %s16, 3
      %p104 = scmp.ne.s32.totalorder %s99, %s101
      %p105 = scmp.eq.s32.totalorder %s16, 0
      %p106 = por %p104, %p105
      %p107 = scmp.ne.s32.totalorder %s99, %s101
      %p108 = scmp.eq.s32.totalorder %s21, 3
      %p109 = por %p107, %p108
      %p110 = scmp.ne.s32.totalorder %s101, %s102
      %p111 = scmp.eq.s32.totalorder %s21, 0
      %p112 = por %p110, %p111
      %p113 = scmp.ne.s32.totalorder %s101, %s102
      %p114 = scmp.eq.s32.totalorder %s22, 3
      %p115 = por %p113, %p114
      %p117 = scmp.ne.s32.totalorder %s102, %s116
      %p118 = scmp.eq.s32.totalorder %s22, 0
      %p119 = por %p117, %p118
      %s120 = ssub.s32 %s23, %s35
      %s121 = ssub.s32 %s24, %s31
      %s122 = sor.u32 %s120, %s121
      %p123 = scmp.eq.s32.totalorder %s122, 0
      %s125 = sadd.s32 %s124, 1
      %s126 = scalar_select %p123, %s124, %s125
      %p129 = pneg %p123
      %p130 = scmp.eq.s32.totalorder %s16, 3
      %p131 = por %p129, %p130
      %p132 = scmp.ne.s32.totalorder %s124, %s127
      %p133 = scmp.eq.s32.totalorder %s16, 0
      %p134 = por %p132, %p133
      %p135 = scmp.ne.s32.totalorder %s124, %s127
      %p136 = scmp.eq.s32.totalorder %s21, 3
      %p137 = por %p135, %p136
      %p138 = scmp.ne.s32.totalorder %s127, %s128
      %p139 = scmp.eq.s32.totalorder %s21, 0
      %p140 = por %p138, %p139
      %p141 = scmp.ne.s32.totalorder %s127, %s128
      %p142 = scmp.eq.s32.totalorder %s22, 3
      %p143 = por %p141, %p142
      %p145 = scmp.ne.s32.totalorder %s128, %s144
      %p146 = scmp.eq.s32.totalorder %s22, 0
      %p147 = por %p145, %p146
      %p148 = scmp.le.s32.totalorder 1, %s16
      %p149 = scmp.lt.s32.totalorder %s16, 5
      %p150 = pnand %p148, %p149
      %p151 = pneg %p150
      // Predicated region
      $region9: #{tpu_custom_call.1} parent=5 // pred_check
        _
      $region10: #{tpu_custom_call.1} parent=5 // pred_check_branch
        %153 = sbr.rel (%p150) target = $region12
      $region11: #{tpu_custom_call.1} parent=5 // pred_region
        %s154 = ssub.s32 %s16, 1
        // Predicated region
        $region13: #{tpu_custom_call.1} parent=11 // pred_check
          %p155 = pneg %p49
        $region14: #{tpu_custom_call.1} parent=11 // pred_check_branch
          %157 = sbr.rel (%p155) target = $region16
        $region15: #{tpu_custom_call.1} parent=11 // pred_region
          %s159 = ssub.s32 9216, 9216
          %160 = vsyncadd [#allocation5], %s159
          %s161 = sshll.u32 [#allocation4], 4
          %s162 = int_to_ptr.vmem [resolvable:$true] %s161
          %167 = dma.hbm_to_vmem [thread:$0]  %s1, 9216, %s162, [#allocation5], 64, 64, 4
        $region16: #{tpu_custom_call.1} parent=11 // pred_fallthru
          _
        // Predicated region
        $region17: #{tpu_custom_call.1} parent=11 // pred_check
          %p168 = pneg %p70
        $region18: #{tpu_custom_call.1} parent=11 // pred_check_branch
          %170 = sbr.rel (%p168) target = $region20
        $region19: #{tpu_custom_call.1} parent=11 // pred_region
          %s172 = ssub.s32 9216, 9216
          %173 = vsyncadd [#allocation8], %s172
          %s174 = sshll.u32 [#allocation7], 4
          %s175 = int_to_ptr.vmem [resolvable:$true] %s174
          %180 = dma.hbm_to_vmem [thread:$0]  %s2, 9216, %s175, [#allocation8], 64, 64, 4
        $region20: #{tpu_custom_call.1} parent=11 // pred_fallthru
          _
        // Predicated region
        $region21: #{tpu_custom_call.1} parent=11 // pred_check
          %p181 = pneg %p91
        $region22: #{tpu_custom_call.1} parent=11 // pred_check_branch
          %183 = sbr.rel (%p181) target = $region24
        $region23: #{tpu_custom_call.1} parent=11 // pred_region
          _
        $region24: #{tpu_custom_call.1} parent=11 // pred_fallthru
          _
        // Predicated region
        $region25: #{tpu_custom_call.1} parent=11 // pred_check
          %p184 = pneg %p112
        $region26: #{tpu_custom_call.1} parent=11 // pred_check_branch
          %186 = sbr.rel (%p184) target = $region28
        $region27: #{tpu_custom_call.1} parent=11 // pred_region
          _
        $region28: #{tpu_custom_call.1} parent=11 // pred_fallthru
          _
      $region12: #{tpu_custom_call.1} parent=5 // pred_fallthru
        _
      %p187 = scmp.lt.s32.totalorder %s16, 4
      // Predicated region
      $region29: #{tpu_custom_call.1} parent=5 // pred_check
        %p188 = pneg %p187
      $region30: #{tpu_custom_call.1} parent=5 // pred_check_branch
        %190 = sbr.rel (%p188) target = $region32
      $region31: #{tpu_custom_call.1} parent=5 // pred_region
        _
      $region32: #{tpu_custom_call.1} parent=5 // pred_fallthru
        _
      %p191 = scmp.le.s32.totalorder 1, %s16
      %p192 = scmp.lt.s32.totalorder %s16, 5
      %p193 = pnand %p191, %p192
      %p194 = pneg %p193
      // Predicated region
      $region33: #{tpu_custom_call.1} parent=5 // pred_check
        _
      $region34: #{tpu_custom_call.1} parent=5 // pred_check_branch
        %196 = sbr.rel (%p193) target = $region36
      $region35: #{tpu_custom_call.1} parent=5 // pred_region
        %s197 = ssub.s32 %s16, 1
        // Predicated region
        $region37: #{tpu_custom_call.1} parent=35 // pred_check
          %p198 = pneg %p49
        $region38: #{tpu_custom_call.1} parent=35 // pred_check_branch
          %200 = sbr.rel (%p198) target = $region40
        $region39: #{tpu_custom_call.1} parent=35 // pred_region
          %201 = dma.done [#allocation5], 9216
        $region40: #{tpu_custom_call.1} parent=35 // pred_fallthru
          _
        // Predicated region
        $region41: #{tpu_custom_call.1} parent=35 // pred_check
          %p202 = pneg %p70
        $region42: #{tpu_custom_call.1} parent=35 // pred_check_branch
          %204 = sbr.rel (%p202) target = $region44
        $region43: #{tpu_custom_call.1} parent=35 // pred_region
          %205 = dma.done [#allocation8], 9216
        $region44: #{tpu_custom_call.1} parent=35 // pred_fallthru
          _
        %p206 = pneg %p49
        %p207 = pneg %p46
        %p208 = pneg %p70
        %p209 = pneg %p67
        %p210 = pneg %p91
        %p211 = pneg %p88
        %p212 = pneg %p112
        %p213 = pneg %p109
        %p214 = pneg %p140
        %p215 = pneg %p137
        %s216 = sand.u32 %s127, 1
        %s217 = scalar_lea.sflag [#allocation6], %s216
        %s218 = sand.u32 %s127, 1
        %s219 = smul.addr %s218, 128
        %s220 = scalar_lea.vmem [#allocation9], %s219
        %s221 = smul.u32 8, %s26
        %s223 = smul.u32 %s26, 8
        %s224 = smul.u32 %s223, 3
        %s225 = smul.u32 %s25, 60
        %s226 = sadd.s32 %s224, %s225
        %s227 = smul.addr %s226, 64
        %s228 = scalar_lea.hbm %s0, %s227
        // Predicated region
        $region45: #{tpu_custom_call.1} parent=35 // pred_check
          _
        $region46: #{tpu_custom_call.1} parent=35 // pred_check_branch
          %230 = sbr.rel target = $region48
        $region47: #{tpu_custom_call.1} parent=35 // pred_region
          %231 = sst [smem:[#allocation12]] [#allocation11]
          %232 = sst [smem:[#allocation13]] [#allocation10]
        $region48: #{tpu_custom_call.1} parent=35 // pred_fallthru
          _
        %234 = shalt.err (0)
        %s236 = sshll.u32 [#allocation2], 4
        %s237 = int_to_ptr.vmem [resolvable:$true] %s236
        %239 = dma.hbm_to_vmem [thread:$0]  %s228, 2304, %s237, [#allocation3]
        %s240 = smul.u32 4, 12
        %s241 = smul.u32 %s240, 3
        %s242 = smul.u32 %s241, 1
        %s243 = sshll.u32 %s242, 4
        %244 = dma.done [#allocation3], %s243
        %v245 = vld [vmem:[#allocation2] sm:$0xf]
        %v246 = vld [vmem:[#allocation2 + $0x4] sm:$0xf]
        %v247 = vld [vmem:[#allocation2 + $0xc] sm:$0xf]
        %v248 = vld [vmem:[#allocation2 + $0x10] sm:$0xf]
        %v249 = vld [vmem:[#allocation2 + $0x18] sm:$0xf]
        %v250 = vld [vmem:[#allocation2 + $0x1c] sm:$0xf]
        %v251 = vld [vmem:[#allocation2 + $0x24] sm:$0xf]
        %v252 = vld [vmem:[#allocation2 + $0x28] sm:$0xf]
        %v253 = vld [vmem:[#allocation2 + $0x30] sm:$0xf]
        %v254 = vld [vmem:[#allocation2 + $0x34] sm:$0xf]
        %v255 = vld [vmem:[#allocation2 + $0x3c] sm:$0xf]
        %v256 = vld [vmem:[#allocation2 + $0x40] sm:$0xf]
        %v257 = vld [vmem:[#allocation2 + $0x48] sm:$0xf]
        %v258 = vld [vmem:[#allocation2 + $0x4c] sm:$0xf]
        %v259 = vld [vmem:[#allocation2 + $0x54] sm:$0xf]
        %v260 = vld [vmem:[#allocation2 + $0x58] sm:$0xf]
        %v261 = vld [vmem:[#allocation2 + $0x60] sm:$0xf]
        %v262 = vld [vmem:[#allocation2 + $0x64] sm:$0xf]
        %v263 = vld [vmem:[#allocation2 + $0x6c] sm:$0xf]
        %v264 = vld [vmem:[#allocation2 + $0x70] sm:$0xf]
        %v265 = vld [vmem:[#allocation4] sm:$0xf]
        %v266 = vld [vmem:[#allocation4 + $0x4] sm:$0xf]
        %v267 = vld [vmem:[#allocation4 + $0x8] sm:$0xf]
        %v268 = vld [vmem:[#allocation4 + $0xc] sm:$0xf]
        %v269 = vld [vmem:[#allocation4 + $0x10] sm:$0xf]
        %v270 = vld [vmem:[#allocation4 + $0x14] sm:$0xf]
        %v271 = vld [vmem:[#allocation4 + $0x18] sm:$0xf]
        %v272 = vld [vmem:[#allocation4 + $0x1c] sm:$0xf]
        %v273 = vld [vmem:[#allocation4 + $0x20] sm:$0xf]
        %v274 = vld [vmem:[#allocation4 + $0x24] sm:$0xf]
        %v275 = vld [vmem:[#allocation4 + $0x28] sm:$0xf]
        %v276 = vld [vmem:[#allocation4 + $0x2c] sm:$0xf]
        %v277 = vld [vmem:[#allocation4 + $0x30] sm:$0xf]
        %v278 = vld [vmem:[#allocation4 + $0x34] sm:$0xf]
        %v279 = vld [vmem:[#allocation4 + $0x38] sm:$0xf]
        %v280 = vld [vmem:[#allocation4 + $0x3c] sm:$0xf]
        %v281 = vld [vmem:[#allocation2 + $0x8] sm:$0x1]
        %v282 = vld [vmem:[#allocation2 + $0x14] sm:$0x1]
        %v283 = vld [vmem:[#allocation2 + $0x20] sm:$0x1]
        %v284 = vld [vmem:[#allocation2 + $0x2c] sm:$0x1]
        %v285 = vld [vmem:[#allocation2 + $0x38] sm:$0x1]
        %v286 = vld [vmem:[#allocation2 + $0x44] sm:$0x1]
        %v287 = vld [vmem:[#allocation2 + $0x50] sm:$0x1]
        %v288 = vld [vmem:[#allocation2 + $0x5c] sm:$0x1]
        %v289 = vld [vmem:[#allocation2 + $0x68] sm:$0x1]
        %v290 = vld [vmem:[#allocation2 + $0x74] sm:$0x1]
        %vm291 = vsmask.f32 3328
        %vm292 = vsmask.f32 7440
        %vm293 = vmor %vm291, %vm292
        %v295 = vshrl.u32 %v245, 16
        %v297 = vrot.slane %v295, 4
        %v298 = vshll.u32 %v245, 16
        %v300 = vrot.slane %v298, 5
        %v301 = vor.u32 %v297, %v300
        %v302 = vrot.slane %v301, 4
        %v304 = vshll.u32 %v246, 16
        %v306 = vrot.slane %v304, 5
        %v307 = vsel %vm293, %v302, %v306
        %v308 = vshrl.u32 %v246, 16
        %v310 = vrot.slane %v308, 4
        %v311 = vor.u32 %v310, %v306
        %v312 = vrot.slane %v311, 4
        %v314 = vshll.u32 %v281, 16
        %v316 = vrot.slane %v314, 5
        %v317 = vsel %vm293, %v312, %v316
        %v319 = vshrl.u32 %v247, 16
        %v321 = vrot.slane %v319, 4
        %v322 = vshll.u32 %v247, 16
        %v324 = vrot.slane %v322, 5
        %v325 = vor.u32 %v321, %v324
        %v326 = vrot.slane %v325, 4
        %v328 = vshll.u32 %v248, 16
        %v330 = vrot.slane %v328, 5
        %v331 = vsel %vm293, %v326, %v330
        %v332 = vshrl.u32 %v248, 16
        %v334 = vrot.slane %v332, 4
        %v335 = vor.u32 %v334, %v330
        %v336 = vrot.slane %v335, 4
        %v338 = vshll.u32 %v282, 16
        %v340 = vrot.slane %v338, 5
        %v341 = vsel %vm293, %v336, %v340
        %v343 = vshrl.u32 %v249, 16
        %v345 = vrot.slane %v343, 4
        %v346 = vshll.u32 %v249, 16
        %v348 = vrot.slane %v346, 5
        %v349 = vor.u32 %v345, %v348
        %v350 = vrot.slane %v349, 4
        %v352 = vshll.u32 %v250, 16
        %v354 = vrot.slane %v352, 5
        %v355 = vsel %vm293, %v350, %v354
        %v356 = vshrl.u32 %v250, 16
        %v358 = vrot.slane %v356, 4
        %v359 = vor.u32 %v358, %v354
        %v360 = vrot.slane %v359, 4
        %v362 = vshll.u32 %v283, 16
        %v364 = vrot.slane %v362, 5
        %v365 = vsel %vm293, %v360, %v364
        %v367 = vshrl.u32 %v251, 16
        %v369 = vrot.slane %v367, 4
        %v370 = vshll.u32 %v251, 16
        %v372 = vrot.slane %v370, 5
        %v373 = vor.u32 %v369, %v372
        %v374 = vrot.slane %v373, 4
        %v376 = vshll.u32 %v252, 16
        %v378 = vrot.slane %v376, 5
        %v379 = vsel %vm293, %v374, %v378
        %v380 = vshrl.u32 %v252, 16
        %v382 = vrot.slane %v380, 4
        %v383 = vor.u32 %v382, %v378
        %v384 = vrot.slane %v383, 4
        %v386 = vshll.u32 %v284, 16
        %v388 = vrot.slane %v386, 5
        %v389 = vsel %vm293, %v384, %v388
        %v391 = vshrl.u32 %v253, 16
        %v393 = vrot.slane %v391, 4
        %v394 = vshll.u32 %v253, 16
        %v396 = vrot.slane %v394, 5
        %v397 = vor.u32 %v393, %v396
        %v398 = vrot.slane %v397, 4
        %v400 = vshll.u32 %v254, 16
        %v402 = vrot.slane %v400, 5
        %v403 = vsel %vm293, %v398, %v402
        %v404 = vshrl.u32 %v254, 16
        %v406 = vrot.slane %v404, 4
        %v407 = vor.u32 %v406, %v402
        %v408 = vrot.slane %v407, 4
        %v410 = vshll.u32 %v285, 16
        %v412 = vrot.slane %v410, 5
        %v413 = vsel %vm293, %v408, %v412
        %v415 = vshrl.u32 %v255, 16
        %v417 = vrot.slane %v415, 4
        %v418 = vshll.u32 %v255, 16
        %v420 = vrot.slane %v418, 5
        %v421 = vor.u32 %v417, %v420
        %v422 = vrot.slane %v421, 4
        %v424 = vshll.u32 %v256, 16
        %v426 = vrot.slane %v424, 5
        %v427 = vsel %vm293, %v422, %v426
        %v428 = vshrl.u32 %v256, 16
        %v430 = vrot.slane %v428, 4
        %v431 = vor.u32 %v430, %v426
        %v432 = vrot.slane %v431, 4
        %v434 = vshll.u32 %v286, 16
        %v436 = vrot.slane %v434, 5
        %v437 = vsel %vm293, %v432, %v436
        %v439 = vshrl.u32 %v257, 16
        %v441 = vrot.slane %v439, 4
        %v442 = vshll.u32 %v257, 16
        %v444 = vrot.slane %v442, 5
        %v445 = vor.u32 %v441, %v444
        %v446 = vrot.slane %v445, 4
        %v448 = vshll.u32 %v258, 16
        %v450 = vrot.slane %v448, 5
        %v451 = vsel %vm293, %v446, %v450
        %v452 = vshrl.u32 %v258, 16
        %v454 = vrot.slane %v452, 4
        %v455 = vor.u32 %v454, %v450
        %v456 = vrot.slane %v455, 4
        %v458 = vshll.u32 %v287, 16
        %v460 = vrot.slane %v458, 5
        %v461 = vsel %vm293, %v456, %v460
        %v463 = vshrl.u32 %v259, 16
        %v465 = vrot.slane %v463, 4
        %v466 = vshll.u32 %v259, 16
        %v468 = vrot.slane %v466, 5
        %v469 = vor.u32 %v465, %v468
        %v470 = vrot.slane %v469, 4
        %v472 = vshll.u32 %v260, 16
        %v474 = vrot.slane %v472, 5
        %v475 = vsel %vm293, %v470, %v474
        %v476 = vshrl.u32 %v260, 16
        %v478 = vrot.slane %v476, 4
        %v479 = vor.u32 %v478, %v474
        %v480 = vrot.slane %v479, 4
        %v482 = vshll.u32 %v288, 16
        %v484 = vrot.slane %v482, 5
        %v485 = vsel %vm293, %v480, %v484
        %v487 = vshrl.u32 %v261, 16
        %v489 = vrot.slane %v487, 4
        %v490 = vshll.u32 %v261, 16
        %v492 = vrot.slane %v490, 5
        %v493 = vor.u32 %v489, %v492
        %v494 = vrot.slane %v493, 4
        %v496 = vshll.u32 %v262, 16
        %v498 = vrot.slane %v496, 5
        %v499 = vsel %vm293, %v494, %v498
        %v500 = vshrl.u32 %v262, 16
        %v502 = vrot.slane %v500, 4
        %v503 = vor.u32 %v502, %v498
        %v504 = vrot.slane %v503, 4
        %v506 = vshll.u32 %v289, 16
        %v508 = vrot.slane %v506, 5
        %v509 = vsel %vm293, %v504, %v508
        %v511 = vshrl.u32 %v263, 16
        %v513 = vrot.slane %v511, 4
        %v514 = vshll.u32 %v263, 16
        %v516 = vrot.slane %v514, 5
        %v517 = vor.u32 %v513, %v516
        %v518 = vrot.slane %v517, 4
        %v520 = vshll.u32 %v264, 16
        %v522 = vrot.slane %v520, 5
        %v523 = vsel %vm293, %v518, %v522
        %v524 = vshrl.u32 %v264, 16
        %v526 = vrot.slane %v524, 4
        %v527 = vor.u32 %v526, %v522
        %v528 = vrot.slane %v527, 4
        %v530 = vshll.u32 %v290, 16
        %v532 = vrot.slane %v530, 5
        %v533 = vsel %vm293, %v528, %v532
        %s534 = scalar_lea.vmem [#allocation4], 64
        %v535 = vld [vmem:[%s534] sm:$0xf]
        %v536 = vld [vmem:[%s534 + $0x4] sm:$0xf]
        %v537 = vld [vmem:[%s534 + $0x8] sm:$0xf]
        %v538 = vld [vmem:[%s534 + $0xc] sm:$0xf]
        %v539 = vld [vmem:[%s534 + $0x10] sm:$0xf]
        %v540 = vld [vmem:[%s534 + $0x14] sm:$0xf]
        %v541 = vld [vmem:[%s534 + $0x18] sm:$0xf]
        %v542 = vld [vmem:[%s534 + $0x1c] sm:$0xf]
        %v543 = vld [vmem:[%s534 + $0x20] sm:$0xf]
        %v544 = vld [vmem:[%s534 + $0x24] sm:$0xf]
        %v545 = vld [vmem:[%s534 + $0x28] sm:$0xf]
        %v546 = vld [vmem:[%s534 + $0x2c] sm:$0xf]
        %v547 = vld [vmem:[%s534 + $0x30] sm:$0xf]
        %v548 = vld [vmem:[%s534 + $0x34] sm:$0xf]
        %v549 = vld [vmem:[%s534 + $0x38] sm:$0xf]
        %v550 = vld [vmem:[%s534 + $0x3c] sm:$0xf]
        %v551 = vunpack.c.l.b16 %v307
        %v552 = vunpack.c.l.b16 %v317
        %v553 = vunpack.c.l.b16 %v331
        %v554 = vunpack.c.l.b16 %v341
        %v555 = vunpack.c.l.b16 %v355
        %v556 = vunpack.c.l.b16 %v365
        %v557 = vunpack.c.l.b16 %v379
        %v558 = vunpack.c.l.b16 %v389
        %v559 = vunpack.c.l.b16 %v403
        %v560 = vunpack.c.l.b16 %v413
        %v561 = vunpack.c.l.b16 %v427
        %v562 = vunpack.c.l.b16 %v437
        %v563 = vunpack.c.l.b16 %v451
        %v564 = vunpack.c.l.b16 %v461
        %v565 = vunpack.c.l.b16 %v475
        %v566 = vunpack.c.l.b16 %v485
        %v567 = vunpack.c.l.b16 %v499
        %v568 = vunpack.c.l.b16 %v509
        %v569 = vunpack.c.l.b16 %v523
        %v570 = vunpack.c.l.b16 %v533
        %v571 = vpack.c.b16 %v552, %v551
        %v572 = vpack.c.b16 %v554, %v553
        %v573 = vpack.c.b16 %v556, %v555
        %v574 = vpack.c.b16 %v558, %v557
        %v575 = vpack.c.b16 %v560, %v559
        %v576 = vpack.c.b16 %v562, %v561
        %v577 = vpack.c.b16 %v564, %v563
        %v578 = vpack.c.b16 %v566, %v565
        %v579 = vpack.c.b16 %v568, %v567
        %v580 = vpack.c.b16 %v570, %v569
        %v607 = vunpack.c.l.b16 %v535
        %v608 = vunpack.c.l.b16 %v536
        %v609 = vunpack.c.l.b16 %v537
        %v610 = vunpack.c.l.b16 %v538
        %v611 = vunpack.c.l.b16 %v539
        %v612 = vunpack.c.l.b16 %v540
        %v613 = vunpack.c.l.b16 %v541
        %v614 = vunpack.c.l.b16 %v542
        %v615 = vunpack.c.l.b16 %v543
        %v616 = vunpack.c.l.b16 %v544
        %v617 = vunpack.c.l.b16 %v545
        %v618 = vunpack.c.l.b16 %v546
        %v619 = vunpack.c.l.b16 %v547
        %v620 = vunpack.c.l.b16 %v548
        %v621 = vunpack.c.l.b16 %v549
        %v622 = vunpack.c.l.b16 %v550
        %v623 = vpack.c.b16 %v608, %v607
        %v624 = vpack.c.b16 %v610, %v609
        %v625 = vpack.c.b16 %v612, %v611
        %v626 = vpack.c.b16 %v614, %v613
        %v627 = vpack.c.b16 %v616, %v615
        %v628 = vpack.c.b16 %v618, %v617
        %v629 = vpack.c.b16 %v620, %v619
        %v630 = vpack.c.b16 %v622, %v621
        %639 = vmatprep.subr.bf16.mxu0 0
        %640 = vmatpush1.bf16.msra.mxu0 %v623
        %641 = vmatprep.subr.bf16.mxu0 0
        %642 = vmatpush1.bf16.msra.mxu0 %v624
        %643 = vmatprep.subr.bf16.mxu0 0
        %644 = vmatpush1.bf16.msra.mxu0 %v625
        %645 = vmatprep.subr.bf16.mxu0 0
        %646 = vmatpush1.bf16.msra.mxu0 %v626
        %647 = vmatprep.subr.bf16.mxu0 0
        %648 = vmatpush1.bf16.msra.mxu0 %v627
        %649 = vmatprep.subr.bf16.mxu0 0
        %650 = vmatpush1.bf16.msra.mxu0 %v628
        %651 = vmatprep.subr.bf16.mxu0 0
        %652 = vmatpush1.bf16.msra.mxu0 %v629
        %653 = vmatprep.subr.bf16.mxu0 0
        %654 = vmatpush1.bf16.msra.mxu0 %v630
        %655 = vmatprep.subr.bf16.mxu0 0
        %656 = vmatpush1.bf16.msra.mxu0 0
        %657 = vmatprep.subr.bf16.mxu0 0
        %658 = vmatpush1.bf16.msra.mxu0 0
        %659 = vmatprep.subr.bf16.mxu0 0
        %660 = vmatpush1.bf16.msra.mxu0 0
        %661 = vmatprep.subr.bf16.mxu0 0
        %662 = vmatpush1.bf16.msra.mxu0 0
        %663 = vmatprep.subr.bf16.mxu0 0
        %664 = vmatpush1.bf16.msra.mxu0 0
        %665 = vmatprep.subr.bf16.mxu0 0
        %666 = vmatpush1.bf16.msra.mxu0 0
        %667 = vmatprep.subr.bf16.mxu0 0
        %668 = vmatpush1.bf16.msra.mxu0 0
        %669 = vmatprep.subr.bf16.mxu0 0
        %670 = vmatpush1.bf16.msra.mxu0 0
        %671 = vmatprep.mubr.bf16.mxu0 0
        %672 = vmatmul.mubr.bf16.gmra.mrb[0].mxu0 %v571
        %v673 = vpop.f32.mrb[0].mxu0
        %v674 = vadd.f32 0.0, %v673
        %v675 = vpop.f32.mrb[0].mxu0
        %v676 = vpop.f32.mrb[0].mxu0
        %v677 = vadd.f32 0.0, %v676
        %v678 = vpop.f32.mrb[0].mxu0
        %679 = vmatprep.mubr.bf16.mxu0 0
        %680 = vmatmul.mubr.bf16.gmra.mrb[0].mxu0 %v572
        %v681 = vpop.f32.mrb[0].mxu0
        %v682 = vadd.f32 0.0, %v681
        %v683 = vpop.f32.mrb[0].mxu0
        %v684 = vpop.f32.mrb[0].mxu0
        %v685 = vadd.f32 0.0, %v684
        %v686 = vpop.f32.mrb[0].mxu0
        %687 = vmatprep.mubr.bf16.mxu0 0
        %688 = vmatmul.mubr.bf16.gmra.mrb[0].mxu0 %v573
        %v689 = vpop.f32.mrb[0].mxu0
        %v690 = vadd.f32 0.0, %v689
        %v691 = vpop.f32.mrb[0].mxu0
        %v692 = vpop.f32.mrb[0].mxu0
        %v693 = vadd.f32 0.0, %v692
        %v694 = vpop.f32.mrb[0].mxu0
        %695 = vmatprep.mubr.bf16.mxu0 0
        %696 = vmatmul.mubr.bf16.gmra.mrb[0].mxu0 %v574
        %v697 = vpop.f32.mrb[0].mxu0
        %v698 = vadd.f32 0.0, %v697
        %v699 = vpop.f32.mrb[0].mxu0
        %v700 = vpop.f32.mrb[0].mxu0
        %v701 = vadd.f32 0.0, %v700
        %v702 = vpop.f32.mrb[0].mxu0
        %703 = vmatprep.mubr.bf16.mxu0 0
        %704 = vmatmul.mubr.bf16.gmra.mrb[0].mxu0 %v575
        %v705 = vpop.f32.mrb[0].mxu0
        %v706 = vadd.f32 0.0, %v705
        %v707 = vpop.f32.mrb[0].mxu0
        %v708 = vpop.f32.mrb[0].mxu0
        %v709 = vadd.f32 0.0, %v708
        %v710 = vpop.f32.mrb[0].mxu0
        %711 = vmatprep.mubr.bf16.mxu0 0
        %712 = vmatmul.mubr.bf16.gmra.mrb[0].mxu0 %v576
        %v713 = vpop.f32.mrb[0].mxu0
        %v714 = vadd.f32 0.0, %v713
        %v715 = vpop.f32.mrb[0].mxu0
        %v716 = vpop.f32.mrb[0].mxu0
        %v717 = vadd.f32 0.0, %v716
        %v718 = vpop.f32.mrb[0].mxu0
        %719 = vmatprep.mubr.bf16.mxu0 0
        %720 = vmatmul.mubr.bf16.gmra.mrb[0].mxu0 %v577
        %v721 = vpop.f32.mrb[0].mxu0
        %v722 = vadd.f32 0.0, %v721
        %v723 = vpop.f32.mrb[0].mxu0
        %v724 = vpop.f32.mrb[0].mxu0
        %v725 = vadd.f32 0.0, %v724
        %v726 = vpop.f32.mrb[0].mxu0
        %727 = vmatprep.mubr.bf16.mxu0 0
        %728 = vmatmul.mubr.bf16.gmra.mrb[0].mxu0 %v578
        %v729 = vpop.f32.mrb[0].mxu0
        %v730 = vadd.f32 0.0, %v729
        %v731 = vpop.f32.mrb[0].mxu0
        %v732 = vpop.f32.mrb[0].mxu0
        %v733 = vadd.f32 0.0, %v732
        %v734 = vpop.f32.mrb[0].mxu0
        %735 = vmatprep.mubr.bf16.mxu0 0
        %736 = vmatmul.mubr.bf16.gmra.mrb[0].mxu0 %v579
        %v737 = vpop.f32.mrb[0].mxu0
        %v738 = vadd.f32 0.0, %v737
        %v739 = vpop.f32.mrb[0].mxu0
        %v740 = vpop.f32.mrb[0].mxu0
        %v741 = vadd.f32 0.0, %v740
        %v742 = vpop.f32.mrb[0].mxu0
        %743 = vmatprep.mubr.bf16.mxu0 0
        %744 = vmatmul.mubr.bf16.gmra.mrb[0].mxu0 %v580
        %v745 = vpop.f32.mrb[0].mxu0
        %v746 = vadd.f32 0.0, %v745
        %v747 = vpop.f32.mrb[0].mxu0
        %v748 = vpop.f32.mrb[0].mxu0
        %v749 = vadd.f32 0.0, %v748
        %v750 = vpop.f32.mrb[0].mxu0
        %751 = vdwg.mxu0
        %v772 = vunpack.c.l.b16 %v245
        %v773 = vunpack.c.l.b16 %v246
        %v774 = vunpack.c.l.b16 %v247
        %v775 = vunpack.c.l.b16 %v248
        %v776 = vunpack.c.l.b16 %v249
        %v777 = vunpack.c.l.b16 %v250
        %v778 = vunpack.c.l.b16 %v251
        %v779 = vunpack.c.l.b16 %v252
        %v780 = vunpack.c.l.b16 %v253
        %v781 = vunpack.c.l.b16 %v254
        %v782 = vunpack.c.l.b16 %v255
        %v783 = vunpack.c.l.b16 %v256
        %v784 = vunpack.c.l.b16 %v257
        %v785 = vunpack.c.l.b16 %v258
        %v786 = vunpack.c.l.b16 %v259
        %v787 = vunpack.c.l.b16 %v260
        %v788 = vunpack.c.l.b16 %v261
        %v789 = vunpack.c.l.b16 %v262
        %v790 = vunpack.c.l.b16 %v263
        %v791 = vunpack.c.l.b16 %v264
        %v792 = vpack.c.b16 %v773, %v772
        %v793 = vpack.c.b16 %v775, %v774
        %v794 = vpack.c.b16 %v777, %v776
        %v795 = vpack.c.b16 %v779, %v778
        %v796 = vpack.c.b16 %v781, %v780
        %v797 = vpack.c.b16 %v783, %v782
        %v798 = vpack.c.b16 %v785, %v784
        %v799 = vpack.c.b16 %v787, %v786
        %v800 = vpack.c.b16 %v789, %v788
        %v801 = vpack.c.b16 %v791, %v790
        %v828 = vunpack.c.l.b16 %v265
        %v829 = vunpack.c.l.b16 %v266
        %v830 = vunpack.c.l.b16 %v267
        %v831 = vunpack.c.l.b16 %v268
        %v832 = vunpack.c.l.b16 %v269
        %v833 = vunpack.c.l.b16 %v270
        %v834 = vunpack.c.l.b16 %v271
        %v835 = vunpack.c.l.b16 %v272
        %v836 = vunpack.c.l.b16 %v273
        %v837 = vunpack.c.l.b16 %v274
        %v838 = vunpack.c.l.b16 %v275
        %v839 = vunpack.c.l.b16 %v276
        %v840 = vunpack.c.l.b16 %v277
        %v841 = vunpack.c.l.b16 %v278
        %v842 = vunpack.c.l.b16 %v279
        %v843 = vunpack.c.l.b16 %v280
        %v844 = vpack.c.b16 %v829, %v828
        %v845 = vpack.c.b16 %v831, %v830
        %v846 = vpack.c.b16 %v833, %v832
        %v847 = vpack.c.b16 %v835, %v834
        %v848 = vpack.c.b16 %v837, %v836
        %v849 = vpack.c.b16 %v839, %v838
        %v850 = vpack.c.b16 %v841, %v840
        %v851 = vpack.c.b16 %v843, %v842
        %860 = vmatprep.subr.bf16.mxu0 0
        %861 = vmatpush1.bf16.msra.mxu0 %v844
        %862 = vmatprep.subr.bf16.mxu0 0
        %863 = vmatpush1.bf16.msra.mxu0 %v845
        %864 = vmatprep.subr.bf16.mxu0 0
        %865 = vmatpush1.bf16.msra.mxu0 %v846
        %866 = vmatprep.subr.bf16.mxu0 0
        %867 = vmatpush1.bf16.msra.mxu0 %v847
        %868 = vmatprep.subr.bf16.mxu0 0
        %869 = vmatpush1.bf16.msra.mxu0 %v848
        %870 = vmatprep.subr.bf16.mxu0 0
        %871 = vmatpush1.bf16.msra.mxu0 %v849
        %872 = vmatprep.subr.bf16.mxu0 0
        %873 = vmatpush1.bf16.msra.mxu0 %v850
        %874 = vmatprep.subr.bf16.mxu0 0
        %875 = vmatpush1.bf16.msra.mxu0 %v851
        %876 = vmatprep.subr.bf16.mxu0 0
        %877 = vmatpush1.bf16.msra.mxu0 0
        %878 = vmatprep.subr.bf16.mxu0 0
        %879 = vmatpush1.bf16.msra.mxu0 0
        %880 = vmatprep.subr.bf16.mxu0 0
        %881 = vmatpush1.bf16.msra.mxu0 0
        %882 = vmatprep.subr.bf16.mxu0 0
        %883 = vmatpush1.bf16.msra.mxu0 0
        %884 = vmatprep.subr.bf16.mxu0 0
        %885 = vmatpush1.bf16.msra.mxu0 0
        %886 = vmatprep.subr.bf16.mxu0 0
        %887 = vmatpush1.bf16.msra.mxu0 0
        %888 = vmatprep.subr.bf16.mxu0 0
        %889 = vmatpush1.bf16.msra.mxu0 0
        %890 = vmatprep.subr.bf16.mxu0 0
        %891 = vmatpush1.bf16.msra.mxu0 0
        %892 = vmatprep.mubr.bf16.mxu0 0
        %893 = vmatmul.mubr.bf16.gmra.mrb[0].mxu0 %v792
        %v894 = vpop.f32.mrb[0].mxu0
        %v895 = vadd.f32 %v674, %v894
        %v896 = vpop.f32.mrb[0].mxu0
        %v897 = vpop.f32.mrb[0].mxu0
        %v898 = vadd.f32 %v677, %v897
        %v899 = vpop.f32.mrb[0].mxu0
        %900 = vmatprep.mubr.bf16.mxu0 0
        %901 = vmatmul.mubr.bf16.gmra.mrb[0].mxu0 %v793
        %v902 = vpop.f32.mrb[0].mxu0
        %v903 = vadd.f32 %v682, %v902
        %v904 = vpop.f32.mrb[0].mxu0
        %v905 = vpop.f32.mrb[0].mxu0
        %v906 = vadd.f32 %v685, %v905
        %v907 = vpop.f32.mrb[0].mxu0
        %908 = vmatprep.mubr.bf16.mxu0 0
        %909 = vmatmul.mubr.bf16.gmra.mrb[0].mxu0 %v794
        %v910 = vpop.f32.mrb[0].mxu0
        %v911 = vadd.f32 %v690, %v910
        %v912 = vpop.f32.mrb[0].mxu0
        %v913 = vpop.f32.mrb[0].mxu0
        %v914 = vadd.f32 %v693, %v913
        %v915 = vpop.f32.mrb[0].mxu0
        %916 = vmatprep.mubr.bf16.mxu0 0
        %917 = vmatmul.mubr.bf16.gmra.mrb[0].mxu0 %v795
        %v918 = vpop.f32.mrb[0].mxu0
        %v919 = vadd.f32 %v698, %v918
        %v920 = vpop.f32.mrb[0].mxu0
        %v921 = vpop.f32.mrb[0].mxu0
        %v922 = vadd.f32 %v701, %v921
        %v923 = vpop.f32.mrb[0].mxu0
        %924 = vmatprep.mubr.bf16.mxu0 0
        %925 = vmatmul.mubr.bf16.gmra.mrb[0].mxu0 %v796
        %v926 = vpop.f32.mrb[0].mxu0
        %v927 = vadd.f32 %v706, %v926
        %v928 = vpop.f32.mrb[0].mxu0
        %v929 = vpop.f32.mrb[0].mxu0
        %v930 = vadd.f32 %v709, %v929
        %v931 = vpop.f32.mrb[0].mxu0
        %932 = vmatprep.mubr.bf16.mxu0 0
        %933 = vmatmul.mubr.bf16.gmra.mrb[0].mxu0 %v797
        %v934 = vpop.f32.mrb[0].mxu0
        %v935 = vadd.f32 %v714, %v934
        %v936 = vpop.f32.mrb[0].mxu0
        %v937 = vpop.f32.mrb[0].mxu0
        %v938 = vadd.f32 %v717, %v937
        %v939 = vpop.f32.mrb[0].mxu0
        %940 = vmatprep.mubr.bf16.mxu0 0
        %941 = vmatmul.mubr.bf16.gmra.mrb[0].mxu0 %v798
        %v942 = vpop.f32.mrb[0].mxu0
        %v943 = vadd.f32 %v722, %v942
        %v944 = vpop.f32.mrb[0].mxu0
        %v945 = vpop.f32.mrb[0].mxu0
        %v946 = vadd.f32 %v725, %v945
        %v947 = vpop.f32.mrb[0].mxu0
        %948 = vmatprep.mubr.bf16.mxu0 0
        %949 = vmatmul.mubr.bf16.gmra.mrb[0].mxu0 %v799
        %v950 = vpop.f32.mrb[0].mxu0
        %v951 = vadd.f32 %v730, %v950
        %v952 = vpop.f32.mrb[0].mxu0
        %v953 = vpop.f32.mrb[0].mxu0
        %v954 = vadd.f32 %v733, %v953
        %v955 = vpop.f32.mrb[0].mxu0
        %956 = vmatprep.mubr.bf16.mxu0 0
        %957 = vmatmul.mubr.bf16.gmra.mrb[0].mxu0 %v800
        %v958 = vpop.f32.mrb[0].mxu0
        %v959 = vadd.f32 %v738, %v958
        %v960 = vpop.f32.mrb[0].mxu0
        %v961 = vpop.f32.mrb[0].mxu0
        %v962 = vadd.f32 %v741, %v961
        %v963 = vpop.f32.mrb[0].mxu0
        %964 = vmatprep.mubr.bf16.mxu0 0
        %965 = vmatmul.mubr.bf16.gmra.mrb[0].mxu0 %v801
        %v966 = vpop.f32.mrb[0].mxu0
        %v967 = vadd.f32 %v746, %v966
        %v968 = vpop.f32.mrb[0].mxu0
        %v969 = vpop.f32.mrb[0].mxu0
        %v970 = vadd.f32 %v749, %v969
        %v971 = vpop.f32.mrb[0].mxu0
        %972 = vdwg.mxu0
        %v973 = vld [vmem:[#allocation2] sm:$0xe]
        %v974 = vld [vmem:[#allocation2 + $0xc] sm:$0xe]
        %v975 = vld [vmem:[#allocation2 + $0x18] sm:$0xe]
        %v976 = vld [vmem:[#allocation2 + $0x24] sm:$0xe]
        %v977 = vld [vmem:[#allocation2 + $0x30] sm:$0xe]
        %v978 = vld [vmem:[#allocation2 + $0x3c] sm:$0xe]
        %v979 = vld [vmem:[#allocation2 + $0x48] sm:$0xe]
        %v980 = vld [vmem:[#allocation2 + $0x54] sm:$0xe]
        %v981 = vld [vmem:[#allocation2 + $0x60] sm:$0xe]
        %v982 = vld [vmem:[#allocation2 + $0x6c] sm:$0xe]
        %vm1003 = vcmask 1042432
        %vm1004 = vcmask 1046532
        %vm1005 = vmor %vm1003, %vm1004
        %v1006 = vrot.slane %v973, 5
        %v1007 = vrot.slane %v1006, 4
        %v1008 = vrot.slane %v246, 5
        %v1009 = vsel %vm1005, %v1007, %v1008
        %v1010 = vrot.slane %v1008, 4
        %v1011 = vrot.slane %v281, 5
        %v1012 = vsel %vm1005, %v1010, %v1011
        %v1013 = vrot.slane %v974, 5
        %v1014 = vrot.slane %v1013, 4
        %v1015 = vrot.slane %v248, 5
        %v1016 = vsel %vm1005, %v1014, %v1015
        %v1017 = vrot.slane %v1015, 4
        %v1018 = vrot.slane %v282, 5
        %v1019 = vsel %vm1005, %v1017, %v1018
        %v1020 = vrot.slane %v975, 5
        %v1021 = vrot.slane %v1020, 4
        %v1022 = vrot.slane %v250, 5
        %v1023 = vsel %vm1005, %v1021, %v1022
        %v1024 = vrot.slane %v1022, 4
        %v1025 = vrot.slane %v283, 5
        %v1026 = vsel %vm1005, %v1024, %v1025
        %v1027 = vrot.slane %v976, 5
        %v1028 = vrot.slane %v1027, 4
        %v1029 = vrot.slane %v252, 5
        %v1030 = vsel %vm1005, %v1028, %v1029
        %v1031 = vrot.slane %v1029, 4
        %v1032 = vrot.slane %v284, 5
        %v1033 = vsel %vm1005, %v1031, %v1032
        %v1034 = vrot.slane %v977, 5
        %v1035 = vrot.slane %v1034, 4
        %v1036 = vrot.slane %v254, 5
        %v1037 = vsel %vm1005, %v1035, %v1036
        %v1038 = vrot.slane %v1036, 4
        %v1039 = vrot.slane %v285, 5
        %v1040 = vsel %vm1005, %v1038, %v1039
        %v1041 = vrot.slane %v978, 5
        %v1042 = vrot.slane %v1041, 4
        %v1043 = vrot.slane %v256, 5
        %v1044 = vsel %vm1005, %v1042, %v1043
        %v1045 = vrot.slane %v1043, 4
        %v1046 = vrot.slane %v286, 5
        %v1047 = vsel %vm1005, %v1045, %v1046
        %v1048 = vrot.slane %v979, 5
        %v1049 = vrot.slane %v1048, 4
        %v1050 = vrot.slane %v258, 5
        %v1051 = vsel %vm1005, %v1049, %v1050
        %v1052 = vrot.slane %v1050, 4
        %v1053 = vrot.slane %v287, 5
        %v1054 = vsel %vm1005, %v1052, %v1053
        %v1055 = vrot.slane %v980, 5
        %v1056 = vrot.slane %v1055, 4
        %v1057 = vrot.slane %v260, 5
        %v1058 = vsel %vm1005, %v1056, %v1057
        %v1059 = vrot.slane %v1057, 4
        %v1060 = vrot.slane %v288, 5
        %v1061 = vsel %vm1005, %v1059, %v1060
        %v1062 = vrot.slane %v981, 5
        %v1063 = vrot.slane %v1062, 4
        %v1064 = vrot.slane %v262, 5
        %v1065 = vsel %vm1005, %v1063, %v1064
        %v1066 = vrot.slane %v1064, 4
        %v1067 = vrot.slane %v289, 5
        %v1068 = vsel %vm1005, %v1066, %v1067
        %v1069 = vrot.slane %v982, 5
        %v1070 = vrot.slane %v1069, 4
        %v1071 = vrot.slane %v264, 5
        %v1072 = vsel %vm1005, %v1070, %v1071
        %v1073 = vrot.slane %v1071, 4
        %v1074 = vrot.slane %v290, 5
        %v1075 = vsel %vm1005, %v1073, %v1074
        %s1076 = scalar_lea.vmem [#allocation4], 128
        %v1077 = vld [vmem:[%s1076] sm:$0xf]
        %v1078 = vld [vmem:[%s1076 + $0x4] sm:$0xf]
        %v1079 = vld [vmem:[%s1076 + $0x8] sm:$0xf]
        %v1080 = vld [vmem:[%s1076 + $0xc] sm:$0xf]
        %v1081 = vld [vmem:[%s1076 + $0x10] sm:$0xf]
        %v1082 = vld [vmem:[%s1076 + $0x14] sm:$0xf]
        %v1083 = vld [vmem:[%s1076 + $0x18] sm:$0xf]
        %v1084 = vld [vmem:[%s1076 + $0x1c] sm:$0xf]
        %v1085 = vld [vmem:[%s1076 + $0x20] sm:$0xf]
        %v1086 = vld [vmem:[%s1076 + $0x24] sm:$0xf]
        %v1087 = vld [vmem:[%s1076 + $0x28] sm:$0xf]
        %v1088 = vld [vmem:[%s1076 + $0x2c] sm:$0xf]
        %v1089 = vld [vmem:[%s1076 + $0x30] sm:$0xf]
        %v1090 = vld [vmem:[%s1076 + $0x34] sm:$0xf]
        %v1091 = vld [vmem:[%s1076 + $0x38] sm:$0xf]
        %v1092 = vld [vmem:[%s1076 + $0x3c] sm:$0xf]
        %v1093 = vunpack.c.l.b16 %v1009
        %v1094 = vunpack.c.l.b16 %v1012
        %v1095 = vunpack.c.l.b16 %v1016
        %v1096 = vunpack.c.l.b16 %v1019
        %v1097 = vunpack.c.l.b16 %v1023
        %v1098 = vunpack.c.l.b16 %v1026
        %v1099 = vunpack.c.l.b16 %v1030
        %v1100 = vunpack.c.l.b16 %v1033
        %v1101 = vunpack.c.l.b16 %v1037
        %v1102 = vunpack.c.l.b16 %v1040
        %v1103 = vunpack.c.l.b16 %v1044
        %v1104 = vunpack.c.l.b16 %v1047
        %v1105 = vunpack.c.l.b16 %v1051
        %v1106 = vunpack.c.l.b16 %v1054
        %v1107 = vunpack.c.l.b16 %v1058
        %v1108 = vunpack.c.l.b16 %v1061
        %v1109 = vunpack.c.l.b16 %v1065
        %v1110 = vunpack.c.l.b16 %v1068
        %v1111 = vunpack.c.l.b16 %v1072
        %v1112 = vunpack.c.l.b16 %v1075
        %v1113 = vpack.c.b16 %v1094, %v1093
        %v1114 = vpack.c.b16 %v1096, %v1095
        %v1115 = vpack.c.b16 %v1098, %v1097
        %v1116 = vpack.c.b16 %v1100, %v1099
        %v1117 = vpack.c.b16 %v1102, %v1101
        %v1118 = vpack.c.b16 %v1104, %v1103
        %v1119 = vpack.c.b16 %v1106, %v1105
        %v1120 = vpack.c.b16 %v1108, %v1107
        %v1121 = vpack.c.b16 %v1110, %v1109
        %v1122 = vpack.c.b16 %v1112, %v1111
        %v1149 = vunpack.c.l.b16 %v1077
        %v1150 = vunpack.c.l.b16 %v1078
        %v1151 = vunpack.c.l.b16 %v1079
        %v1152 = vunpack.c.l.b16 %v1080
        %v1153 = vunpack.c.l.b16 %v1081
        %v1154 = vunpack.c.l.b16 %v1082
        %v1155 = vunpack.c.l.b16 %v1083
        %v1156 = vunpack.c.l.b16 %v1084
        %v1157 = vunpack.c.l.b16 %v1085
        %v1158 = vunpack.c.l.b16 %v1086
        %v1159 = vunpack.c.l.b16 %v1087
        %v1160 = vunpack.c.l.b16 %v1088
        %v1161 = vunpack.c.l.b16 %v1089
        %v1162 = vunpack.c.l.b16 %v1090
        %v1163 = vunpack.c.l.b16 %v1091
        %v1164 = vunpack.c.l.b16 %v1092
        %v1165 = vpack.c.b16 %v1150, %v1149
        %v1166 = vpack.c.b16 %v1152, %v1151
        %v1167 = vpack.c.b16 %v1154, %v1153
        %v1168 = vpack.c.b16 %v1156, %v1155
        %v1169 = vpack.c.b16 %v1158, %v1157
        %v1170 = vpack.c.b16 %v1160, %v1159
        %v1171 = vpack.c.b16 %v1162, %v1161
        %v1172 = vpack.c.b16 %v1164, %v1163
        %1181 = vmatprep.subr.bf16.mxu0 0
        %1182 = vmatpush1.bf16.msra.mxu0 %v1165
        %1183 = vmatprep.subr.bf16.mxu0 0
        %1184 = vmatpush1.bf16.msra.mxu0 %v1166
        %1185 = vmatprep.subr.bf16.mxu0 0
        %1186 = vmatpush1.bf16.msra.mxu0 %v1167
        %1187 = vmatprep.subr.bf16.mxu0 0
        %1188 = vmatpush1.bf16.msra.mxu0 %v1168
        %1189 = vmatprep.subr.bf16.mxu0 0
        %1190 = vmatpush1.bf16.msra.mxu0 %v1169
        %1191 = vmatprep.subr.bf16.mxu0 0
        %1192 = vmatpush1.bf16.msra.mxu0 %v1170
        %1193 = vmatprep.subr.bf16.mxu0 0
        %1194 = vmatpush1.bf16.msra.mxu0 %v1171
        %1195 = vmatprep.subr.bf16.mxu0 0
        %1196 = vmatpush1.bf16.msra.mxu0 %v1172
        %1197 = vmatprep.subr.bf16.mxu0 0
        %1198 = vmatpush1.bf16.msra.mxu0 0
        %1199 = vmatprep.subr.bf16.mxu0 0
        %1200 = vmatpush1.bf16.msra.mxu0 0
        %1201 = vmatprep.subr.bf16.mxu0 0
        %1202 = vmatpush1.bf16.msra.mxu0 0
        %1203 = vmatprep.subr.bf16.mxu0 0
        %1204 = vmatpush1.bf16.msra.mxu0 0
        %1205 = vmatprep.subr.bf16.mxu0 0
        %1206 = vmatpush1.bf16.msra.mxu0 0
        %1207 = vmatprep.subr.bf16.mxu0 0
        %1208 = vmatpush1.bf16.msra.mxu0 0
        %1209 = vmatprep.subr.bf16.mxu0 0
        %1210 = vmatpush1.bf16.msra.mxu0 0
        %1211 = vmatprep.subr.bf16.mxu0 0
        %1212 = vmatpush1.bf16.msra.mxu0 0
        %1213 = vmatprep.mubr.bf16.mxu0 0
        %1214 = vmatmul.mubr.bf16.gmra.mrb[0].mxu0 %v1113
        %v1215 = vpop.f32.mrb[0].mxu0
        %v1216 = vadd.f32 0.0, %v1215
        %v1217 = vpop.f32.mrb[0].mxu0
        %v1218 = vpop.f32.mrb[0].mxu0
        %v1219 = vadd.f32 0.0, %v1218
        %v1220 = vpop.f32.mrb[0].mxu0
        %1221 = vmatprep.mubr.bf16.mxu0 0
        %1222 = vmatmul.mubr.bf16.gmra.mrb[0].mxu0 %v1114
        %v1223 = vpop.f32.mrb[0].mxu0
        %v1224 = vadd.f32 0.0, %v1223
        %v1225 = vpop.f32.mrb[0].mxu0
        %v1226 = vpop.f32.mrb[0].mxu0
        %v1227 = vadd.f32 0.0, %v1226
        %v1228 = vpop.f32.mrb[0].mxu0
        %1229 = vmatprep.mubr.bf16.mxu0 0
        %1230 = vmatmul.mubr.bf16.gmra.mrb[0].mxu0 %v1115
        %v1231 = vpop.f32.mrb[0].mxu0
        %v1232 = vadd.f32 0.0, %v1231
        %v1233 = vpop.f32.mrb[0].mxu0
        %v1234 = vpop.f32.mrb[0].mxu0
        %v1235 = vadd.f32 0.0, %v1234
        %v1236 = vpop.f32.mrb[0].mxu0
        %1237 = vmatprep.mubr.bf16.mxu0 0
        %1238 = vmatmul.mubr.bf16.gmra.mrb[0].mxu0 %v1116
        %v1239 = vpop.f32.mrb[0].mxu0
        %v1240 = vadd.f32 0.0, %v1239
        %v1241 = vpop.f32.mrb[0].mxu0
        %v1242 = vpop.f32.mrb[0].mxu0
        %v1243 = vadd.f32 0.0, %v1242
        %v1244 = vpop.f32.mrb[0].mxu0
        %1245 = vmatprep.mubr.bf16.mxu0 0
        %1246 = vmatmul.mubr.bf16.gmra.mrb[0].mxu0 %v1117
        %v1247 = vpop.f32.mrb[0].mxu0
        %v1248 = vadd.f32 0.0, %v1247
        %v1249 = vpop.f32.mrb[0].mxu0
        %v1250 = vpop.f32.mrb[0].mxu0
        %v1251 = vadd.f32 0.0, %v1250
        %v1252 = vpop.f32.mrb[0].mxu0
        %1253 = vmatprep.mubr.bf16.mxu0 0
        %1254 = vmatmul.mubr.bf16.gmra.mrb[0].mxu0 %v1118
        %v1255 = vpop.f32.mrb[0].mxu0
        %v1256 = vadd.f32 0.0, %v1255
        %v1257 = vpop.f32.mrb[0].mxu0
        %v1258 = vpop.f32.mrb[0].mxu0
        %v1259 = vadd.f32 0.0, %v1258
        %v1260 = vpop.f32.mrb[0].mxu0
        %1261 = vmatprep.mubr.bf16.mxu0 0
        %1262 = vmatmul.mubr.bf16.gmra.mrb[0].mxu0 %v1119
        %v1263 = vpop.f32.mrb[0].mxu0
        %v1264 = vadd.f32 0.0, %v1263
        %v1265 = vpop.f32.mrb[0].mxu0
        %v1266 = vpop.f32.mrb[0].mxu0
        %v1267 = vadd.f32 0.0, %v1266
        %v1268 = vpop.f32.mrb[0].mxu0
        %1269 = vmatprep.mubr.bf16.mxu0 0
        %1270 = vmatmul.mubr.bf16.gmra.mrb[0].mxu0 %v1120
        %v1271 = vpop.f32.mrb[0].mxu0
        %v1272 = vadd.f32 0.0, %v1271
        %v1273 = vpop.f32.mrb[0].mxu0
        %v1274 = vpop.f32.mrb[0].mxu0
        %v1275 = vadd.f32 0.0, %v1274
        %v1276 = vpop.f32.mrb[0].mxu0
        %1277 = vmatprep.mubr.bf16.mxu0 0
        %1278 = vmatmul.mubr.bf16.gmra.mrb[0].mxu0 %v1121
        %v1279 = vpop.f32.mrb[0].mxu0
        %v1280 = vadd.f32 0.0, %v1279
        %v1281 = vpop.f32.mrb[0].mxu0
        %v1282 = vpop.f32.mrb[0].mxu0
        %v1283 = vadd.f32 0.0, %v1282
        %v1284 = vpop.f32.mrb[0].mxu0
        %1285 = vmatprep.mubr.bf16.mxu0 0
        %1286 = vmatmul.mubr.bf16.gmra.mrb[0].mxu0 %v1122
        %v1287 = vpop.f32.mrb[0].mxu0
        %v1288 = vadd.f32 0.0, %v1287
        %v1289 = vpop.f32.mrb[0].mxu0
        %v1290 = vpop.f32.mrb[0].mxu0
        %v1291 = vadd.f32 0.0, %v1290
        %v1292 = vpop.f32.mrb[0].mxu0
        %1293 = vdwg.mxu0
        %v1294 = vadd.f32 %v895, %v1216
        %v1295 = vadd.f32 %v898, %v1219
        %v1296 = vadd.f32 %v903, %v1224
        %v1297 = vadd.f32 %v906, %v1227
        %v1298 = vadd.f32 %v911, %v1232
        %v1299 = vadd.f32 %v914, %v1235
        %v1300 = vadd.f32 %v919, %v1240
        %v1301 = vadd.f32 %v922, %v1243
        %v1302 = vadd.f32 %v927, %v1248
        %v1303 = vadd.f32 %v930, %v1251
        %v1304 = vadd.f32 %v935, %v1256
        %v1305 = vadd.f32 %v938, %v1259
        %v1306 = vadd.f32 %v943, %v1264
        %v1307 = vadd.f32 %v946, %v1267
        %v1308 = vadd.f32 %v951, %v1272
        %v1309 = vadd.f32 %v954, %v1275
        %v1310 = vadd.f32 %v959, %v1280
        %v1311 = vadd.f32 %v962, %v1283
        %v1312 = vadd.f32 %v967, %v1288
        %v1313 = vadd.f32 %v970, %v1291
        %s1314 = scalar_lea.vmem [#allocation2], 12
        %v1315 = vld [vmem:[%s1314] sm:$0xf]
        %v1316 = vld [vmem:[%s1314 + $0x4] sm:$0xf]
        %v1317 = vld [vmem:[%s1314 + $0xc] sm:$0xf]
        %v1318 = vld [vmem:[%s1314 + $0x10] sm:$0xf]
        %v1319 = vld [vmem:[%s1314 + $0x18] sm:$0xf]
        %v1320 = vld [vmem:[%s1314 + $0x1c] sm:$0xf]
        %v1321 = vld [vmem:[%s1314 + $0x24] sm:$0xf]
        %v1322 = vld [vmem:[%s1314 + $0x28] sm:$0xf]
        %v1323 = vld [vmem:[%s1314 + $0x30] sm:$0xf]
        %v1324 = vld [vmem:[%s1314 + $0x34] sm:$0xf]
        %v1325 = vld [vmem:[%s1314 + $0x3c] sm:$0xf]
        %v1326 = vld [vmem:[%s1314 + $0x40] sm:$0xf]
        %v1327 = vld [vmem:[%s1314 + $0x48] sm:$0xf]
        %v1328 = vld [vmem:[%s1314 + $0x4c] sm:$0xf]
        %v1329 = vld [vmem:[%s1314 + $0x54] sm:$0xf]
        %v1330 = vld [vmem:[%s1314 + $0x58] sm:$0xf]
        %v1331 = vld [vmem:[%s1314 + $0x60] sm:$0xf]
        %v1332 = vld [vmem:[%s1314 + $0x64] sm:$0xf]
        %v1333 = vld [vmem:[%s1314 + $0x6c] sm:$0xf]
        %v1334 = vld [vmem:[%s1314 + $0x70] sm:$0xf]
        %s1335 = scalar_lea.vmem [#allocation4], 192
        %v1336 = vld [vmem:[%s1335] sm:$0xf]
        %v1337 = vld [vmem:[%s1335 + $0x4] sm:$0xf]
        %v1338 = vld [vmem:[%s1335 + $0x8] sm:$0xf]
        %v1339 = vld [vmem:[%s1335 + $0xc] sm:$0xf]
        %v1340 = vld [vmem:[%s1335 + $0x10] sm:$0xf]
        %v1341 = vld [vmem:[%s1335 + $0x14] sm:$0xf]
        %v1342 = vld [vmem:[%s1335 + $0x18] sm:$0xf]
        %v1343 = vld [vmem:[%s1335 + $0x1c] sm:$0xf]
        %v1344 = vld [vmem:[%s1335 + $0x20] sm:$0xf]
        %v1345 = vld [vmem:[%s1335 + $0x24] sm:$0xf]
        %v1346 = vld [vmem:[%s1335 + $0x28] sm:$0xf]
        %v1347 = vld [vmem:[%s1335 + $0x2c] sm:$0xf]
        %v1348 = vld [vmem:[%s1335 + $0x30] sm:$0xf]
        %v1349 = vld [vmem:[%s1335 + $0x34] sm:$0xf]
        %v1350 = vld [vmem:[%s1335 + $0x38] sm:$0xf]
        %v1351 = vld [vmem:[%s1335 + $0x3c] sm:$0xf]
        %v1372 = vunpack.c.l.b16 %v1315
        %v1373 = vunpack.c.l.b16 %v1316
        %v1374 = vunpack.c.l.b16 %v1317
        %v1375 = vunpack.c.l.b16 %v1318
        %v1376 = vunpack.c.l.b16 %v1319
        %v1377 = vunpack.c.l.b16 %v1320
        %v1378 = vunpack.c.l.b16 %v1321
        %v1379 = vunpack.c.l.b16 %v1322
        %v1380 = vunpack.c.l.b16 %v1323
        %v1381 = vunpack.c.l.b16 %v1324
        %v1382 = vunpack.c.l.b16 %v1325
        %v1383 = vunpack.c.l.b16 %v1326
        %v1384 = vunpack.c.l.b16 %v1327
        %v1385 = vunpack.c.l.b16 %v1328
        %v1386 = vunpack.c.l.b16 %v1329
        %v1387 = vunpack.c.l.b16 %v1330
        %v1388 = vunpack.c.l.b16 %v1331
        %v1389 = vunpack.c.l.b16 %v1332
        %v1390 = vunpack.c.l.b16 %v1333
        %v1391 = vunpack.c.l.b16 %v1334
        %v1392 = vpack.c.b16 %v1373, %v1372
        %v1393 = vpack.c.b16 %v1375, %v1374
        %v1394 = vpack.c.b16 %v1377, %v1376
        %v1395 = vpack.c.b16 %v1379, %v1378
        %v1396 = vpack.c.b16 %v1381, %v1380
        %v1397 = vpack.c.b16 %v1383, %v1382
        %v1398 = vpack.c.b16 %v1385, %v1384
        %v1399 = vpack.c.b16 %v1387, %v1386
        %v1400 = vpack.c.b16 %v1389, %v1388
        %v1401 = vpack.c.b16 %v1391, %v1390
        %v1428 = vunpack.c.l.b16 %v1336
        %v1429 = vunpack.c.l.b16 %v1337
        %v1430 = vunpack.c.l.b16 %v1338
        %v1431 = vunpack.c.l.b16 %v1339
        %v1432 = vunpack.c.l.b16 %v1340
        %v1433 = vunpack.c.l.b16 %v1341
        %v1434 = vunpack.c.l.b16 %v1342
        %v1435 = vunpack.c.l.b16 %v1343
        %v1436 = vunpack.c.l.b16 %v1344
        %v1437 = vunpack.c.l.b16 %v1345
        %v1438 = vunpack.c.l.b16 %v1346
        %v1439 = vunpack.c.l.b16 %v1347
        %v1440 = vunpack.c.l.b16 %v1348
        %v1441 = vunpack.c.l.b16 %v1349
        %v1442 = vunpack.c.l.b16 %v1350
        %v1443 = vunpack.c.l.b16 %v1351
        %v1444 = vpack.c.b16 %v1429, %v1428
        %v1445 = vpack.c.b16 %v1431, %v1430
        %v1446 = vpack.c.b16 %v1433, %v1432
        %v1447 = vpack.c.b16 %v1435, %v1434
        %v1448 = vpack.c.b16 %v1437, %v1436
        %v1449 = vpack.c.b16 %v1439, %v1438
        %v1450 = vpack.c.b16 %v1441, %v1440
        %v1451 = vpack.c.b16 %v1443, %v1442
        %1460 = vmatprep.subr.bf16.mxu0 0
        %1461 = vmatpush1.bf16.msra.mxu0 %v1444
        %1462 = vmatprep.subr.bf16.mxu0 0
        %1463 = vmatpush1.bf16.msra.mxu0 %v1445
        %1464 = vmatprep.subr.bf16.mxu0 0
        %1465 = vmatpush1.bf16.msra.mxu0 %v1446
        %1466 = vmatprep.subr.bf16.mxu0 0
        %1467 = vmatpush1.bf16.msra.mxu0 %v1447
        %1468 = vmatprep.subr.bf16.mxu0 0
        %1469 = vmatpush1.bf16.msra.mxu0 %v1448
        %1470 = vmatprep.subr.bf16.mxu0 0
        %1471 = vmatpush1.bf16.msra.mxu0 %v1449
        %1472 = vmatprep.subr.bf16.mxu0 0
        %1473 = vmatpush1.bf16.msra.mxu0 %v1450
        %1474 = vmatprep.subr.bf16.mxu0 0
        %1475 = vmatpush1.bf16.msra.mxu0 %v1451
        %1476 = vmatprep.subr.bf16.mxu0 0
        %1477 = vmatpush1.bf16.msra.mxu0 0
        %1478 = vmatprep.subr.bf16.mxu0 0
        %1479 = vmatpush1.bf16.msra.mxu0 0
        %1480 = vmatprep.subr.bf16.mxu0 0
        %1481 = vmatpush1.bf16.msra.mxu0 0
        %1482 = vmatprep.subr.bf16.mxu0 0
        %1483 = vmatpush1.bf16.msra.mxu0 0
        %1484 = vmatprep.subr.bf16.mxu0 0
        %1485 = vmatpush1.bf16.msra.mxu0 0
        %1486 = vmatprep.subr.bf16.mxu0 0
        %1487 = vmatpush1.bf16.msra.mxu0 0
        %1488 = vmatprep.subr.bf16.mxu0 0
        %1489 = vmatpush1.bf16.msra.mxu0 0
        %1490 = vmatprep.subr.bf16.mxu0 0
        %1491 = vmatpush1.bf16.msra.mxu0 0
        %1492 = vmatprep.mubr.bf16.mxu0 0
        %1493 = vmatmul.mubr.bf16.gmra.mrb[0].mxu0 %v1392
        %v1494 = vpop.f32.mrb[0].mxu0
        %v1495 = vadd.f32 0.0, %v1494
        %v1496 = vpop.f32.mrb[0].mxu0
        %v1497 = vpop.f32.mrb[0].mxu0
        %v1498 = vadd.f32 0.0, %v1497
        %v1499 = vpop.f32.mrb[0].mxu0
        %1500 = vmatprep.mubr.bf16.mxu0 0
        %1501 = vmatmul.mubr.bf16.gmra.mrb[0].mxu0 %v1393
        %v1502 = vpop.f32.mrb[0].mxu0
        %v1503 = vadd.f32 0.0, %v1502
        %v1504 = vpop.f32.mrb[0].mxu0
        %v1505 = vpop.f32.mrb[0].mxu0
        %v1506 = vadd.f32 0.0, %v1505
        %v1507 = vpop.f32.mrb[0].mxu0
        %1508 = vmatprep.mubr.bf16.mxu0 0
        %1509 = vmatmul.mubr.bf16.gmra.mrb[0].mxu0 %v1394
        %v1510 = vpop.f32.mrb[0].mxu0
        %v1511 = vadd.f32 0.0, %v1510
        %v1512 = vpop.f32.mrb[0].mxu0
        %v1513 = vpop.f32.mrb[0].mxu0
        %v1514 = vadd.f32 0.0, %v1513
        %v1515 = vpop.f32.mrb[0].mxu0
        %1516 = vmatprep.mubr.bf16.mxu0 0
        %1517 = vmatmul.mubr.bf16.gmra.mrb[0].mxu0 %v1395
        %v1518 = vpop.f32.mrb[0].mxu0
        %v1519 = vadd.f32 0.0, %v1518
        %v1520 = vpop.f32.mrb[0].mxu0
        %v1521 = vpop.f32.mrb[0].mxu0
        %v1522 = vadd.f32 0.0, %v1521
        %v1523 = vpop.f32.mrb[0].mxu0
        %1524 = vmatprep.mubr.bf16.mxu0 0
        %1525 = vmatmul.mubr.bf16.gmra.mrb[0].mxu0 %v1396
        %v1526 = vpop.f32.mrb[0].mxu0
        %v1527 = vadd.f32 0.0, %v1526
        %v1528 = vpop.f32.mrb[0].mxu0
        %v1529 = vpop.f32.mrb[0].mxu0
        %v1530 = vadd.f32 0.0, %v1529
        %v1531 = vpop.f32.mrb[0].mxu0
        %1532 = vmatprep.mubr.bf16.mxu0 0
        %1533 = vmatmul.mubr.bf16.gmra.mrb[0].mxu0 %v1397
        %v1534 = vpop.f32.mrb[0].mxu0
        %v1535 = vadd.f32 0.0, %v1534
        %v1536 = vpop.f32.mrb[0].mxu0
        %v1537 = vpop.f32.mrb[0].mxu0
        %v1538 = vadd.f32 0.0, %v1537
        %v1539 = vpop.f32.mrb[0].mxu0
        %1540 = vmatprep.mubr.bf16.mxu0 0
        %1541 = vmatmul.mubr.bf16.gmra.mrb[0].mxu0 %v1398
        %v1542 = vpop.f32.mrb[0].mxu0
        %v1543 = vadd.f32 0.0, %v1542
        %v1544 = vpop.f32.mrb[0].mxu0
        %v1545 = vpop.f32.mrb[0].mxu0
        %v1546 = vadd.f32 0.0, %v1545
        %v1547 = vpop.f32.mrb[0].mxu0
        %1548 = vmatprep.mubr.bf16.mxu0 0
        %1549 = vmatmul.mubr.bf16.gmra.mrb[0].mxu0 %v1399
        %v1550 = vpop.f32.mrb[0].mxu0
        %v1551 = vadd.f32 0.0, %v1550
        %v1552 = vpop.f32.mrb[0].mxu0
        %v1553 = vpop.f32.mrb[0].mxu0
        %v1554 = vadd.f32 0.0, %v1553
        %v1555 = vpop.f32.mrb[0].mxu0
        %1556 = vmatprep.mubr.bf16.mxu0 0
        %1557 = vmatmul.mubr.bf16.gmra.mrb[0].mxu0 %v1400
        %v1558 = vpop.f32.mrb[0].mxu0
        %v1559 = vadd.f32 0.0, %v1558
        %v1560 = vpop.f32.mrb[0].mxu0
        %v1561 = vpop.f32.mrb[0].mxu0
        %v1562 = vadd.f32 0.0, %v1561
        %v1563 = vpop.f32.mrb[0].mxu0
        %1564 = vmatprep.mubr.bf16.mxu0 0
        %1565 = vmatmul.mubr.bf16.gmra.mrb[0].mxu0 %v1401
        %v1566 = vpop.f32.mrb[0].mxu0
        %v1567 = vadd.f32 0.0, %v1566
        %v1568 = vpop.f32.mrb[0].mxu0
        %v1569 = vpop.f32.mrb[0].mxu0
        %v1570 = vadd.f32 0.0, %v1569
        %v1571 = vpop.f32.mrb[0].mxu0
        %1572 = vdwg.mxu0
        %v1573 = vadd.f32 %v1294, %v1495
        %v1574 = vadd.f32 %v1295, %v1498
        %v1575 = vadd.f32 %v1296, %v1503
        %v1576 = vadd.f32 %v1297, %v1506
        %v1577 = vadd.f32 %v1298, %v1511
        %v1578 = vadd.f32 %v1299, %v1514
        %v1579 = vadd.f32 %v1300, %v1519
        %v1580 = vadd.f32 %v1301, %v1522
        %v1581 = vadd.f32 %v1302, %v1527
        %v1582 = vadd.f32 %v1303, %v1530
        %v1583 = vadd.f32 %v1304, %v1535
        %v1584 = vadd.f32 %v1305, %v1538
        %v1585 = vadd.f32 %v1306, %v1543
        %v1586 = vadd.f32 %v1307, %v1546
        %v1587 = vadd.f32 %v1308, %v1551
        %v1588 = vadd.f32 %v1309, %v1554
        %v1589 = vadd.f32 %v1310, %v1559
        %v1590 = vadd.f32 %v1311, %v1562
        %v1591 = vadd.f32 %v1312, %v1567
        %v1592 = vadd.f32 %v1313, %v1570
        %v1593 = vld [vmem:[%s1314] sm:$0xf]
        %v1594 = vld [vmem:[%s1314 + $0x4] sm:$0xf]
        %v1595 = vld [vmem:[%s1314 + $0x8] sm:$0x1]
        %v1596 = vld [vmem:[%s1314 + $0xc] sm:$0xf]
        %v1597 = vld [vmem:[%s1314 + $0x10] sm:$0xf]
        %v1598 = vld [vmem:[%s1314 + $0x14] sm:$0x1]
        %v1599 = vld [vmem:[%s1314 + $0x18] sm:$0xf]
        %v1600 = vld [vmem:[%s1314 + $0x1c] sm:$0xf]
        %v1601 = vld [vmem:[%s1314 + $0x20] sm:$0x1]
        %v1602 = vld [vmem:[%s1314 + $0x24] sm:$0xf]
        %v1603 = vld [vmem:[%s1314 + $0x28] sm:$0xf]
        %v1604 = vld [vmem:[%s1314 + $0x2c] sm:$0x1]
        %v1605 = vld [vmem:[%s1314 + $0x30] sm:$0xf]
        %v1606 = vld [vmem:[%s1314 + $0x34] sm:$0xf]
        %v1607 = vld [vmem:[%s1314 + $0x38] sm:$0x1]
        %v1608 = vld [vmem:[%s1314 + $0x3c] sm:$0xf]
        %v1609 = vld [vmem:[%s1314 + $0x40] sm:$0xf]
        %v1610 = vld [vmem:[%s1314 + $0x44] sm:$0x1]
        %v1611 = vld [vmem:[%s1314 + $0x48] sm:$0xf]
        %v1612 = vld [vmem:[%s1314 + $0x4c] sm:$0xf]
        %v1613 = vld [vmem:[%s1314 + $0x50] sm:$0x1]
        %v1614 = vld [vmem:[%s1314 + $0x54] sm:$0xf]
        %v1615 = vld [vmem:[%s1314 + $0x58] sm:$0xf]
        %v1616 = vld [vmem:[%s1314 + $0x5c] sm:$0x1]
        %v1617 = vld [vmem:[%s1314 + $0x60] sm:$0xf]
        %v1618 = vld [vmem:[%s1314 + $0x64] sm:$0xf]
        %v1619 = vld [vmem:[%s1314 + $0x68] sm:$0x1]
        %v1620 = vld [vmem:[%s1314 + $0x6c] sm:$0xf]
        %v1621 = vld [vmem:[%s1314 + $0x70] sm:$0xf]
        %v1622 = vld [vmem:[%s1314 + $0x74] sm:$0x1]
        %v1624 = vshrl.u32 %v1593, 16
        %v1626 = vrot.slane %v1624, 4
        %v1627 = vshll.u32 %v1593, 16
        %v1629 = vrot.slane %v1627, 5
        %v1630 = vor.u32 %v1626, %v1629
        %v1631 = vrot.slane %v1630, 4
        %v1633 = vshll.u32 %v1594, 16
        %v1635 = vrot.slane %v1633, 5
        %v1636 = vsel %vm293, %v1631, %v1635
        %v1637 = vshrl.u32 %v1594, 16
        %v1639 = vrot.slane %v1637, 4
        %v1640 = vor.u32 %v1639, %v1635
        %v1641 = vrot.slane %v1640, 4
        %v1643 = vshll.u32 %v1595, 16
        %v1645 = vrot.slane %v1643, 5
        %v1646 = vsel %vm293, %v1641, %v1645
        %v1648 = vshrl.u32 %v1596, 16
        %v1650 = vrot.slane %v1648, 4
        %v1651 = vshll.u32 %v1596, 16
        %v1653 = vrot.slane %v1651, 5
        %v1654 = vor.u32 %v1650, %v1653
        %v1655 = vrot.slane %v1654, 4
        %v1657 = vshll.u32 %v1597, 16
        %v1659 = vrot.slane %v1657, 5
        %v1660 = vsel %vm293, %v1655, %v1659
        %v1661 = vshrl.u32 %v1597, 16
        %v1663 = vrot.slane %v1661, 4
        %v1664 = vor.u32 %v1663, %v1659
        %v1665 = vrot.slane %v1664, 4
        %v1667 = vshll.u32 %v1598, 16
        %v1669 = vrot.slane %v1667, 5
        %v1670 = vsel %vm293, %v1665, %v1669
        %v1672 = vshrl.u32 %v1599, 16
        %v1674 = vrot.slane %v1672, 4
        %v1675 = vshll.u32 %v1599, 16
        %v1677 = vrot.slane %v1675, 5
        %v1678 = vor.u32 %v1674, %v1677
        %v1679 = vrot.slane %v1678, 4
        %v1681 = vshll.u32 %v1600, 16
        %v1683 = vrot.slane %v1681, 5
        %v1684 = vsel %vm293, %v1679, %v1683
        %v1685 = vshrl.u32 %v1600, 16
        %v1687 = vrot.slane %v1685, 4
        %v1688 = vor.u32 %v1687, %v1683
        %v1689 = vrot.slane %v1688, 4
        %v1691 = vshll.u32 %v1601, 16
        %v1693 = vrot.slane %v1691, 5
        %v1694 = vsel %vm293, %v1689, %v1693
        %v1696 = vshrl.u32 %v1602, 16
        %v1698 = vrot.slane %v1696, 4
        %v1699 = vshll.u32 %v1602, 16
        %v1701 = vrot.slane %v1699, 5
        %v1702 = vor.u32 %v1698, %v1701
        %v1703 = vrot.slane %v1702, 4
        %v1705 = vshll.u32 %v1603, 16
        %v1707 = vrot.slane %v1705, 5
        %v1708 = vsel %vm293, %v1703, %v1707
        %v1709 = vshrl.u32 %v1603, 16
        %v1711 = vrot.slane %v1709, 4
        %v1712 = vor.u32 %v1711, %v1707
        %v1713 = vrot.slane %v1712, 4
        %v1715 = vshll.u32 %v1604, 16
        %v1717 = vrot.slane %v1715, 5
        %v1718 = vsel %vm293, %v1713, %v1717
        %v1720 = vshrl.u32 %v1605, 16
        %v1722 = vrot.slane %v1720, 4
        %v1723 = vshll.u32 %v1605, 16
        %v1725 = vrot.slane %v1723, 5
        %v1726 = vor.u32 %v1722, %v1725
        %v1727 = vrot.slane %v1726, 4
        %v1729 = vshll.u32 %v1606, 16
        %v1731 = vrot.slane %v1729, 5
        %v1732 = vsel %vm293, %v1727, %v1731
        %v1733 = vshrl.u32 %v1606, 16
        %v1735 = vrot.slane %v1733, 4
        %v1736 = vor.u32 %v1735, %v1731
        %v1737 = vrot.slane %v1736, 4
        %v1739 = vshll.u32 %v1607, 16
        %v1741 = vrot.slane %v1739, 5
        %v1742 = vsel %vm293, %v1737, %v1741
        %v1744 = vshrl.u32 %v1608, 16
        %v1746 = vrot.slane %v1744, 4
        %v1747 = vshll.u32 %v1608, 16
        %v1749 = vrot.slane %v1747, 5
        %v1750 = vor.u32 %v1746, %v1749
        %v1751 = vrot.slane %v1750, 4
        %v1753 = vshll.u32 %v1609, 16
        %v1755 = vrot.slane %v1753, 5
        %v1756 = vsel %vm293, %v1751, %v1755
        %v1757 = vshrl.u32 %v1609, 16
        %v1759 = vrot.slane %v1757, 4
        %v1760 = vor.u32 %v1759, %v1755
        %v1761 = vrot.slane %v1760, 4
        %v1763 = vshll.u32 %v1610, 16
        %v1765 = vrot.slane %v1763, 5
        %v1766 = vsel %vm293, %v1761, %v1765
        %v1768 = vshrl.u32 %v1611, 16
        %v1770 = vrot.slane %v1768, 4
        %v1771 = vshll.u32 %v1611, 16
        %v1773 = vrot.slane %v1771, 5
        %v1774 = vor.u32 %v1770, %v1773
        %v1775 = vrot.slane %v1774, 4
        %v1777 = vshll.u32 %v1612, 16
        %v1779 = vrot.slane %v1777, 5
        %v1780 = vsel %vm293, %v1775, %v1779
        %v1781 = vshrl.u32 %v1612, 16
        %v1783 = vrot.slane %v1781, 4
        %v1784 = vor.u32 %v1783, %v1779
        %v1785 = vrot.slane %v1784, 4
        %v1787 = vshll.u32 %v1613, 16
        %v1789 = vrot.slane %v1787, 5
        %v1790 = vsel %vm293, %v1785, %v1789
        %v1792 = vshrl.u32 %v1614, 16
        %v1794 = vrot.slane %v1792, 4
        %v1795 = vshll.u32 %v1614, 16
        %v1797 = vrot.slane %v1795, 5
        %v1798 = vor.u32 %v1794, %v1797
        %v1799 = vrot.slane %v1798, 4
        %v1801 = vshll.u32 %v1615, 16
        %v1803 = vrot.slane %v1801, 5
        %v1804 = vsel %vm293, %v1799, %v1803
        %v1805 = vshrl.u32 %v1615, 16
        %v1807 = vrot.slane %v1805, 4
        %v1808 = vor.u32 %v1807, %v1803
        %v1809 = vrot.slane %v1808, 4
        %v1811 = vshll.u32 %v1616, 16
        %v1813 = vrot.slane %v1811, 5
        %v1814 = vsel %vm293, %v1809, %v1813
        %v1816 = vshrl.u32 %v1617, 16
        %v1818 = vrot.slane %v1816, 4
        %v1819 = vshll.u32 %v1617, 16
        %v1821 = vrot.slane %v1819, 5
        %v1822 = vor.u32 %v1818, %v1821
        %v1823 = vrot.slane %v1822, 4
        %v1825 = vshll.u32 %v1618, 16
        %v1827 = vrot.slane %v1825, 5
        %v1828 = vsel %vm293, %v1823, %v1827
        %v1829 = vshrl.u32 %v1618, 16
        %v1831 = vrot.slane %v1829, 4
        %v1832 = vor.u32 %v1831, %v1827
        %v1833 = vrot.slane %v1832, 4
        %v1835 = vshll.u32 %v1619, 16
        %v1837 = vrot.slane %v1835, 5
        %v1838 = vsel %vm293, %v1833, %v1837
        %v1840 = vshrl.u32 %v1620, 16
        %v1842 = vrot.slane %v1840, 4
        %v1843 = vshll.u32 %v1620, 16
        %v1845 = vrot.slane %v1843, 5
        %v1846 = vor.u32 %v1842, %v1845
        %v1847 = vrot.slane %v1846, 4
        %v1849 = vshll.u32 %v1621, 16
        %v1851 = vrot.slane %v1849, 5
        %v1852 = vsel %vm293, %v1847, %v1851
        %v1853 = vshrl.u32 %v1621, 16
        %v1855 = vrot.slane %v1853, 4
        %v1856 = vor.u32 %v1855, %v1851
        %v1857 = vrot.slane %v1856, 4
        %v1859 = vshll.u32 %v1622, 16
        %v1861 = vrot.slane %v1859, 5
        %v1862 = vsel %vm293, %v1857, %v1861
        %s1863 = scalar_lea.vmem [#allocation4], 256
        %v1864 = vld [vmem:[%s1863] sm:$0xf]
        %v1865 = vld [vmem:[%s1863 + $0x4] sm:$0xf]
        %v1866 = vld [vmem:[%s1863 + $0x8] sm:$0xf]
        %v1867 = vld [vmem:[%s1863 + $0xc] sm:$0xf]
        %v1868 = vld [vmem:[%s1863 + $0x10] sm:$0xf]
        %v1869 = vld [vmem:[%s1863 + $0x14] sm:$0xf]
        %v1870 = vld [vmem:[%s1863 + $0x18] sm:$0xf]
        %v1871 = vld [vmem:[%s1863 + $0x1c] sm:$0xf]
        %v1872 = vld [vmem:[%s1863 + $0x20] sm:$0xf]
        %v1873 = vld [vmem:[%s1863 + $0x24] sm:$0xf]
        %v1874 = vld [vmem:[%s1863 + $0x28] sm:$0xf]
        %v1875 = vld [vmem:[%s1863 + $0x2c] sm:$0xf]
        %v1876 = vld [vmem:[%s1863 + $0x30] sm:$0xf]
        %v1877 = vld [vmem:[%s1863 + $0x34] sm:$0xf]
        %v1878 = vld [vmem:[%s1863 + $0x38] sm:$0xf]
        %v1879 = vld [vmem:[%s1863 + $0x3c] sm:$0xf]
        %v1880 = vunpack.c.l.b16 %v1636
        %v1881 = vunpack.c.l.b16 %v1646
        %v1882 = vunpack.c.l.b16 %v1660
        %v1883 = vunpack.c.l.b16 %v1670
        %v1884 = vunpack.c.l.b16 %v1684
        %v1885 = vunpack.c.l.b16 %v1694
        %v1886 = vunpack.c.l.b16 %v1708
        %v1887 = vunpack.c.l.b16 %v1718
        %v1888 = vunpack.c.l.b16 %v1732
        %v1889 = vunpack.c.l.b16 %v1742
        %v1890 = vunpack.c.l.b16 %v1756
        %v1891 = vunpack.c.l.b16 %v1766
        %v1892 = vunpack.c.l.b16 %v1780
        %v1893 = vunpack.c.l.b16 %v1790
        %v1894 = vunpack.c.l.b16 %v1804
        %v1895 = vunpack.c.l.b16 %v1814
        %v1896 = vunpack.c.l.b16 %v1828
        %v1897 = vunpack.c.l.b16 %v1838
        %v1898 = vunpack.c.l.b16 %v1852
        %v1899 = vunpack.c.l.b16 %v1862
        %v1900 = vpack.c.b16 %v1881, %v1880
        %v1901 = vpack.c.b16 %v1883, %v1882
        %v1902 = vpack.c.b16 %v1885, %v1884
        %v1903 = vpack.c.b16 %v1887, %v1886
        %v1904 = vpack.c.b16 %v1889, %v1888
        %v1905 = vpack.c.b16 %v1891, %v1890
        %v1906 = vpack.c.b16 %v1893, %v1892
        %v1907 = vpack.c.b16 %v1895, %v1894
        %v1908 = vpack.c.b16 %v1897, %v1896
        %v1909 = vpack.c.b16 %v1899, %v1898
        %v1936 = vunpack.c.l.b16 %v1864
        %v1937 = vunpack.c.l.b16 %v1865
        %v1938 = vunpack.c.l.b16 %v1866
        %v1939 = vunpack.c.l.b16 %v1867
        %v1940 = vunpack.c.l.b16 %v1868
        %v1941 = vunpack.c.l.b16 %v1869
        %v1942 = vunpack.c.l.b16 %v1870
        %v1943 = vunpack.c.l.b16 %v1871
        %v1944 = vunpack.c.l.b16 %v1872
        %v1945 = vunpack.c.l.b16 %v1873
        %v1946 = vunpack.c.l.b16 %v1874
        %v1947 = vunpack.c.l.b16 %v1875
        %v1948 = vunpack.c.l.b16 %v1876
        %v1949 = vunpack.c.l.b16 %v1877
        %v1950 = vunpack.c.l.b16 %v1878
        %v1951 = vunpack.c.l.b16 %v1879
        %v1952 = vpack.c.b16 %v1937, %v1936
        %v1953 = vpack.c.b16 %v1939, %v1938
        %v1954 = vpack.c.b16 %v1941, %v1940
        %v1955 = vpack.c.b16 %v1943, %v1942
        %v1956 = vpack.c.b16 %v1945, %v1944
        %v1957 = vpack.c.b16 %v1947, %v1946
        %v1958 = vpack.c.b16 %v1949, %v1948
        %v1959 = vpack.c.b16 %v1951, %v1950
        %1968 = vmatprep.subr.bf16.mxu0 0
        %1969 = vmatpush1.bf16.msra.mxu0 %v1952
        %1970 = vmatprep.subr.bf16.mxu0 0
        %1971 = vmatpush1.bf16.msra.mxu0 %v1953
        %1972 = vmatprep.subr.bf16.mxu0 0
        %1973 = vmatpush1.bf16.msra.mxu0 %v1954
        %1974 = vmatprep.subr.bf16.mxu0 0
        %1975 = vmatpush1.bf16.msra.mxu0 %v1955
        %1976 = vmatprep.subr.bf16.mxu0 0
        %1977 = vmatpush1.bf16.msra.mxu0 %v1956
        %1978 = vmatprep.subr.bf16.mxu0 0
        %1979 = vmatpush1.bf16.msra.mxu0 %v1957
        %1980 = vmatprep.subr.bf16.mxu0 0
        %1981 = vmatpush1.bf16.msra.mxu0 %v1958
        %1982 = vmatprep.subr.bf16.mxu0 0
        %1983 = vmatpush1.bf16.msra.mxu0 %v1959
        %1984 = vmatprep.subr.bf16.mxu0 0
        %1985 = vmatpush1.bf16.msra.mxu0 0
        %1986 = vmatprep.subr.bf16.mxu0 0
        %1987 = vmatpush1.bf16.msra.mxu0 0
        %1988 = vmatprep.subr.bf16.mxu0 0
        %1989 = vmatpush1.bf16.msra.mxu0 0
        %1990 = vmatprep.subr.bf16.mxu0 0
        %1991 = vmatpush1.bf16.msra.mxu0 0
        %1992 = vmatprep.subr.bf16.mxu0 0
        %1993 = vmatpush1.bf16.msra.mxu0 0
        %1994 = vmatprep.subr.bf16.mxu0 0
        %1995 = vmatpush1.bf16.msra.mxu0 0
        %1996 = vmatprep.subr.bf16.mxu0 0
        %1997 = vmatpush1.bf16.msra.mxu0 0
        %1998 = vmatprep.subr.bf16.mxu0 0
        %1999 = vmatpush1.bf16.msra.mxu0 0
        %2000 = vmatprep.mubr.bf16.mxu0 0
        %2001 = vmatmul.mubr.bf16.gmra.mrb[0].mxu0 %v1900
        %v2002 = vpop.f32.mrb[0].mxu0
        %v2003 = vadd.f32 0.0, %v2002
        %v2004 = vpop.f32.mrb[0].mxu0
        %v2005 = vpop.f32.mrb[0].mxu0
        %v2006 = vadd.f32 0.0, %v2005
        %v2007 = vpop.f32.mrb[0].mxu0
        %2008 = vmatprep.mubr.bf16.mxu0 0
        %2009 = vmatmul.mubr.bf16.gmra.mrb[0].mxu0 %v1901
        %v2010 = vpop.f32.mrb[0].mxu0
        %v2011 = vadd.f32 0.0, %v2010
        %v2012 = vpop.f32.mrb[0].mxu0
        %v2013 = vpop.f32.mrb[0].mxu0
        %v2014 = vadd.f32 0.0, %v2013
        %v2015 = vpop.f32.mrb[0].mxu0
        %2016 = vmatprep.mubr.bf16.mxu0 0
        %2017 = vmatmul.mubr.bf16.gmra.mrb[0].mxu0 %v1902
        %v2018 = vpop.f32.mrb[0].mxu0
        %v2019 = vadd.f32 0.0, %v2018
        %v2020 = vpop.f32.mrb[0].mxu0
        %v2021 = vpop.f32.mrb[0].mxu0
        %v2022 = vadd.f32 0.0, %v2021
        %v2023 = vpop.f32.mrb[0].mxu0
        %2024 = vmatprep.mubr.bf16.mxu0 0
        %2025 = vmatmul.mubr.bf16.gmra.mrb[0].mxu0 %v1903
        %v2026 = vpop.f32.mrb[0].mxu0
        %v2027 = vadd.f32 0.0, %v2026
        %v2028 = vpop.f32.mrb[0].mxu0
        %v2029 = vpop.f32.mrb[0].mxu0
        %v2030 = vadd.f32 0.0, %v2029
        %v2031 = vpop.f32.mrb[0].mxu0
        %2032 = vmatprep.mubr.bf16.mxu0 0
        %2033 = vmatmul.mubr.bf16.gmra.mrb[0].mxu0 %v1904
        %v2034 = vpop.f32.mrb[0].mxu0
        %v2035 = vadd.f32 0.0, %v2034
        %v2036 = vpop.f32.mrb[0].mxu0
        %v2037 = vpop.f32.mrb[0].mxu0
        %v2038 = vadd.f32 0.0, %v2037
        %v2039 = vpop.f32.mrb[0].mxu0
        %2040 = vmatprep.mubr.bf16.mxu0 0
        %2041 = vmatmul.mubr.bf16.gmra.mrb[0].mxu0 %v1905
        %v2042 = vpop.f32.mrb[0].mxu0
        %v2043 = vadd.f32 0.0, %v2042
        %v2044 = vpop.f32.mrb[0].mxu0
        %v2045 = vpop.f32.mrb[0].mxu0
        %v2046 = vadd.f32 0.0, %v2045
        %v2047 = vpop.f32.mrb[0].mxu0
        %2048 = vmatprep.mubr.bf16.mxu0 0
        %2049 = vmatmul.mubr.bf16.gmra.mrb[0].mxu0 %v1906
        %v2050 = vpop.f32.mrb[0].mxu0
        %v2051 = vadd.f32 0.0, %v2050
        %v2052 = vpop.f32.mrb[0].mxu0
        %v2053 = vpop.f32.mrb[0].mxu0
        %v2054 = vadd.f32 0.0, %v2053
        %v2055 = vpop.f32.mrb[0].mxu0
        %2056 = vmatprep.mubr.bf16.mxu0 0
        %2057 = vmatmul.mubr.bf16.gmra.mrb[0].mxu0 %v1907
        %v2058 = vpop.f32.mrb[0].mxu0
        %v2059 = vadd.f32 0.0, %v2058
        %v2060 = vpop.f32.mrb[0].mxu0
        %v2061 = vpop.f32.mrb[0].mxu0
        %v2062 = vadd.f32 0.0, %v2061
        %v2063 = vpop.f32.mrb[0].mxu0
        %2064 = vmatprep.mubr.bf16.mxu0 0
        %2065 = vmatmul.mubr.bf16.gmra.mrb[0].mxu0 %v1908
        %v2066 = vpop.f32.mrb[0].mxu0
        %v2067 = vadd.f32 0.0, %v2066
        %v2068 = vpop.f32.mrb[0].mxu0
        %v2069 = vpop.f32.mrb[0].mxu0
        %v2070 = vadd.f32 0.0, %v2069
        %v2071 = vpop.f32.mrb[0].mxu0
        %2072 = vmatprep.mubr.bf16.mxu0 0
        %2073 = vmatmul.mubr.bf16.gmra.mrb[0].mxu0 %v1909
        %v2074 = vpop.f32.mrb[0].mxu0
        %v2075 = vadd.f32 0.0, %v2074
        %v2076 = vpop.f32.mrb[0].mxu0
        %v2077 = vpop.f32.mrb[0].mxu0
        %v2078 = vadd.f32 0.0, %v2077
        %v2079 = vpop.f32.mrb[0].mxu0
        %2080 = vdwg.mxu0
        %v2081 = vadd.f32 %v1573, %v2003
        %v2082 = vadd.f32 %v1574, %v2006
        %v2083 = vadd.f32 %v1575, %v2011
        %v2084 = vadd.f32 %v1576, %v2014
        %v2085 = vadd.f32 %v1577, %v2019
        %v2086 = vadd.f32 %v1578, %v2022
        %v2087 = vadd.f32 %v1579, %v2027
        %v2088 = vadd.f32 %v1580, %v2030
        %v2089 = vadd.f32 %v1581, %v2035
        %v2090 = vadd.f32 %v1582, %v2038
        %v2091 = vadd.f32 %v1583, %v2043
        %v2092 = vadd.f32 %v1584, %v2046
        %v2093 = vadd.f32 %v1585, %v2051
        %v2094 = vadd.f32 %v1586, %v2054
        %v2095 = vadd.f32 %v1587, %v2059
        %v2096 = vadd.f32 %v1588, %v2062
        %v2097 = vadd.f32 %v1589, %v2067
        %v2098 = vadd.f32 %v1590, %v2070
        %v2099 = vadd.f32 %v1591, %v2075
        %v2100 = vadd.f32 %v1592, %v2078
        %v2101 = vld [vmem:[%s1314] sm:$0xe]
        %v2102 = vld [vmem:[%s1314 + $0xc] sm:$0xe]
        %v2103 = vld [vmem:[%s1314 + $0x18] sm:$0xe]
        %v2104 = vld [vmem:[%s1314 + $0x24] sm:$0xe]
        %v2105 = vld [vmem:[%s1314 + $0x30] sm:$0xe]
        %v2106 = vld [vmem:[%s1314 + $0x3c] sm:$0xe]
        %v2107 = vld [vmem:[%s1314 + $0x48] sm:$0xe]
        %v2108 = vld [vmem:[%s1314 + $0x54] sm:$0xe]
        %v2109 = vld [vmem:[%s1314 + $0x60] sm:$0xe]
        %v2110 = vld [vmem:[%s1314 + $0x6c] sm:$0xe]
        %v2141 = vrot.slane %v2101, 5
        %v2142 = vrot.slane %v2141, 4
        %v2143 = vrot.slane %v1594, 5
        %v2144 = vsel %vm1005, %v2142, %v2143
        %v2145 = vrot.slane %v2143, 4
        %v2146 = vrot.slane %v1595, 5
        %v2147 = vsel %vm1005, %v2145, %v2146
        %v2148 = vrot.slane %v2102, 5
        %v2149 = vrot.slane %v2148, 4
        %v2150 = vrot.slane %v1597, 5
        %v2151 = vsel %vm1005, %v2149, %v2150
        %v2152 = vrot.slane %v2150, 4
        %v2153 = vrot.slane %v1598, 5
        %v2154 = vsel %vm1005, %v2152, %v2153
        %v2155 = vrot.slane %v2103, 5
        %v2156 = vrot.slane %v2155, 4
        %v2157 = vrot.slane %v1600, 5
        %v2158 = vsel %vm1005, %v2156, %v2157
        %v2159 = vrot.slane %v2157, 4
        %v2160 = vrot.slane %v1601, 5
        %v2161 = vsel %vm1005, %v2159, %v2160
        %v2162 = vrot.slane %v2104, 5
        %v2163 = vrot.slane %v2162, 4
        %v2164 = vrot.slane %v1603, 5
        %v2165 = vsel %vm1005, %v2163, %v2164
        %v2166 = vrot.slane %v2164, 4
        %v2167 = vrot.slane %v1604, 5
        %v2168 = vsel %vm1005, %v2166, %v2167
        %v2169 = vrot.slane %v2105, 5
        %v2170 = vrot.slane %v2169, 4
        %v2171 = vrot.slane %v1606, 5
        %v2172 = vsel %vm1005, %v2170, %v2171
        %v2173 = vrot.slane %v2171, 4
        %v2174 = vrot.slane %v1607, 5
        %v2175 = vsel %vm1005, %v2173, %v2174
        %v2176 = vrot.slane %v2106, 5
        %v2177 = vrot.slane %v2176, 4
        %v2178 = vrot.slane %v1609, 5
        %v2179 = vsel %vm1005, %v2177, %v2178
        %v2180 = vrot.slane %v2178, 4
        %v2181 = vrot.slane %v1610, 5
        %v2182 = vsel %vm1005, %v2180, %v2181
        %v2183 = vrot.slane %v2107, 5
        %v2184 = vrot.slane %v2183, 4
        %v2185 = vrot.slane %v1612, 5
        %v2186 = vsel %vm1005, %v2184, %v2185
        %v2187 = vrot.slane %v2185, 4
        %v2188 = vrot.slane %v1613, 5
        %v2189 = vsel %vm1005, %v2187, %v2188
        %v2190 = vrot.slane %v2108, 5
        %v2191 = vrot.slane %v2190, 4
        %v2192 = vrot.slane %v1615, 5
        %v2193 = vsel %vm1005, %v2191, %v2192
        %v2194 = vrot.slane %v2192, 4
        %v2195 = vrot.slane %v1616, 5
        %v2196 = vsel %vm1005, %v2194, %v2195
        %v2197 = vrot.slane %v2109, 5
        %v2198 = vrot.slane %v2197, 4
        %v2199 = vrot.slane %v1618, 5
        %v2200 = vsel %vm1005, %v2198, %v2199
        %v2201 = vrot.slane %v2199, 4
        %v2202 = vrot.slane %v1619, 5
        %v2203 = vsel %vm1005, %v2201, %v2202
        %v2204 = vrot.slane %v2110, 5
        %v2205 = vrot.slane %v2204, 4
        %v2206 = vrot.slane %v1621, 5
        %v2207 = vsel %vm1005, %v2205, %v2206
        %v2208 = vrot.slane %v2206, 4
        %v2209 = vrot.slane %v1622, 5
        %v2210 = vsel %vm1005, %v2208, %v2209
        %s2211 = scalar_lea.vmem [#allocation4], 320
        %v2212 = vld [vmem:[%s2211] sm:$0xf]
        %v2213 = vld [vmem:[%s2211 + $0x4] sm:$0xf]
        %v2214 = vld [vmem:[%s2211 + $0x8] sm:$0xf]
        %v2215 = vld [vmem:[%s2211 + $0xc] sm:$0xf]
        %v2216 = vld [vmem:[%s2211 + $0x10] sm:$0xf]
        %v2217 = vld [vmem:[%s2211 + $0x14] sm:$0xf]
        %v2218 = vld [vmem:[%s2211 + $0x18] sm:$0xf]
        %v2219 = vld [vmem:[%s2211 + $0x1c] sm:$0xf]
        %v2220 = vld [vmem:[%s2211 + $0x20] sm:$0xf]
        %v2221 = vld [vmem:[%s2211 + $0x24] sm:$0xf]
        %v2222 = vld [vmem:[%s2211 + $0x28] sm:$0xf]
        %v2223 = vld [vmem:[%s2211 + $0x2c] sm:$0xf]
        %v2224 = vld [vmem:[%s2211 + $0x30] sm:$0xf]
        %v2225 = vld [vmem:[%s2211 + $0x34] sm:$0xf]
        %v2226 = vld [vmem:[%s2211 + $0x38] sm:$0xf]
        %v2227 = vld [vmem:[%s2211 + $0x3c] sm:$0xf]
        %v2228 = vunpack.c.l.b16 %v2144
        %v2229 = vunpack.c.l.b16 %v2147
        %v2230 = vunpack.c.l.b16 %v2151
        %v2231 = vunpack.c.l.b16 %v2154
        %v2232 = vunpack.c.l.b16 %v2158
        %v2233 = vunpack.c.l.b16 %v2161
        %v2234 = vunpack.c.l.b16 %v2165
        %v2235 = vunpack.c.l.b16 %v2168
        %v2236 = vunpack.c.l.b16 %v2172
        %v2237 = vunpack.c.l.b16 %v2175
        %v2238 = vunpack.c.l.b16 %v2179
        %v2239 = vunpack.c.l.b16 %v2182
        %v2240 = vunpack.c.l.b16 %v2186
        %v2241 = vunpack.c.l.b16 %v2189
        %v2242 = vunpack.c.l.b16 %v2193
        %v2243 = vunpack.c.l.b16 %v2196
        %v2244 = vunpack.c.l.b16 %v2200
        %v2245 = vunpack.c.l.b16 %v2203
        %v2246 = vunpack.c.l.b16 %v2207
        %v2247 = vunpack.c.l.b16 %v2210
        %v2248 = vpack.c.b16 %v2229, %v2228
        %v2249 = vpack.c.b16 %v2231, %v2230
        %v2250 = vpack.c.b16 %v2233, %v2232
        %v2251 = vpack.c.b16 %v2235, %v2234
        %v2252 = vpack.c.b16 %v2237, %v2236
        %v2253 = vpack.c.b16 %v2239, %v2238
        %v2254 = vpack.c.b16 %v2241, %v2240
        %v2255 = vpack.c.b16 %v2243, %v2242
        %v2256 = vpack.c.b16 %v2245, %v2244
        %v2257 = vpack.c.b16 %v2247, %v2246
        %v2284 = vunpack.c.l.b16 %v2212
        %v2285 = vunpack.c.l.b16 %v2213
        %v2286 = vunpack.c.l.b16 %v2214
        %v2287 = vunpack.c.l.b16 %v2215
        %v2288 = vunpack.c.l.b16 %v2216
        %v2289 = vunpack.c.l.b16 %v2217
        %v2290 = vunpack.c.l.b16 %v2218
        %v2291 = vunpack.c.l.b16 %v2219
        %v2292 = vunpack.c.l.b16 %v2220
        %v2293 = vunpack.c.l.b16 %v2221
        %v2294 = vunpack.c.l.b16 %v2222
        %v2295 = vunpack.c.l.b16 %v2223
        %v2296 = vunpack.c.l.b16 %v2224
        %v2297 = vunpack.c.l.b16 %v2225
        %v2298 = vunpack.c.l.b16 %v2226
        %v2299 = vunpack.c.l.b16 %v2227
        %v2300 = vpack.c.b16 %v2285, %v2284
        %v2301 = vpack.c.b16 %v2287, %v2286
        %v2302 = vpack.c.b16 %v2289, %v2288
        %v2303 = vpack.c.b16 %v2291, %v2290
        %v2304 = vpack.c.b16 %v2293, %v2292
        %v2305 = vpack.c.b16 %v2295, %v2294
        %v2306 = vpack.c.b16 %v2297, %v2296
        %v2307 = vpack.c.b16 %v2299, %v2298
        %2316 = vmatprep.subr.bf16.mxu0 0
        %2317 = vmatpush1.bf16.msra.mxu0 %v2300
        %2318 = vmatprep.subr.bf16.mxu0 0
        %2319 = vmatpush1.bf16.msra.mxu0 %v2301
        %2320 = vmatprep.subr.bf16.mxu0 0
        %2321 = vmatpush1.bf16.msra.mxu0 %v2302
        %2322 = vmatprep.subr.bf16.mxu0 0
        %2323 = vmatpush1.bf16.msra.mxu0 %v2303
        %2324 = vmatprep.subr.bf16.mxu0 0
        %2325 = vmatpush1.bf16.msra.mxu0 %v2304
        %2326 = vmatprep.subr.bf16.mxu0 0
        %2327 = vmatpush1.bf16.msra.mxu0 %v2305
        %2328 = vmatprep.subr.bf16.mxu0 0
        %2329 = vmatpush1.bf16.msra.mxu0 %v2306
        %2330 = vmatprep.subr.bf16.mxu0 0
        %2331 = vmatpush1.bf16.msra.mxu0 %v2307
        %2332 = vmatprep.subr.bf16.mxu0 0
        %2333 = vmatpush1.bf16.msra.mxu0 0
        %2334 = vmatprep.subr.bf16.mxu0 0
        %2335 = vmatpush1.bf16.msra.mxu0 0
        %2336 = vmatprep.subr.bf16.mxu0 0
        %2337 = vmatpush1.bf16.msra.mxu0 0
        %2338 = vmatprep.subr.bf16.mxu0 0
        %2339 = vmatpush1.bf16.msra.mxu0 0
        %2340 = vmatprep.subr.bf16.mxu0 0
        %2341 = vmatpush1.bf16.msra.mxu0 0
        %2342 = vmatprep.subr.bf16.mxu0 0
        %2343 = vmatpush1.bf16.msra.mxu0 0
        %2344 = vmatprep.subr.bf16.mxu0 0
        %2345 = vmatpush1.bf16.msra.mxu0 0
        %2346 = vmatprep.subr.bf16.mxu0 0
        %2347 = vmatpush1.bf16.msra.mxu0 0
        %2348 = vmatprep.mubr.bf16.mxu0 0
        %2349 = vmatmul.mubr.bf16.gmra.mrb[0].mxu0 %v2248
        %v2350 = vpop.f32.mrb[0].mxu0
        %v2351 = vadd.f32 0.0, %v2350
        %v2352 = vpop.f32.mrb[0].mxu0
        %v2353 = vpop.f32.mrb[0].mxu0
        %v2354 = vadd.f32 0.0, %v2353
        %v2355 = vpop.f32.mrb[0].mxu0
        %2356 = vmatprep.mubr.bf16.mxu0 0
        %2357 = vmatmul.mubr.bf16.gmra.mrb[0].mxu0 %v2249
        %v2358 = vpop.f32.mrb[0].mxu0
        %v2359 = vadd.f32 0.0, %v2358
        %v2360 = vpop.f32.mrb[0].mxu0
        %v2361 = vpop.f32.mrb[0].mxu0
        %v2362 = vadd.f32 0.0, %v2361
        %v2363 = vpop.f32.mrb[0].mxu0
        %2364 = vmatprep.mubr.bf16.mxu0 0
        %2365 = vmatmul.mubr.bf16.gmra.mrb[0].mxu0 %v2250
        %v2366 = vpop.f32.mrb[0].mxu0
        %v2367 = vadd.f32 0.0, %v2366
        %v2368 = vpop.f32.mrb[0].mxu0
        %v2369 = vpop.f32.mrb[0].mxu0
        %v2370 = vadd.f32 0.0, %v2369
        %v2371 = vpop.f32.mrb[0].mxu0
        %2372 = vmatprep.mubr.bf16.mxu0 0
        %2373 = vmatmul.mubr.bf16.gmra.mrb[0].mxu0 %v2251
        %v2374 = vpop.f32.mrb[0].mxu0
        %v2375 = vadd.f32 0.0, %v2374
        %v2376 = vpop.f32.mrb[0].mxu0
        %v2377 = vpop.f32.mrb[0].mxu0
        %v2378 = vadd.f32 0.0, %v2377
        %v2379 = vpop.f32.mrb[0].mxu0
        %2380 = vmatprep.mubr.bf16.mxu0 0
        %2381 = vmatmul.mubr.bf16.gmra.mrb[0].mxu0 %v2252
        %v2382 = vpop.f32.mrb[0].mxu0
        %v2383 = vadd.f32 0.0, %v2382
        %v2384 = vpop.f32.mrb[0].mxu0
        %v2385 = vpop.f32.mrb[0].mxu0
        %v2386 = vadd.f32 0.0, %v2385
        %v2387 = vpop.f32.mrb[0].mxu0
        %2388 = vmatprep.mubr.bf16.mxu0 0
        %2389 = vmatmul.mubr.bf16.gmra.mrb[0].mxu0 %v2253
        %v2390 = vpop.f32.mrb[0].mxu0
        %v2391 = vadd.f32 0.0, %v2390
        %v2392 = vpop.f32.mrb[0].mxu0
        %v2393 = vpop.f32.mrb[0].mxu0
        %v2394 = vadd.f32 0.0, %v2393
        %v2395 = vpop.f32.mrb[0].mxu0
        %2396 = vmatprep.mubr.bf16.mxu0 0
        %2397 = vmatmul.mubr.bf16.gmra.mrb[0].mxu0 %v2254
        %v2398 = vpop.f32.mrb[0].mxu0
        %v2399 = vadd.f32 0.0, %v2398
        %v2400 = vpop.f32.mrb[0].mxu0
        %v2401 = vpop.f32.mrb[0].mxu0
        %v2402 = vadd.f32 0.0, %v2401
        %v2403 = vpop.f32.mrb[0].mxu0
        %2404 = vmatprep.mubr.bf16.mxu0 0
        %2405 = vmatmul.mubr.bf16.gmra.mrb[0].mxu0 %v2255
        %v2406 = vpop.f32.mrb[0].mxu0
        %v2407 = vadd.f32 0.0, %v2406
        %v2408 = vpop.f32.mrb[0].mxu0
        %v2409 = vpop.f32.mrb[0].mxu0
        %v2410 = vadd.f32 0.0, %v2409
        %v2411 = vpop.f32.mrb[0].mxu0
        %2412 = vmatprep.mubr.bf16.mxu0 0
        %2413 = vmatmul.mubr.bf16.gmra.mrb[0].mxu0 %v2256
        %v2414 = vpop.f32.mrb[0].mxu0
        %v2415 = vadd.f32 0.0, %v2414
        %v2416 = vpop.f32.mrb[0].mxu0
        %v2417 = vpop.f32.mrb[0].mxu0
        %v2418 = vadd.f32 0.0, %v2417
        %v2419 = vpop.f32.mrb[0].mxu0
        %2420 = vmatprep.mubr.bf16.mxu0 0
        %2421 = vmatmul.mubr.bf16.gmra.mrb[0].mxu0 %v2257
        %v2422 = vpop.f32.mrb[0].mxu0
        %v2423 = vadd.f32 0.0, %v2422
        %v2424 = vpop.f32.mrb[0].mxu0
        %v2425 = vpop.f32.mrb[0].mxu0
        %v2426 = vadd.f32 0.0, %v2425
        %v2427 = vpop.f32.mrb[0].mxu0
        %2428 = vdwg.mxu0
        %v2429 = vadd.f32 %v2081, %v2351
        %v2430 = vadd.f32 %v2082, %v2354
        %v2431 = vadd.f32 %v2083, %v2359
        %v2432 = vadd.f32 %v2084, %v2362
        %v2433 = vadd.f32 %v2085, %v2367
        %v2434 = vadd.f32 %v2086, %v2370
        %v2435 = vadd.f32 %v2087, %v2375
        %v2436 = vadd.f32 %v2088, %v2378
        %v2437 = vadd.f32 %v2089, %v2383
        %v2438 = vadd.f32 %v2090, %v2386
        %v2439 = vadd.f32 %v2091, %v2391
        %v2440 = vadd.f32 %v2092, %v2394
        %v2441 = vadd.f32 %v2093, %v2399
        %v2442 = vadd.f32 %v2094, %v2402
        %v2443 = vadd.f32 %v2095, %v2407
        %v2444 = vadd.f32 %v2096, %v2410
        %v2445 = vadd.f32 %v2097, %v2415
        %v2446 = vadd.f32 %v2098, %v2418
        %v2447 = vadd.f32 %v2099, %v2423
        %v2448 = vadd.f32 %v2100, %v2426
        %s2449 = scalar_lea.vmem [#allocation2], 24
        %v2450 = vld [vmem:[%s2449] sm:$0xf]
        %v2451 = vld [vmem:[%s2449 + $0x4] sm:$0xf]
        %v2452 = vld [vmem:[%s2449 + $0xc] sm:$0xf]
        %v2453 = vld [vmem:[%s2449 + $0x10] sm:$0xf]
        %v2454 = vld [vmem:[%s2449 + $0x18] sm:$0xf]
        %v2455 = vld [vmem:[%s2449 + $0x1c] sm:$0xf]
        %v2456 = vld [vmem:[%s2449 + $0x24] sm:$0xf]
        %v2457 = vld [vmem:[%s2449 + $0x28] sm:$0xf]
        %v2458 = vld [vmem:[%s2449 + $0x30] sm:$0xf]
        %v2459 = vld [vmem:[%s2449 + $0x34] sm:$0xf]
        %v2460 = vld [vmem:[%s2449 + $0x3c] sm:$0xf]
        %v2461 = vld [vmem:[%s2449 + $0x40] sm:$0xf]
        %v2462 = vld [vmem:[%s2449 + $0x48] sm:$0xf]
        %v2463 = vld [vmem:[%s2449 + $0x4c] sm:$0xf]
        %v2464 = vld [vmem:[%s2449 + $0x54] sm:$0xf]
        %v2465 = vld [vmem:[%s2449 + $0x58] sm:$0xf]
        %v2466 = vld [vmem:[%s2449 + $0x60] sm:$0xf]
        %v2467 = vld [vmem:[%s2449 + $0x64] sm:$0xf]
        %v2468 = vld [vmem:[%s2449 + $0x6c] sm:$0xf]
        %v2469 = vld [vmem:[%s2449 + $0x70] sm:$0xf]
        %s2470 = scalar_lea.vmem [#allocation4], 384
        %v2471 = vld [vmem:[%s2470] sm:$0xf]
        %v2472 = vld [vmem:[%s2470 + $0x4] sm:$0xf]
        %v2473 = vld [vmem:[%s2470 + $0x8] sm:$0xf]
        %v2474 = vld [vmem:[%s2470 + $0xc] sm:$0xf]
        %v2475 = vld [vmem:[%s2470 + $0x10] sm:$0xf]
        %v2476 = vld [vmem:[%s2470 + $0x14] sm:$0xf]
        %v2477 = vld [vmem:[%s2470 + $0x18] sm:$0xf]
        %v2478 = vld [vmem:[%s2470 + $0x1c] sm:$0xf]
        %v2479 = vld [vmem:[%s2470 + $0x20] sm:$0xf]
        %v2480 = vld [vmem:[%s2470 + $0x24] sm:$0xf]
        %v2481 = vld [vmem:[%s2470 + $0x28] sm:$0xf]
        %v2482 = vld [vmem:[%s2470 + $0x2c] sm:$0xf]
        %v2483 = vld [vmem:[%s2470 + $0x30] sm:$0xf]
        %v2484 = vld [vmem:[%s2470 + $0x34] sm:$0xf]
        %v2485 = vld [vmem:[%s2470 + $0x38] sm:$0xf]
        %v2486 = vld [vmem:[%s2470 + $0x3c] sm:$0xf]
        %v2507 = vunpack.c.l.b16 %v2450
        %v2508 = vunpack.c.l.b16 %v2451
        %v2509 = vunpack.c.l.b16 %v2452
        %v2510 = vunpack.c.l.b16 %v2453
        %v2511 = vunpack.c.l.b16 %v2454
        %v2512 = vunpack.c.l.b16 %v2455
        %v2513 = vunpack.c.l.b16 %v2456
        %v2514 = vunpack.c.l.b16 %v2457
        %v2515 = vunpack.c.l.b16 %v2458
        %v2516 = vunpack.c.l.b16 %v2459
        %v2517 = vunpack.c.l.b16 %v2460
        %v2518 = vunpack.c.l.b16 %v2461
        %v2519 = vunpack.c.l.b16 %v2462
        %v2520 = vunpack.c.l.b16 %v2463
        %v2521 = vunpack.c.l.b16 %v2464
        %v2522 = vunpack.c.l.b16 %v2465
        %v2523 = vunpack.c.l.b16 %v2466
        %v2524 = vunpack.c.l.b16 %v2467
        %v2525 = vunpack.c.l.b16 %v2468
        %v2526 = vunpack.c.l.b16 %v2469
        %v2527 = vpack.c.b16 %v2508, %v2507
        %v2528 = vpack.c.b16 %v2510, %v2509
        %v2529 = vpack.c.b16 %v2512, %v2511
        %v2530 = vpack.c.b16 %v2514, %v2513
        %v2531 = vpack.c.b16 %v2516, %v2515
        %v2532 = vpack.c.b16 %v2518, %v2517
        %v2533 = vpack.c.b16 %v2520, %v2519
        %v2534 = vpack.c.b16 %v2522, %v2521
        %v2535 = vpack.c.b16 %v2524, %v2523
        %v2536 = vpack.c.b16 %v2526, %v2525
        %v2563 = vunpack.c.l.b16 %v2471
        %v2564 = vunpack.c.l.b16 %v2472
        %v2565 = vunpack.c.l.b16 %v2473
        %v2566 = vunpack.c.l.b16 %v2474
        %v2567 = vunpack.c.l.b16 %v2475
        %v2568 = vunpack.c.l.b16 %v2476
        %v2569 = vunpack.c.l.b16 %v2477
        %v2570 = vunpack.c.l.b16 %v2478
        %v2571 = vunpack.c.l.b16 %v2479
        %v2572 = vunpack.c.l.b16 %v2480
        %v2573 = vunpack.c.l.b16 %v2481
        %v2574 = vunpack.c.l.b16 %v2482
        %v2575 = vunpack.c.l.b16 %v2483
        %v2576 = vunpack.c.l.b16 %v2484
        %v2577 = vunpack.c.l.b16 %v2485
        %v2578 = vunpack.c.l.b16 %v2486
        %v2579 = vpack.c.b16 %v2564, %v2563
        %v2580 = vpack.c.b16 %v2566, %v2565
        %v2581 = vpack.c.b16 %v2568, %v2567
        %v2582 = vpack.c.b16 %v2570, %v2569
        %v2583 = vpack.c.b16 %v2572, %v2571
        %v2584 = vpack.c.b16 %v2574, %v2573
        %v2585 = vpack.c.b16 %v2576, %v2575
        %v2586 = vpack.c.b16 %v2578, %v2577
        %2595 = vmatprep.subr.bf16.mxu0 0
        %2596 = vmatpush1.bf16.msra.mxu0 %v2579
        %2597 = vmatprep.subr.bf16.mxu0 0
        %2598 = vmatpush1.bf16.msra.mxu0 %v2580
        %2599 = vmatprep.subr.bf16.mxu0 0
        %2600 = vmatpush1.bf16.msra.mxu0 %v2581
        %2601 = vmatprep.subr.bf16.mxu0 0
        %2602 = vmatpush1.bf16.msra.mxu0 %v2582
        %2603 = vmatprep.subr.bf16.mxu0 0
        %2604 = vmatpush1.bf16.msra.mxu0 %v2583
        %2605 = vmatprep.subr.bf16.mxu0 0
        %2606 = vmatpush1.bf16.msra.mxu0 %v2584
        %2607 = vmatprep.subr.bf16.mxu0 0
        %2608 = vmatpush1.bf16.msra.mxu0 %v2585
        %2609 = vmatprep.subr.bf16.mxu0 0
        %2610 = vmatpush1.bf16.msra.mxu0 %v2586
        %2611 = vmatprep.subr.bf16.mxu0 0
        %2612 = vmatpush1.bf16.msra.mxu0 0
        %2613 = vmatprep.subr.bf16.mxu0 0
        %2614 = vmatpush1.bf16.msra.mxu0 0
        %2615 = vmatprep.subr.bf16.mxu0 0
        %2616 = vmatpush1.bf16.msra.mxu0 0
        %2617 = vmatprep.subr.bf16.mxu0 0
        %2618 = vmatpush1.bf16.msra.mxu0 0
        %2619 = vmatprep.subr.bf16.mxu0 0
        %2620 = vmatpush1.bf16.msra.mxu0 0
        %2621 = vmatprep.subr.bf16.mxu0 0
        %2622 = vmatpush1.bf16.msra.mxu0 0
        %2623 = vmatprep.subr.bf16.mxu0 0
        %2624 = vmatpush1.bf16.msra.mxu0 0
        %2625 = vmatprep.subr.bf16.mxu0 0
        %2626 = vmatpush1.bf16.msra.mxu0 0
        %2627 = vmatprep.mubr.bf16.mxu0 0
        %2628 = vmatmul.mubr.bf16.gmra.mrb[0].mxu0 %v2527
        %v2629 = vpop.f32.mrb[0].mxu0
        %v2630 = vadd.f32 0.0, %v2629
        %v2631 = vpop.f32.mrb[0].mxu0
        %v2632 = vpop.f32.mrb[0].mxu0
        %v2633 = vadd.f32 0.0, %v2632
        %v2634 = vpop.f32.mrb[0].mxu0
        %2635 = vmatprep.mubr.bf16.mxu0 0
        %2636 = vmatmul.mubr.bf16.gmra.mrb[0].mxu0 %v2528
        %v2637 = vpop.f32.mrb[0].mxu0
        %v2638 = vadd.f32 0.0, %v2637
        %v2639 = vpop.f32.mrb[0].mxu0
        %v2640 = vpop.f32.mrb[0].mxu0
        %v2641 = vadd.f32 0.0, %v2640
        %v2642 = vpop.f32.mrb[0].mxu0
        %2643 = vmatprep.mubr.bf16.mxu0 0
        %2644 = vmatmul.mubr.bf16.gmra.mrb[0].mxu0 %v2529
        %v2645 = vpop.f32.mrb[0].mxu0
        %v2646 = vadd.f32 0.0, %v2645
        %v2647 = vpop.f32.mrb[0].mxu0
        %v2648 = vpop.f32.mrb[0].mxu0
        %v2649 = vadd.f32 0.0, %v2648
        %v2650 = vpop.f32.mrb[0].mxu0
        %2651 = vmatprep.mubr.bf16.mxu0 0
        %2652 = vmatmul.mubr.bf16.gmra.mrb[0].mxu0 %v2530
        %v2653 = vpop.f32.mrb[0].mxu0
        %v2654 = vadd.f32 0.0, %v2653
        %v2655 = vpop.f32.mrb[0].mxu0
        %v2656 = vpop.f32.mrb[0].mxu0
        %v2657 = vadd.f32 0.0, %v2656
        %v2658 = vpop.f32.mrb[0].mxu0
        %2659 = vmatprep.mubr.bf16.mxu0 0
        %2660 = vmatmul.mubr.bf16.gmra.mrb[0].mxu0 %v2531
        %v2661 = vpop.f32.mrb[0].mxu0
        %v2662 = vadd.f32 0.0, %v2661
        %v2663 = vpop.f32.mrb[0].mxu0
        %v2664 = vpop.f32.mrb[0].mxu0
        %v2665 = vadd.f32 0.0, %v2664
        %v2666 = vpop.f32.mrb[0].mxu0
        %2667 = vmatprep.mubr.bf16.mxu0 0
        %2668 = vmatmul.mubr.bf16.gmra.mrb[0].mxu0 %v2532
        %v2669 = vpop.f32.mrb[0].mxu0
        %v2670 = vadd.f32 0.0, %v2669
        %v2671 = vpop.f32.mrb[0].mxu0
        %v2672 = vpop.f32.mrb[0].mxu0
        %v2673 = vadd.f32 0.0, %v2672
        %v2674 = vpop.f32.mrb[0].mxu0
        %2675 = vmatprep.mubr.bf16.mxu0 0
        %2676 = vmatmul.mubr.bf16.gmra.mrb[0].mxu0 %v2533
        %v2677 = vpop.f32.mrb[0].mxu0
        %v2678 = vadd.f32 0.0, %v2677
        %v2679 = vpop.f32.mrb[0].mxu0
        %v2680 = vpop.f32.mrb[0].mxu0
        %v2681 = vadd.f32 0.0, %v2680
        %v2682 = vpop.f32.mrb[0].mxu0
        %2683 = vmatprep.mubr.bf16.mxu0 0
        %2684 = vmatmul.mubr.bf16.gmra.mrb[0].mxu0 %v2534
        %v2685 = vpop.f32.mrb[0].mxu0
        %v2686 = vadd.f32 0.0, %v2685
        %v2687 = vpop.f32.mrb[0].mxu0
        %v2688 = vpop.f32.mrb[0].mxu0
        %v2689 = vadd.f32 0.0, %v2688
        %v2690 = vpop.f32.mrb[0].mxu0
        %2691 = vmatprep.mubr.bf16.mxu0 0
        %2692 = vmatmul.mubr.bf16.gmra.mrb[0].mxu0 %v2535
        %v2693 = vpop.f32.mrb[0].mxu0
        %v2694 = vadd.f32 0.0, %v2693
        %v2695 = vpop.f32.mrb[0].mxu0
        %v2696 = vpop.f32.mrb[0].mxu0
        %v2697 = vadd.f32 0.0, %v2696
        %v2698 = vpop.f32.mrb[0].mxu0
        %2699 = vmatprep.mubr.bf16.mxu0 0
        %2700 = vmatmul.mubr.bf16.gmra.mrb[0].mxu0 %v2536
        %v2701 = vpop.f32.mrb[0].mxu0
        %v2702 = vadd.f32 0.0, %v2701
        %v2703 = vpop.f32.mrb[0].mxu0
        %v2704 = vpop.f32.mrb[0].mxu0
        %v2705 = vadd.f32 0.0, %v2704
        %v2706 = vpop.f32.mrb[0].mxu0
        %2707 = vdwg.mxu0
        %v2708 = vadd.f32 %v2429, %v2630
        %v2709 = vadd.f32 %v2430, %v2633
        %v2710 = vadd.f32 %v2431, %v2638
        %v2711 = vadd.f32 %v2432, %v2641
        %v2712 = vadd.f32 %v2433, %v2646
        %v2713 = vadd.f32 %v2434, %v2649
        %v2714 = vadd.f32 %v2435, %v2654
        %v2715 = vadd.f32 %v2436, %v2657
        %v2716 = vadd.f32 %v2437, %v2662
        %v2717 = vadd.f32 %v2438, %v2665
        %v2718 = vadd.f32 %v2439, %v2670
        %v2719 = vadd.f32 %v2440, %v2673
        %v2720 = vadd.f32 %v2441, %v2678
        %v2721 = vadd.f32 %v2442, %v2681
        %v2722 = vadd.f32 %v2443, %v2686
        %v2723 = vadd.f32 %v2444, %v2689
        %v2724 = vadd.f32 %v2445, %v2694
        %v2725 = vadd.f32 %v2446, %v2697
        %v2726 = vadd.f32 %v2447, %v2702
        %v2727 = vadd.f32 %v2448, %v2705
        %v2728 = vld [vmem:[%s2449] sm:$0xf]
        %v2729 = vld [vmem:[%s2449 + $0x4] sm:$0xf]
        %v2730 = vld [vmem:[%s2449 + $0x8] sm:$0x1]
        %v2731 = vld [vmem:[%s2449 + $0xc] sm:$0xf]
        %v2732 = vld [vmem:[%s2449 + $0x10] sm:$0xf]
        %v2733 = vld [vmem:[%s2449 + $0x14] sm:$0x1]
        %v2734 = vld [vmem:[%s2449 + $0x18] sm:$0xf]
        %v2735 = vld [vmem:[%s2449 + $0x1c] sm:$0xf]
        %v2736 = vld [vmem:[%s2449 + $0x20] sm:$0x1]
        %v2737 = vld [vmem:[%s2449 + $0x24] sm:$0xf]
        %v2738 = vld [vmem:[%s2449 + $0x28] sm:$0xf]
        %v2739 = vld [vmem:[%s2449 + $0x2c] sm:$0x1]
        %v2740 = vld [vmem:[%s2449 + $0x30] sm:$0xf]
        %v2741 = vld [vmem:[%s2449 + $0x34] sm:$0xf]
        %v2742 = vld [vmem:[%s2449 + $0x38] sm:$0x1]
        %v2743 = vld [vmem:[%s2449 + $0x3c] sm:$0xf]
        %v2744 = vld [vmem:[%s2449 + $0x40] sm:$0xf]
        %v2745 = vld [vmem:[%s2449 + $0x44] sm:$0x1]
        %v2746 = vld [vmem:[%s2449 + $0x48] sm:$0xf]
        %v2747 = vld [vmem:[%s2449 + $0x4c] sm:$0xf]
        %v2748 = vld [vmem:[%s2449 + $0x50] sm:$0x1]
        %v2749 = vld [vmem:[%s2449 + $0x54] sm:$0xf]
        %v2750 = vld [vmem:[%s2449 + $0x58] sm:$0xf]
        %v2751 = vld [vmem:[%s2449 + $0x5c] sm:$0x1]
        %v2752 = vld [vmem:[%s2449 + $0x60] sm:$0xf]
        %v2753 = vld [vmem:[%s2449 + $0x64] sm:$0xf]
        %v2754 = vld [vmem:[%s2449 + $0x68] sm:$0x1]
        %v2755 = vld [vmem:[%s2449 + $0x6c] sm:$0xf]
        %v2756 = vld [vmem:[%s2449 + $0x70] sm:$0xf]
        %v2757 = vld [vmem:[%s2449 + $0x74] sm:$0x1]
        %v2759 = vshrl.u32 %v2728, 16
        %v2761 = vrot.slane %v2759, 4
        %v2762 = vshll.u32 %v2728, 16
        %v2764 = vrot.slane %v2762, 5
        %v2765 = vor.u32 %v2761, %v2764
        %v2766 = vrot.slane %v2765, 4
        %v2768 = vshll.u32 %v2729, 16
        %v2770 = vrot.slane %v2768, 5
        %v2771 = vsel %vm293, %v2766, %v2770
        %v2772 = vshrl.u32 %v2729, 16
        %v2774 = vrot.slane %v2772, 4
        %v2775 = vor.u32 %v2774, %v2770
        %v2776 = vrot.slane %v2775, 4
        %v2778 = vshll.u32 %v2730, 16
        %v2780 = vrot.slane %v2778, 5
        %v2781 = vsel %vm293, %v2776, %v2780
        %v2783 = vshrl.u32 %v2731, 16
        %v2785 = vrot.slane %v2783, 4
        %v2786 = vshll.u32 %v2731, 16
        %v2788 = vrot.slane %v2786, 5
        %v2789 = vor.u32 %v2785, %v2788
        %v2790 = vrot.slane %v2789, 4
        %v2792 = vshll.u32 %v2732, 16
        %v2794 = vrot.slane %v2792, 5
        %v2795 = vsel %vm293, %v2790, %v2794
        %v2796 = vshrl.u32 %v2732, 16
        %v2798 = vrot.slane %v2796, 4
        %v2799 = vor.u32 %v2798, %v2794
        %v2800 = vrot.slane %v2799, 4
        %v2802 = vshll.u32 %v2733, 16
        %v2804 = vrot.slane %v2802, 5
        %v2805 = vsel %vm293, %v2800, %v2804
        %v2807 = vshrl.u32 %v2734, 16
        %v2809 = vrot.slane %v2807, 4
        %v2810 = vshll.u32 %v2734, 16
        %v2812 = vrot.slane %v2810, 5
        %v2813 = vor.u32 %v2809, %v2812
        %v2814 = vrot.slane %v2813, 4
        %v2816 = vshll.u32 %v2735, 16
        %v2818 = vrot.slane %v2816, 5
        %v2819 = vsel %vm293, %v2814, %v2818
        %v2820 = vshrl.u32 %v2735, 16
        %v2822 = vrot.slane %v2820, 4
        %v2823 = vor.u32 %v2822, %v2818
        %v2824 = vrot.slane %v2823, 4
        %v2826 = vshll.u32 %v2736, 16
        %v2828 = vrot.slane %v2826, 5
        %v2829 = vsel %vm293, %v2824, %v2828
        %v2831 = vshrl.u32 %v2737, 16
        %v2833 = vrot.slane %v2831, 4
        %v2834 = vshll.u32 %v2737, 16
        %v2836 = vrot.slane %v2834, 5
        %v2837 = vor.u32 %v2833, %v2836
        %v2838 = vrot.slane %v2837, 4
        %v2840 = vshll.u32 %v2738, 16
        %v2842 = vrot.slane %v2840, 5
        %v2843 = vsel %vm293, %v2838, %v2842
        %v2844 = vshrl.u32 %v2738, 16
        %v2846 = vrot.slane %v2844, 4
        %v2847 = vor.u32 %v2846, %v2842
        %v2848 = vrot.slane %v2847, 4
        %v2850 = vshll.u32 %v2739, 16
        %v2852 = vrot.slane %v2850, 5
        %v2853 = vsel %vm293, %v2848, %v2852
        %v2855 = vshrl.u32 %v2740, 16
        %v2857 = vrot.slane %v2855, 4
        %v2858 = vshll.u32 %v2740, 16
        %v2860 = vrot.slane %v2858, 5
        %v2861 = vor.u32 %v2857, %v2860
        %v2862 = vrot.slane %v2861, 4
        %v2864 = vshll.u32 %v2741, 16
        %v2866 = vrot.slane %v2864, 5
        %v2867 = vsel %vm293, %v2862, %v2866
        %v2868 = vshrl.u32 %v2741, 16
        %v2870 = vrot.slane %v2868, 4
        %v2871 = vor.u32 %v2870, %v2866
        %v2872 = vrot.slane %v2871, 4
        %v2874 = vshll.u32 %v2742, 16
        %v2876 = vrot.slane %v2874, 5
        %v2877 = vsel %vm293, %v2872, %v2876
        %v2879 = vshrl.u32 %v2743, 16
        %v2881 = vrot.slane %v2879, 4
        %v2882 = vshll.u32 %v2743, 16
        %v2884 = vrot.slane %v2882, 5
        %v2885 = vor.u32 %v2881, %v2884
        %v2886 = vrot.slane %v2885, 4
        %v2888 = vshll.u32 %v2744, 16
        %v2890 = vrot.slane %v2888, 5
        %v2891 = vsel %vm293, %v2886, %v2890
        %v2892 = vshrl.u32 %v2744, 16
        %v2894 = vrot.slane %v2892, 4
        %v2895 = vor.u32 %v2894, %v2890
        %v2896 = vrot.slane %v2895, 4
        %v2898 = vshll.u32 %v2745, 16
        %v2900 = vrot.slane %v2898, 5
        %v2901 = vsel %vm293, %v2896, %v2900
        %v2903 = vshrl.u32 %v2746, 16
        %v2905 = vrot.slane %v2903, 4
        %v2906 = vshll.u32 %v2746, 16
        %v2908 = vrot.slane %v2906, 5
        %v2909 = vor.u32 %v2905, %v2908
        %v2910 = vrot.slane %v2909, 4
        %v2912 = vshll.u32 %v2747, 16
        %v2914 = vrot.slane %v2912, 5
        %v2915 = vsel %vm293, %v2910, %v2914
        %v2916 = vshrl.u32 %v2747, 16
        %v2918 = vrot.slane %v2916, 4
        %v2919 = vor.u32 %v2918, %v2914
        %v2920 = vrot.slane %v2919, 4
        %v2922 = vshll.u32 %v2748, 16
        %v2924 = vrot.slane %v2922, 5
        %v2925 = vsel %vm293, %v2920, %v2924
        %v2927 = vshrl.u32 %v2749, 16
        %v2929 = vrot.slane %v2927, 4
        %v2930 = vshll.u32 %v2749, 16
        %v2932 = vrot.slane %v2930, 5
        %v2933 = vor.u32 %v2929, %v2932
        %v2934 = vrot.slane %v2933, 4
        %v2936 = vshll.u32 %v2750, 16
        %v2938 = vrot.slane %v2936, 5
        %v2939 = vsel %vm293, %v2934, %v2938
        %v2940 = vshrl.u32 %v2750, 16
        %v2942 = vrot.slane %v2940, 4
        %v2943 = vor.u32 %v2942, %v2938
        %v2944 = vrot.slane %v2943, 4
        %v2946 = vshll.u32 %v2751, 16
        %v2948 = vrot.slane %v2946, 5
        %v2949 = vsel %vm293, %v2944, %v2948
        %v2951 = vshrl.u32 %v2752, 16
        %v2953 = vrot.slane %v2951, 4
        %v2954 = vshll.u32 %v2752, 16
        %v2956 = vrot.slane %v2954, 5
        %v2957 = vor.u32 %v2953, %v2956
        %v2958 = vrot.slane %v2957, 4
        %v2960 = vshll.u32 %v2753, 16
        %v2962 = vrot.slane %v2960, 5
        %v2963 = vsel %vm293, %v2958, %v2962
        %v2964 = vshrl.u32 %v2753, 16
        %v2966 = vrot.slane %v2964, 4
        %v2967 = vor.u32 %v2966, %v2962
        %v2968 = vrot.slane %v2967, 4
        %v2970 = vshll.u32 %v2754, 16
        %v2972 = vrot.slane %v2970, 5
        %v2973 = vsel %vm293, %v2968, %v2972
        %v2975 = vshrl.u32 %v2755, 16
        %v2977 = vrot.slane %v2975, 4
        %v2978 = vshll.u32 %v2755, 16
        %v2980 = vrot.slane %v2978, 5
        %v2981 = vor.u32 %v2977, %v2980
        %v2982 = vrot.slane %v2981, 4
        %v2984 = vshll.u32 %v2756, 16
        %v2986 = vrot.slane %v2984, 5
        %v2987 = vsel %vm293, %v2982, %v2986
        %v2988 = vshrl.u32 %v2756, 16
        %v2990 = vrot.slane %v2988, 4
        %v2991 = vor.u32 %v2990, %v2986
        %v2992 = vrot.slane %v2991, 4
        %v2994 = vshll.u32 %v2757, 16
        %v2996 = vrot.slane %v2994, 5
        %v2997 = vsel %vm293, %v2992, %v2996
        %s2998 = scalar_lea.vmem [#allocation4], 448
        %v2999 = vld [vmem:[%s2998] sm:$0xf]
        %v3000 = vld [vmem:[%s2998 + $0x4] sm:$0xf]
        %v3001 = vld [vmem:[%s2998 + $0x8] sm:$0xf]
        %v3002 = vld [vmem:[%s2998 + $0xc] sm:$0xf]
        %v3003 = vld [vmem:[%s2998 + $0x10] sm:$0xf]
        %v3004 = vld [vmem:[%s2998 + $0x14] sm:$0xf]
        %v3005 = vld [vmem:[%s2998 + $0x18] sm:$0xf]
        %v3006 = vld [vmem:[%s2998 + $0x1c] sm:$0xf]
        %v3007 = vld [vmem:[%s2998 + $0x20] sm:$0xf]
        %v3008 = vld [vmem:[%s2998 + $0x24] sm:$0xf]
        %v3009 = vld [vmem:[%s2998 + $0x28] sm:$0xf]
        %v3010 = vld [vmem:[%s2998 + $0x2c] sm:$0xf]
        %v3011 = vld [vmem:[%s2998 + $0x30] sm:$0xf]
        %v3012 = vld [vmem:[%s2998 + $0x34] sm:$0xf]
        %v3013 = vld [vmem:[%s2998 + $0x38] sm:$0xf]
        %v3014 = vld [vmem:[%s2998 + $0x3c] sm:$0xf]
        %v3015 = vunpack.c.l.b16 %v2771
        %v3016 = vunpack.c.l.b16 %v2781
        %v3017 = vunpack.c.l.b16 %v2795
        %v3018 = vunpack.c.l.b16 %v2805
        %v3019 = vunpack.c.l.b16 %v2819
        %v3020 = vunpack.c.l.b16 %v2829
        %v3021 = vunpack.c.l.b16 %v2843
        %v3022 = vunpack.c.l.b16 %v2853
        %v3023 = vunpack.c.l.b16 %v2867
        %v3024 = vunpack.c.l.b16 %v2877
        %v3025 = vunpack.c.l.b16 %v2891
        %v3026 = vunpack.c.l.b16 %v2901
        %v3027 = vunpack.c.l.b16 %v2915
        %v3028 = vunpack.c.l.b16 %v2925
        %v3029 = vunpack.c.l.b16 %v2939
        %v3030 = vunpack.c.l.b16 %v2949
        %v3031 = vunpack.c.l.b16 %v2963
        %v3032 = vunpack.c.l.b16 %v2973
        %v3033 = vunpack.c.l.b16 %v2987
        %v3034 = vunpack.c.l.b16 %v2997
        %v3035 = vpack.c.b16 %v3016, %v3015
        %v3036 = vpack.c.b16 %v3018, %v3017
        %v3037 = vpack.c.b16 %v3020, %v3019
        %v3038 = vpack.c.b16 %v3022, %v3021
        %v3039 = vpack.c.b16 %v3024, %v3023
        %v3040 = vpack.c.b16 %v3026, %v3025
        %v3041 = vpack.c.b16 %v3028, %v3027
        %v3042 = vpack.c.b16 %v3030, %v3029
        %v3043 = vpack.c.b16 %v3032, %v3031
        %v3044 = vpack.c.b16 %v3034, %v3033
        %v3071 = vunpack.c.l.b16 %v2999
        %v3072 = vunpack.c.l.b16 %v3000
        %v3073 = vunpack.c.l.b16 %v3001
        %v3074 = vunpack.c.l.b16 %v3002
        %v3075 = vunpack.c.l.b16 %v3003
        %v3076 = vunpack.c.l.b16 %v3004
        %v3077 = vunpack.c.l.b16 %v3005
        %v3078 = vunpack.c.l.b16 %v3006
        %v3079 = vunpack.c.l.b16 %v3007
        %v3080 = vunpack.c.l.b16 %v3008
        %v3081 = vunpack.c.l.b16 %v3009
        %v3082 = vunpack.c.l.b16 %v3010
        %v3083 = vunpack.c.l.b16 %v3011
        %v3084 = vunpack.c.l.b16 %v3012
        %v3085 = vunpack.c.l.b16 %v3013
        %v3086 = vunpack.c.l.b16 %v3014
        %v3087 = vpack.c.b16 %v3072, %v3071
        %v3088 = vpack.c.b16 %v3074, %v3073
        %v3089 = vpack.c.b16 %v3076, %v3075
        %v3090 = vpack.c.b16 %v3078, %v3077
        %v3091 = vpack.c.b16 %v3080, %v3079
        %v3092 = vpack.c.b16 %v3082, %v3081
        %v3093 = vpack.c.b16 %v3084, %v3083
        %v3094 = vpack.c.b16 %v3086, %v3085
        %3103 = vmatprep.subr.bf16.mxu0 0
        %3104 = vmatpush1.bf16.msra.mxu0 %v3087
        %3105 = vmatprep.subr.bf16.mxu0 0
        %3106 = vmatpush1.bf16.msra.mxu0 %v3088
        %3107 = vmatprep.subr.bf16.mxu0 0
        %3108 = vmatpush1.bf16.msra.mxu0 %v3089
        %3109 = vmatprep.subr.bf16.mxu0 0
        %3110 = vmatpush1.bf16.msra.mxu0 %v3090
        %3111 = vmatprep.subr.bf16.mxu0 0
        %3112 = vmatpush1.bf16.msra.mxu0 %v3091
        %3113 = vmatprep.subr.bf16.mxu0 0
        %3114 = vmatpush1.bf16.msra.mxu0 %v3092
        %3115 = vmatprep.subr.bf16.mxu0 0
        %3116 = vmatpush1.bf16.msra.mxu0 %v3093
        %3117 = vmatprep.subr.bf16.mxu0 0
        %3118 = vmatpush1.bf16.msra.mxu0 %v3094
        %3119 = vmatprep.subr.bf16.mxu0 0
        %3120 = vmatpush1.bf16.msra.mxu0 0
        %3121 = vmatprep.subr.bf16.mxu0 0
        %3122 = vmatpush1.bf16.msra.mxu0 0
        %3123 = vmatprep.subr.bf16.mxu0 0
        %3124 = vmatpush1.bf16.msra.mxu0 0
        %3125 = vmatprep.subr.bf16.mxu0 0
        %3126 = vmatpush1.bf16.msra.mxu0 0
        %3127 = vmatprep.subr.bf16.mxu0 0
        %3128 = vmatpush1.bf16.msra.mxu0 0
        %3129 = vmatprep.subr.bf16.mxu0 0
        %3130 = vmatpush1.bf16.msra.mxu0 0
        %3131 = vmatprep.subr.bf16.mxu0 0
        %3132 = vmatpush1.bf16.msra.mxu0 0
        %3133 = vmatprep.subr.bf16.mxu0 0
        %3134 = vmatpush1.bf16.msra.mxu0 0
        %3135 = vmatprep.mubr.bf16.mxu0 0
        %3136 = vmatmul.mubr.bf16.gmra.mrb[0].mxu0 %v3035
        %v3137 = vpop.f32.mrb[0].mxu0
        %v3138 = vadd.f32 0.0, %v3137
        %v3139 = vpop.f32.mrb[0].mxu0
        %v3140 = vpop.f32.mrb[0].mxu0
        %v3141 = vadd.f32 0.0, %v3140
        %v3142 = vpop.f32.mrb[0].mxu0
        %3143 = vmatprep.mubr.bf16.mxu0 0
        %3144 = vmatmul.mubr.bf16.gmra.mrb[0].mxu0 %v3036
        %v3145 = vpop.f32.mrb[0].mxu0
        %v3146 = vadd.f32 0.0, %v3145
        %v3147 = vpop.f32.mrb[0].mxu0
        %v3148 = vpop.f32.mrb[0].mxu0
        %v3149 = vadd.f32 0.0, %v3148
        %v3150 = vpop.f32.mrb[0].mxu0
        %3151 = vmatprep.mubr.bf16.mxu0 0
        %3152 = vmatmul.mubr.bf16.gmra.mrb[0].mxu0 %v3037
        %v3153 = vpop.f32.mrb[0].mxu0
        %v3154 = vadd.f32 0.0, %v3153
        %v3155 = vpop.f32.mrb[0].mxu0
        %v3156 = vpop.f32.mrb[0].mxu0
        %v3157 = vadd.f32 0.0, %v3156
        %v3158 = vpop.f32.mrb[0].mxu0
        %3159 = vmatprep.mubr.bf16.mxu0 0
        %3160 = vmatmul.mubr.bf16.gmra.mrb[0].mxu0 %v3038
        %v3161 = vpop.f32.mrb[0].mxu0
        %v3162 = vadd.f32 0.0, %v3161
        %v3163 = vpop.f32.mrb[0].mxu0
        %v3164 = vpop.f32.mrb[0].mxu0
        %v3165 = vadd.f32 0.0, %v3164
        %v3166 = vpop.f32.mrb[0].mxu0
        %3167 = vmatprep.mubr.bf16.mxu0 0
        %3168 = vmatmul.mubr.bf16.gmra.mrb[0].mxu0 %v3039
        %v3169 = vpop.f32.mrb[0].mxu0
        %v3170 = vadd.f32 0.0, %v3169
        %v3171 = vpop.f32.mrb[0].mxu0
        %v3172 = vpop.f32.mrb[0].mxu0
        %v3173 = vadd.f32 0.0, %v3172
        %v3174 = vpop.f32.mrb[0].mxu0
        %3175 = vmatprep.mubr.bf16.mxu0 0
        %3176 = vmatmul.mubr.bf16.gmra.mrb[0].mxu0 %v3040
        %v3177 = vpop.f32.mrb[0].mxu0
        %v3178 = vadd.f32 0.0, %v3177
        %v3179 = vpop.f32.mrb[0].mxu0
        %v3180 = vpop.f32.mrb[0].mxu0
        %v3181 = vadd.f32 0.0, %v3180
        %v3182 = vpop.f32.mrb[0].mxu0
        %3183 = vmatprep.mubr.bf16.mxu0 0
        %3184 = vmatmul.mubr.bf16.gmra.mrb[0].mxu0 %v3041
        %v3185 = vpop.f32.mrb[0].mxu0
        %v3186 = vadd.f32 0.0, %v3185
        %v3187 = vpop.f32.mrb[0].mxu0
        %v3188 = vpop.f32.mrb[0].mxu0
        %v3189 = vadd.f32 0.0, %v3188
        %v3190 = vpop.f32.mrb[0].mxu0
        %3191 = vmatprep.mubr.bf16.mxu0 0
        %3192 = vmatmul.mubr.bf16.gmra.mrb[0].mxu0 %v3042
        %v3193 = vpop.f32.mrb[0].mxu0
        %v3194 = vadd.f32 0.0, %v3193
        %v3195 = vpop.f32.mrb[0].mxu0
        %v3196 = vpop.f32.mrb[0].mxu0
        %v3197 = vadd.f32 0.0, %v3196
        %v3198 = vpop.f32.mrb[0].mxu0
        %3199 = vmatprep.mubr.bf16.mxu0 0
        %3200 = vmatmul.mubr.bf16.gmra.mrb[0].mxu0 %v3043
        %v3201 = vpop.f32.mrb[0].mxu0
        %v3202 = vadd.f32 0.0, %v3201
        %v3203 = vpop.f32.mrb[0].mxu0
        %v3204 = vpop.f32.mrb[0].mxu0
        %v3205 = vadd.f32 0.0, %v3204
        %v3206 = vpop.f32.mrb[0].mxu0
        %3207 = vmatprep.mubr.bf16.mxu0 0
        %3208 = vmatmul.mubr.bf16.gmra.mrb[0].mxu0 %v3044
        %v3209 = vpop.f32.mrb[0].mxu0
        %v3210 = vadd.f32 0.0, %v3209
        %v3211 = vpop.f32.mrb[0].mxu0
        %v3212 = vpop.f32.mrb[0].mxu0
        %v3213 = vadd.f32 0.0, %v3212
        %v3214 = vpop.f32.mrb[0].mxu0
        %3215 = vdwg.mxu0
        %v3216 = vadd.f32 %v2708, %v3138
        %v3217 = vadd.f32 %v2709, %v3141
        %v3218 = vadd.f32 %v2710, %v3146
        %v3219 = vadd.f32 %v2711, %v3149
        %v3220 = vadd.f32 %v2712, %v3154
        %v3221 = vadd.f32 %v2713, %v3157
        %v3222 = vadd.f32 %v2714, %v3162
        %v3223 = vadd.f32 %v2715, %v3165
        %v3224 = vadd.f32 %v2716, %v3170
        %v3225 = vadd.f32 %v2717, %v3173
        %v3226 = vadd.f32 %v2718, %v3178
        %v3227 = vadd.f32 %v2719, %v3181
        %v3228 = vadd.f32 %v2720, %v3186
        %v3229 = vadd.f32 %v2721, %v3189
        %v3230 = vadd.f32 %v2722, %v3194
        %v3231 = vadd.f32 %v2723, %v3197
        %v3232 = vadd.f32 %v2724, %v3202
        %v3233 = vadd.f32 %v2725, %v3205
        %v3234 = vadd.f32 %v2726, %v3210
        %v3235 = vadd.f32 %v2727, %v3213
        %v3236 = vld [vmem:[%s2449] sm:$0xe]
        %v3237 = vld [vmem:[%s2449 + $0xc] sm:$0xe]
        %v3238 = vld [vmem:[%s2449 + $0x18] sm:$0xe]
        %v3239 = vld [vmem:[%s2449 + $0x24] sm:$0xe]
        %v3240 = vld [vmem:[%s2449 + $0x30] sm:$0xe]
        %v3241 = vld [vmem:[%s2449 + $0x3c] sm:$0xe]
        %v3242 = vld [vmem:[%s2449 + $0x48] sm:$0xe]
        %v3243 = vld [vmem:[%s2449 + $0x54] sm:$0xe]
        %v3244 = vld [vmem:[%s2449 + $0x60] sm:$0xe]
        %v3245 = vld [vmem:[%s2449 + $0x6c] sm:$0xe]
        %v3276 = vrot.slane %v3236, 5
        %v3277 = vrot.slane %v3276, 4
        %v3278 = vrot.slane %v2729, 5
        %v3279 = vsel %vm1005, %v3277, %v3278
        %v3280 = vrot.slane %v3278, 4
        %v3281 = vrot.slane %v2730, 5
        %v3282 = vsel %vm1005, %v3280, %v3281
        %v3283 = vrot.slane %v3237, 5
        %v3284 = vrot.slane %v3283, 4
        %v3285 = vrot.slane %v2732, 5
        %v3286 = vsel %vm1005, %v3284, %v3285
        %v3287 = vrot.slane %v3285, 4
        %v3288 = vrot.slane %v2733, 5
        %v3289 = vsel %vm1005, %v3287, %v3288
        %v3290 = vrot.slane %v3238, 5
        %v3291 = vrot.slane %v3290, 4
        %v3292 = vrot.slane %v2735, 5
        %v3293 = vsel %vm1005, %v3291, %v3292
        %v3294 = vrot.slane %v3292, 4
        %v3295 = vrot.slane %v2736, 5
        %v3296 = vsel %vm1005, %v3294, %v3295
        %v3297 = vrot.slane %v3239, 5
        %v3298 = vrot.slane %v3297, 4
        %v3299 = vrot.slane %v2738, 5
        %v3300 = vsel %vm1005, %v3298, %v3299
        %v3301 = vrot.slane %v3299, 4
        %v3302 = vrot.slane %v2739, 5
        %v3303 = vsel %vm1005, %v3301, %v3302
        %v3304 = vrot.slane %v3240, 5
        %v3305 = vrot.slane %v3304, 4
        %v3306 = vrot.slane %v2741, 5
        %v3307 = vsel %vm1005, %v3305, %v3306
        %v3308 = vrot.slane %v3306, 4
        %v3309 = vrot.slane %v2742, 5
        %v3310 = vsel %vm1005, %v3308, %v3309
        %v3311 = vrot.slane %v3241, 5
        %v3312 = vrot.slane %v3311, 4
        %v3313 = vrot.slane %v2744, 5
        %v3314 = vsel %vm1005, %v3312, %v3313
        %v3315 = vrot.slane %v3313, 4
        %v3316 = vrot.slane %v2745, 5
        %v3317 = vsel %vm1005, %v3315, %v3316
        %v3318 = vrot.slane %v3242, 5
        %v3319 = vrot.slane %v3318, 4
        %v3320 = vrot.slane %v2747, 5
        %v3321 = vsel %vm1005, %v3319, %v3320
        %v3322 = vrot.slane %v3320, 4
        %v3323 = vrot.slane %v2748, 5
        %v3324 = vsel %vm1005, %v3322, %v3323
        %v3325 = vrot.slane %v3243, 5
        %v3326 = vrot.slane %v3325, 4
        %v3327 = vrot.slane %v2750, 5
        %v3328 = vsel %vm1005, %v3326, %v3327
        %v3329 = vrot.slane %v3327, 4
        %v3330 = vrot.slane %v2751, 5
        %v3331 = vsel %vm1005, %v3329, %v3330
        %v3332 = vrot.slane %v3244, 5
        %v3333 = vrot.slane %v3332, 4
        %v3334 = vrot.slane %v2753, 5
        %v3335 = vsel %vm1005, %v3333, %v3334
        %v3336 = vrot.slane %v3334, 4
        %v3337 = vrot.slane %v2754, 5
        %v3338 = vsel %vm1005, %v3336, %v3337
        %v3339 = vrot.slane %v3245, 5
        %v3340 = vrot.slane %v3339, 4
        %v3341 = vrot.slane %v2756, 5
        %v3342 = vsel %vm1005, %v3340, %v3341
        %v3343 = vrot.slane %v3341, 4
        %v3344 = vrot.slane %v2757, 5
        %v3345 = vsel %vm1005, %v3343, %v3344
        %s3346 = scalar_lea.vmem [#allocation4], 512
        %v3347 = vld [vmem:[%s3346] sm:$0xf]
        %v3348 = vld [vmem:[%s3346 + $0x4] sm:$0xf]
        %v3349 = vld [vmem:[%s3346 + $0x8] sm:$0xf]
        %v3350 = vld [vmem:[%s3346 + $0xc] sm:$0xf]
        %v3351 = vld [vmem:[%s3346 + $0x10] sm:$0xf]
        %v3352 = vld [vmem:[%s3346 + $0x14] sm:$0xf]
        %v3353 = vld [vmem:[%s3346 + $0x18] sm:$0xf]
        %v3354 = vld [vmem:[%s3346 + $0x1c] sm:$0xf]
        %v3355 = vld [vmem:[%s3346 + $0x20] sm:$0xf]
        %v3356 = vld [vmem:[%s3346 + $0x24] sm:$0xf]
        %v3357 = vld [vmem:[%s3346 + $0x28] sm:$0xf]
        %v3358 = vld [vmem:[%s3346 + $0x2c] sm:$0xf]
        %v3359 = vld [vmem:[%s3346 + $0x30] sm:$0xf]
        %v3360 = vld [vmem:[%s3346 + $0x34] sm:$0xf]
        %v3361 = vld [vmem:[%s3346 + $0x38] sm:$0xf]
        %v3362 = vld [vmem:[%s3346 + $0x3c] sm:$0xf]
        %v3363 = vunpack.c.l.b16 %v3279
        %v3364 = vunpack.c.l.b16 %v3282
        %v3365 = vunpack.c.l.b16 %v3286
        %v3366 = vunpack.c.l.b16 %v3289
        %v3367 = vunpack.c.l.b16 %v3293
        %v3368 = vunpack.c.l.b16 %v3296
        %v3369 = vunpack.c.l.b16 %v3300
        %v3370 = vunpack.c.l.b16 %v3303
        %v3371 = vunpack.c.l.b16 %v3307
        %v3372 = vunpack.c.l.b16 %v3310
        %v3373 = vunpack.c.l.b16 %v3314
        %v3374 = vunpack.c.l.b16 %v3317
        %v3375 = vunpack.c.l.b16 %v3321
        %v3376 = vunpack.c.l.b16 %v3324
        %v3377 = vunpack.c.l.b16 %v3328
        %v3378 = vunpack.c.l.b16 %v3331
        %v3379 = vunpack.c.l.b16 %v3335
        %v3380 = vunpack.c.l.b16 %v3338
        %v3381 = vunpack.c.l.b16 %v3342
        %v3382 = vunpack.c.l.b16 %v3345
        %v3383 = vpack.c.b16 %v3364, %v3363
        %v3384 = vpack.c.b16 %v3366, %v3365
        %v3385 = vpack.c.b16 %v3368, %v3367
        %v3386 = vpack.c.b16 %v3370, %v3369
        %v3387 = vpack.c.b16 %v3372, %v3371
        %v3388 = vpack.c.b16 %v3374, %v3373
        %v3389 = vpack.c.b16 %v3376, %v3375
        %v3390 = vpack.c.b16 %v3378, %v3377
        %v3391 = vpack.c.b16 %v3380, %v3379
        %v3392 = vpack.c.b16 %v3382, %v3381
        %v3419 = vunpack.c.l.b16 %v3347
        %v3420 = vunpack.c.l.b16 %v3348
        %v3421 = vunpack.c.l.b16 %v3349
        %v3422 = vunpack.c.l.b16 %v3350
        %v3423 = vunpack.c.l.b16 %v3351
        %v3424 = vunpack.c.l.b16 %v3352
        %v3425 = vunpack.c.l.b16 %v3353
        %v3426 = vunpack.c.l.b16 %v3354
        %v3427 = vunpack.c.l.b16 %v3355
        %v3428 = vunpack.c.l.b16 %v3356
        %v3429 = vunpack.c.l.b16 %v3357
        %v3430 = vunpack.c.l.b16 %v3358
        %v3431 = vunpack.c.l.b16 %v3359
        %v3432 = vunpack.c.l.b16 %v3360
        %v3433 = vunpack.c.l.b16 %v3361
        %v3434 = vunpack.c.l.b16 %v3362
        %v3435 = vpack.c.b16 %v3420, %v3419
        %v3436 = vpack.c.b16 %v3422, %v3421
        %v3437 = vpack.c.b16 %v3424, %v3423
        %v3438 = vpack.c.b16 %v3426, %v3425
        %v3439 = vpack.c.b16 %v3428, %v3427
        %v3440 = vpack.c.b16 %v3430, %v3429
        %v3441 = vpack.c.b16 %v3432, %v3431
        %v3442 = vpack.c.b16 %v3434, %v3433
        %3451 = vmatprep.subr.bf16.mxu0 0
        %3452 = vmatpush1.bf16.msra.mxu0 %v3435
        %3453 = vmatprep.subr.bf16.mxu0 0
        %3454 = vmatpush1.bf16.msra.mxu0 %v3436
        %3455 = vmatprep.subr.bf16.mxu0 0
        %3456 = vmatpush1.bf16.msra.mxu0 %v3437
        %3457 = vmatprep.subr.bf16.mxu0 0
        %3458 = vmatpush1.bf16.msra.mxu0 %v3438
        %3459 = vmatprep.subr.bf16.mxu0 0
        %3460 = vmatpush1.bf16.msra.mxu0 %v3439
        %3461 = vmatprep.subr.bf16.mxu0 0
        %3462 = vmatpush1.bf16.msra.mxu0 %v3440
        %3463 = vmatprep.subr.bf16.mxu0 0
        %3464 = vmatpush1.bf16.msra.mxu0 %v3441
        %3465 = vmatprep.subr.bf16.mxu0 0
        %3466 = vmatpush1.bf16.msra.mxu0 %v3442
        %3467 = vmatprep.subr.bf16.mxu0 0
        %3468 = vmatpush1.bf16.msra.mxu0 0
        %3469 = vmatprep.subr.bf16.mxu0 0
        %3470 = vmatpush1.bf16.msra.mxu0 0
        %3471 = vmatprep.subr.bf16.mxu0 0
        %3472 = vmatpush1.bf16.msra.mxu0 0
        %3473 = vmatprep.subr.bf16.mxu0 0
        %3474 = vmatpush1.bf16.msra.mxu0 0
        %3475 = vmatprep.subr.bf16.mxu0 0
        %3476 = vmatpush1.bf16.msra.mxu0 0
        %3477 = vmatprep.subr.bf16.mxu0 0
        %3478 = vmatpush1.bf16.msra.mxu0 0
        %3479 = vmatprep.subr.bf16.mxu0 0
        %3480 = vmatpush1.bf16.msra.mxu0 0
        %3481 = vmatprep.subr.bf16.mxu0 0
        %3482 = vmatpush1.bf16.msra.mxu0 0
        %3483 = vmatprep.mubr.bf16.mxu0 0
        %3484 = vmatmul.mubr.bf16.gmra.mrb[0].mxu0 %v3383
        %v3485 = vpop.f32.mrb[0].mxu0
        %v3486 = vadd.f32 0.0, %v3485
        %v3487 = vpop.f32.mrb[0].mxu0
        %v3488 = vpop.f32.mrb[0].mxu0
        %v3489 = vadd.f32 0.0, %v3488
        %v3490 = vpop.f32.mrb[0].mxu0
        %3491 = vmatprep.mubr.bf16.mxu0 0
        %3492 = vmatmul.mubr.bf16.gmra.mrb[0].mxu0 %v3384
        %v3493 = vpop.f32.mrb[0].mxu0
        %v3494 = vadd.f32 0.0, %v3493
        %v3495 = vpop.f32.mrb[0].mxu0
        %v3496 = vpop.f32.mrb[0].mxu0
        %v3497 = vadd.f32 0.0, %v3496
        %v3498 = vpop.f32.mrb[0].mxu0
        %3499 = vmatprep.mubr.bf16.mxu0 0
        %3500 = vmatmul.mubr.bf16.gmra.mrb[0].mxu0 %v3385
        %v3501 = vpop.f32.mrb[0].mxu0
        %v3502 = vadd.f32 0.0, %v3501
        %v3503 = vpop.f32.mrb[0].mxu0
        %v3504 = vpop.f32.mrb[0].mxu0
        %v3505 = vadd.f32 0.0, %v3504
        %v3506 = vpop.f32.mrb[0].mxu0
        %3507 = vmatprep.mubr.bf16.mxu0 0
        %3508 = vmatmul.mubr.bf16.gmra.mrb[0].mxu0 %v3386
        %v3509 = vpop.f32.mrb[0].mxu0
        %v3510 = vadd.f32 0.0, %v3509
        %v3511 = vpop.f32.mrb[0].mxu0
        %v3512 = vpop.f32.mrb[0].mxu0
        %v3513 = vadd.f32 0.0, %v3512
        %v3514 = vpop.f32.mrb[0].mxu0
        %3515 = vmatprep.mubr.bf16.mxu0 0
        %3516 = vmatmul.mubr.bf16.gmra.mrb[0].mxu0 %v3387
        %v3517 = vpop.f32.mrb[0].mxu0
        %v3518 = vadd.f32 0.0, %v3517
        %v3519 = vpop.f32.mrb[0].mxu0
        %v3520 = vpop.f32.mrb[0].mxu0
        %v3521 = vadd.f32 0.0, %v3520
        %v3522 = vpop.f32.mrb[0].mxu0
        %3523 = vmatprep.mubr.bf16.mxu0 0
        %3524 = vmatmul.mubr.bf16.gmra.mrb[0].mxu0 %v3388
        %v3525 = vpop.f32.mrb[0].mxu0
        %v3526 = vadd.f32 0.0, %v3525
        %v3527 = vpop.f32.mrb[0].mxu0
        %v3528 = vpop.f32.mrb[0].mxu0
        %v3529 = vadd.f32 0.0, %v3528
        %v3530 = vpop.f32.mrb[0].mxu0
        %3531 = vmatprep.mubr.bf16.mxu0 0
        %3532 = vmatmul.mubr.bf16.gmra.mrb[0].mxu0 %v3389
        %v3533 = vpop.f32.mrb[0].mxu0
        %v3534 = vadd.f32 0.0, %v3533
        %v3535 = vpop.f32.mrb[0].mxu0
        %v3536 = vpop.f32.mrb[0].mxu0
        %v3537 = vadd.f32 0.0, %v3536
        %v3538 = vpop.f32.mrb[0].mxu0
        %3539 = vmatprep.mubr.bf16.mxu0 0
        %3540 = vmatmul.mubr.bf16.gmra.mrb[0].mxu0 %v3390
        %v3541 = vpop.f32.mrb[0].mxu0
        %v3542 = vadd.f32 0.0, %v3541
        %v3543 = vpop.f32.mrb[0].mxu0
        %v3544 = vpop.f32.mrb[0].mxu0
        %v3545 = vadd.f32 0.0, %v3544
        %v3546 = vpop.f32.mrb[0].mxu0
        %3547 = vmatprep.mubr.bf16.mxu0 0
        %3548 = vmatmul.mubr.bf16.gmra.mrb[0].mxu0 %v3391
        %v3549 = vpop.f32.mrb[0].mxu0
        %v3550 = vadd.f32 0.0, %v3549
        %v3551 = vpop.f32.mrb[0].mxu0
        %v3552 = vpop.f32.mrb[0].mxu0
        %v3553 = vadd.f32 0.0, %v3552
        %v3554 = vpop.f32.mrb[0].mxu0
        %3555 = vmatprep.mubr.bf16.mxu0 0
        %3556 = vmatmul.mubr.bf16.gmra.mrb[0].mxu0 %v3392
        %v3557 = vpop.f32.mrb[0].mxu0
        %v3558 = vadd.f32 0.0, %v3557
        %v3559 = vpop.f32.mrb[0].mxu0
        %v3560 = vpop.f32.mrb[0].mxu0
        %v3561 = vadd.f32 0.0, %v3560
        %v3562 = vpop.f32.mrb[0].mxu0
        %3563 = vdwg.mxu0
        %v3564 = vadd.f32 %v3216, %v3486
        %v3565 = vadd.f32 %v3217, %v3489
        %v3566 = vadd.f32 %v3218, %v3494
        %v3567 = vadd.f32 %v3219, %v3497
        %v3568 = vadd.f32 %v3220, %v3502
        %v3569 = vadd.f32 %v3221, %v3505
        %v3570 = vadd.f32 %v3222, %v3510
        %v3571 = vadd.f32 %v3223, %v3513
        %v3572 = vadd.f32 %v3224, %v3518
        %v3573 = vadd.f32 %v3225, %v3521
        %v3574 = vadd.f32 %v3226, %v3526
        %v3575 = vadd.f32 %v3227, %v3529
        %v3576 = vadd.f32 %v3228, %v3534
        %v3577 = vadd.f32 %v3229, %v3537
        %v3578 = vadd.f32 %v3230, %v3542
        %v3579 = vadd.f32 %v3231, %v3545
        %v3580 = vadd.f32 %v3232, %v3550
        %v3581 = vadd.f32 %v3233, %v3553
        %v3582 = vadd.f32 %v3234, %v3558
        %v3583 = vadd.f32 %v3235, %v3561
        %v3584 = vld [vmem:[%s3] sm:$0x1]
        %v3586 = vlaneseq
        %v3587 = vshrl.u32 %v3586, 7
        %v3588 = vsub.s32 0, %v3587
        %v3589 = vrot.slane %v3584, %v3588
        %v3591 = vadd.f32 %v3564, %v3589
        %v3592 = vadd.f32 %v3565, %v3589
        %v3593 = vadd.f32 %v3566, %v3589
        %v3594 = vadd.f32 %v3567, %v3589
        %v3595 = vadd.f32 %v3568, %v3589
        %v3596 = vadd.f32 %v3569, %v3589
        %v3597 = vadd.f32 %v3570, %v3589
        %v3598 = vadd.f32 %v3571, %v3589
        %v3599 = vadd.f32 %v3572, %v3589
        %v3600 = vadd.f32 %v3573, %v3589
        %v3601 = vadd.f32 %v3574, %v3589
        %v3602 = vadd.f32 %v3575, %v3589
        %v3603 = vadd.f32 %v3576, %v3589
        %v3604 = vadd.f32 %v3577, %v3589
        %v3605 = vadd.f32 %v3578, %v3589
        %v3606 = vadd.f32 %v3579, %v3589
        %v3607 = vadd.f32 %v3580, %v3589
        %v3608 = vadd.f32 %v3581, %v3589
        %v3609 = vadd.f32 %v3582, %v3589
        %v3610 = vadd.f32 %v3583, %v3589
        %v3611 = vmax.f32 %v3591, 0.0
        %v3612 = vmax.f32 %v3592, 0.0
        %v3613 = vmax.f32 %v3593, 0.0
        %v3614 = vmax.f32 %v3594, 0.0
        %v3615 = vmax.f32 %v3595, 0.0
        %v3616 = vmax.f32 %v3596, 0.0
        %v3617 = vmax.f32 %v3597, 0.0
        %v3618 = vmax.f32 %v3598, 0.0
        %v3619 = vmax.f32 %v3599, 0.0
        %v3620 = vmax.f32 %v3600, 0.0
        %v3621 = vmax.f32 %v3601, 0.0
        %v3622 = vmax.f32 %v3602, 0.0
        %v3623 = vmax.f32 %v3603, 0.0
        %v3624 = vmax.f32 %v3604, 0.0
        %v3625 = vmax.f32 %v3605, 0.0
        %v3626 = vmax.f32 %v3606, 0.0
        %v3627 = vmax.f32 %v3607, 0.0
        %v3628 = vmax.f32 %v3608, 0.0
        %v3629 = vmax.f32 %v3609, 0.0
        %v3630 = vmax.f32 %v3610, 0.0
        %s3631 = ssub.s32 %s223, 1
        %v3632 = vstv %s3631
        %v3633 = vadd.s32 %v3632, 1
        %v3634 = vadd.s32 %v3632, 2
        %v3635 = vadd.s32 %v3632, 3
        %v3636 = vadd.s32 %v3632, 4
        %v3637 = vadd.s32 %v3632, 5
        %v3638 = vadd.s32 %v3632, 6
        %v3639 = vadd.s32 %v3632, 7
        %v3640 = vadd.s32 %v3632, 8
        %v3641 = vadd.s32 %v3632, 9
        %vm3642 = vcmp.ge.s32.totalorder %v3632, 0
        %vm3643 = vcmp.ge.s32.totalorder %v3633, 0
        %vm3644 = vcmp.ge.s32.totalorder %v3634, 0
        %vm3645 = vcmp.ge.s32.totalorder %v3635, 0
        %vm3646 = vcmp.ge.s32.totalorder %v3636, 0
        %vm3647 = vcmp.ge.s32.totalorder %v3637, 0
        %vm3648 = vcmp.ge.s32.totalorder %v3638, 0
        %vm3649 = vcmp.ge.s32.totalorder %v3639, 0
        %vm3650 = vcmp.ge.s32.totalorder %v3640, 0
        %vm3651 = vcmp.ge.s32.totalorder %v3641, 0
        %vm3652 = vcmp.lt.s32.totalorder %v3632, 16
        %vm3653 = vcmp.lt.s32.totalorder %v3633, 16
        %vm3654 = vcmp.lt.s32.totalorder %v3634, 16
        %vm3655 = vcmp.lt.s32.totalorder %v3635, 16
        %vm3656 = vcmp.lt.s32.totalorder %v3636, 16
        %vm3657 = vcmp.lt.s32.totalorder %v3637, 16
        %vm3658 = vcmp.lt.s32.totalorder %v3638, 16
        %vm3659 = vcmp.lt.s32.totalorder %v3639, 16
        %vm3660 = vcmp.lt.s32.totalorder %v3640, 16
        %vm3661 = vcmp.lt.s32.totalorder %v3641, 16
        %vm3662 = vmand %vm3642, %vm3652
        %vm3663 = vmand %vm3643, %vm3653
        %vm3664 = vmand %vm3644, %vm3654
        %vm3665 = vmand %vm3645, %vm3655
        %vm3666 = vmand %vm3646, %vm3656
        %vm3667 = vmand %vm3647, %vm3657
        %vm3668 = vmand %vm3648, %vm3658
        %vm3669 = vmand %vm3649, %vm3659
        %vm3670 = vmand %vm3650, %vm3660
        %vm3671 = vmand %vm3651, %vm3661
        %v3672 = vsel %vm3662, 1, 0
        %v3673 = vsel %vm3663, 1, 0
        %v3674 = vsel %vm3664, 1, 0
        %v3675 = vsel %vm3665, 1, 0
        %v3676 = vsel %vm3666, 1, 0
        %v3677 = vsel %vm3667, 1, 0
        %v3678 = vsel %vm3668, 1, 0
        %v3679 = vsel %vm3669, 1, 0
        %v3680 = vsel %vm3670, 1, 0
        %v3681 = vsel %vm3671, 1, 0
        %vm3682 = vcmp.eq.s32.totalorder %v3672, 1
        %vm3683 = vcmp.eq.s32.totalorder %v3673, 1
        %vm3684 = vcmp.eq.s32.totalorder %v3674, 1
        %vm3685 = vcmp.eq.s32.totalorder %v3675, 1
        %vm3686 = vcmp.eq.s32.totalorder %v3676, 1
        %vm3687 = vcmp.eq.s32.totalorder %v3677, 1
        %vm3688 = vcmp.eq.s32.totalorder %v3678, 1
        %vm3689 = vcmp.eq.s32.totalorder %v3679, 1
        %vm3690 = vcmp.eq.s32.totalorder %v3680, 1
        %vm3691 = vcmp.eq.s32.totalorder %v3681, 1
        %v3692 = vsel %vm3682, %v3611, 0.0
        %v3693 = vsel %vm3682, %v3612, 0.0
        %v3694 = vsel %vm3683, %v3613, 0.0
        %v3695 = vsel %vm3683, %v3614, 0.0
        %v3696 = vsel %vm3684, %v3615, 0.0
        %v3697 = vsel %vm3684, %v3616, 0.0
        %v3698 = vsel %vm3685, %v3617, 0.0
        %v3699 = vsel %vm3685, %v3618, 0.0
        %v3700 = vsel %vm3686, %v3619, 0.0
        %v3701 = vsel %vm3686, %v3620, 0.0
        %v3702 = vsel %vm3687, %v3621, 0.0
        %v3703 = vsel %vm3687, %v3622, 0.0
        %v3704 = vsel %vm3688, %v3623, 0.0
        %v3705 = vsel %vm3688, %v3624, 0.0
        %v3706 = vsel %vm3689, %v3625, 0.0
        %v3707 = vsel %vm3689, %v3626, 0.0
        %v3708 = vsel %vm3690, %v3627, 0.0
        %v3709 = vsel %vm3690, %v3628, 0.0
        %v3710 = vsel %vm3691, %v3629, 0.0
        %v3711 = vsel %vm3691, %v3630, 0.0
        %vm3732 = vcmask 1040384
        %v3733 = vrot.slane %v3692, 7
        %v3734 = vrot.slane %v3693, 7
        %v3735 = vsel %vm3732, %v3733, %v3734
        %v3736 = vrot.slane %v3694, 7
        %v3737 = vrot.slane %v3695, 7
        %v3738 = vsel %vm3732, %v3736, %v3737
        %v3739 = vrot.slane %v3696, 7
        %v3740 = vrot.slane %v3697, 7
        %v3741 = vsel %vm3732, %v3739, %v3740
        %v3742 = vrot.slane %v3698, 7
        %v3743 = vrot.slane %v3699, 7
        %v3744 = vsel %vm3732, %v3742, %v3743
        %v3745 = vrot.slane %v3700, 7
        %v3746 = vrot.slane %v3701, 7
        %v3747 = vsel %vm3732, %v3745, %v3746
        %v3748 = vrot.slane %v3702, 7
        %v3749 = vrot.slane %v3703, 7
        %v3750 = vsel %vm3732, %v3748, %v3749
        %v3751 = vrot.slane %v3704, 7
        %v3752 = vrot.slane %v3705, 7
        %v3753 = vsel %vm3732, %v3751, %v3752
        %v3754 = vrot.slane %v3706, 7
        %v3755 = vrot.slane %v3707, 7
        %v3756 = vsel %vm3732, %v3754, %v3755
        %v3757 = vrot.slane %v3708, 7
        %v3758 = vrot.slane %v3709, 7
        %v3759 = vsel %vm3732, %v3757, %v3758
        %v3760 = vrot.slane %v3710, 7
        %v3761 = vrot.slane %v3711, 7
        %v3762 = vsel %vm3732, %v3760, %v3761
        %v3793 = vsel %vm3732, 0.0, %v3733
        %v3794 = vsel %vm3732, 0.0, %v3736
        %v3795 = vsel %vm3732, 0.0, %v3739
        %v3796 = vsel %vm3732, 0.0, %v3742
        %v3797 = vsel %vm3732, 0.0, %v3745
        %v3798 = vsel %vm3732, 0.0, %v3748
        %v3799 = vsel %vm3732, 0.0, %v3751
        %v3800 = vsel %vm3732, 0.0, %v3754
        %v3801 = vsel %vm3732, 0.0, %v3757
        %v3802 = vsel %vm3732, 0.0, %v3760
        %v3803 = vsel %vm3732, %v3734, 0.0
        %v3804 = vsel %vm3732, %v3737, 0.0
        %v3805 = vsel %vm3732, %v3740, 0.0
        %v3806 = vsel %vm3732, %v3743, 0.0
        %v3807 = vsel %vm3732, %v3746, 0.0
        %v3808 = vsel %vm3732, %v3749, 0.0
        %v3809 = vsel %vm3732, %v3752, 0.0
        %v3810 = vsel %vm3732, %v3755, 0.0
        %v3811 = vsel %vm3732, %v3758, 0.0
        %v3812 = vsel %vm3732, %v3761, 0.0
        %v3813 = vpack.c.bf16 %v3735, %v3793
        %v3814 = vpack.c.bf16 %v3803, %v3803
        %v3815 = vpack.c.bf16 %v3738, %v3794
        %v3816 = vpack.c.bf16 %v3804, %v3804
        %v3817 = vpack.c.bf16 %v3741, %v3795
        %v3818 = vpack.c.bf16 %v3805, %v3805
        %v3819 = vpack.c.bf16 %v3744, %v3796
        %v3820 = vpack.c.bf16 %v3806, %v3806
        %v3821 = vpack.c.bf16 %v3747, %v3797
        %v3822 = vpack.c.bf16 %v3807, %v3807
        %v3823 = vpack.c.bf16 %v3750, %v3798
        %v3824 = vpack.c.bf16 %v3808, %v3808
        %v3825 = vpack.c.bf16 %v3753, %v3799
        %v3826 = vpack.c.bf16 %v3809, %v3809
        %v3827 = vpack.c.bf16 %v3756, %v3800
        %v3828 = vpack.c.bf16 %v3810, %v3810
        %v3829 = vpack.c.bf16 %v3759, %v3801
        %v3830 = vpack.c.bf16 %v3811, %v3811
        %v3831 = vpack.c.bf16 %v3762, %v3802
        %v3832 = vpack.c.bf16 %v3812, %v3812
        %v3833 = vld [vmem:[#allocation7] sm:$0xf]
        %v3834 = vld [vmem:[#allocation7 + $0x4] sm:$0xf]
        %v3835 = vld [vmem:[#allocation7 + $0x8] sm:$0xf]
        %v3836 = vld [vmem:[#allocation7 + $0xc] sm:$0xf]
        %v3837 = vld [vmem:[#allocation7 + $0x10] sm:$0xf]
        %v3838 = vld [vmem:[#allocation7 + $0x14] sm:$0xf]
        %v3839 = vld [vmem:[#allocation7 + $0x18] sm:$0xf]
        %v3840 = vld [vmem:[#allocation7 + $0x1c] sm:$0xf]
        %v3841 = vld [vmem:[#allocation7 + $0x20] sm:$0xf]
        %v3842 = vld [vmem:[#allocation7 + $0x24] sm:$0xf]
        %v3843 = vld [vmem:[#allocation7 + $0x28] sm:$0xf]
        %v3844 = vld [vmem:[#allocation7 + $0x2c] sm:$0xf]
        %v3845 = vld [vmem:[#allocation7 + $0x30] sm:$0xf]
        %v3846 = vld [vmem:[#allocation7 + $0x34] sm:$0xf]
        %v3847 = vld [vmem:[#allocation7 + $0x38] sm:$0xf]
        %v3848 = vld [vmem:[#allocation7 + $0x3c] sm:$0xf]
        %vm3849 = vsmask.f32 7424
        %v3851 = vshrl.u32 %v3813, 16
        %v3853 = vshll.u32 %v3813, 16
        %v3855 = vrot.slane %v3853, 1
        %v3856 = vor.u32 %v3851, %v3855
        %v3858 = vshll.u32 %v3814, 16
        %v3860 = vrot.slane %v3858, 1
        %v3861 = vsel %vm3849, %v3856, %v3860
        %v3863 = vshrl.u32 %v3815, 16
        %v3865 = vshll.u32 %v3815, 16
        %v3867 = vrot.slane %v3865, 1
        %v3868 = vor.u32 %v3863, %v3867
        %v3870 = vshll.u32 %v3816, 16
        %v3872 = vrot.slane %v3870, 1
        %v3873 = vsel %vm3849, %v3868, %v3872
        %v3875 = vshrl.u32 %v3817, 16
        %v3877 = vshll.u32 %v3817, 16
        %v3879 = vrot.slane %v3877, 1
        %v3880 = vor.u32 %v3875, %v3879
        %v3882 = vshll.u32 %v3818, 16
        %v3884 = vrot.slane %v3882, 1
        %v3885 = vsel %vm3849, %v3880, %v3884
        %v3887 = vshrl.u32 %v3819, 16
        %v3889 = vshll.u32 %v3819, 16
        %v3891 = vrot.slane %v3889, 1
        %v3892 = vor.u32 %v3887, %v3891
        %v3894 = vshll.u32 %v3820, 16
        %v3896 = vrot.slane %v3894, 1
        %v3897 = vsel %vm3849, %v3892, %v3896
        %v3899 = vshrl.u32 %v3821, 16
        %v3901 = vshll.u32 %v3821, 16
        %v3903 = vrot.slane %v3901, 1
        %v3904 = vor.u32 %v3899, %v3903
        %v3906 = vshll.u32 %v3822, 16
        %v3908 = vrot.slane %v3906, 1
        %v3909 = vsel %vm3849, %v3904, %v3908
        %v3911 = vshrl.u32 %v3823, 16
        %v3913 = vshll.u32 %v3823, 16
        %v3915 = vrot.slane %v3913, 1
        %v3916 = vor.u32 %v3911, %v3915
        %v3918 = vshll.u32 %v3824, 16
        %v3920 = vrot.slane %v3918, 1
        %v3921 = vsel %vm3849, %v3916, %v3920
        %v3923 = vshrl.u32 %v3825, 16
        %v3925 = vshll.u32 %v3825, 16
        %v3927 = vrot.slane %v3925, 1
        %v3928 = vor.u32 %v3923, %v3927
        %v3930 = vshll.u32 %v3826, 16
        %v3932 = vrot.slane %v3930, 1
        %v3933 = vsel %vm3849, %v3928, %v3932
        %v3935 = vshrl.u32 %v3827, 16
        %v3937 = vshll.u32 %v3827, 16
        %v3939 = vrot.slane %v3937, 1
        %v3940 = vor.u32 %v3935, %v3939
        %v3942 = vshll.u32 %v3828, 16
        %v3944 = vrot.slane %v3942, 1
        %v3945 = vsel %vm3849, %v3940, %v3944
        %s3954 = scalar_lea.vmem [#allocation7], 64
        %v3955 = vld [vmem:[%s3954] sm:$0xf]
        %v3956 = vld [vmem:[%s3954 + $0x4] sm:$0xf]
        %v3957 = vld [vmem:[%s3954 + $0x8] sm:$0xf]
        %v3958 = vld [vmem:[%s3954 + $0xc] sm:$0xf]
        %v3959 = vld [vmem:[%s3954 + $0x10] sm:$0xf]
        %v3960 = vld [vmem:[%s3954 + $0x14] sm:$0xf]
        %v3961 = vld [vmem:[%s3954 + $0x18] sm:$0xf]
        %v3962 = vld [vmem:[%s3954 + $0x1c] sm:$0xf]
        %v3963 = vld [vmem:[%s3954 + $0x20] sm:$0xf]
        %v3964 = vld [vmem:[%s3954 + $0x24] sm:$0xf]
        %v3965 = vld [vmem:[%s3954 + $0x28] sm:$0xf]
        %v3966 = vld [vmem:[%s3954 + $0x2c] sm:$0xf]
        %v3967 = vld [vmem:[%s3954 + $0x30] sm:$0xf]
        %v3968 = vld [vmem:[%s3954 + $0x34] sm:$0xf]
        %v3969 = vld [vmem:[%s3954 + $0x38] sm:$0xf]
        %v3970 = vld [vmem:[%s3954 + $0x3c] sm:$0xf]
        %v3987 = vunpack.c.l.b16 %v3955
        %v3988 = vunpack.c.l.b16 %v3956
        %v3989 = vunpack.c.l.b16 %v3957
        %v3990 = vunpack.c.l.b16 %v3958
        %v3991 = vunpack.c.l.b16 %v3959
        %v3992 = vunpack.c.l.b16 %v3960
        %v3993 = vunpack.c.l.b16 %v3961
        %v3994 = vunpack.c.l.b16 %v3962
        %v3995 = vunpack.c.l.b16 %v3963
        %v3996 = vunpack.c.l.b16 %v3964
        %v3997 = vunpack.c.l.b16 %v3965
        %v3998 = vunpack.c.l.b16 %v3966
        %v3999 = vunpack.c.l.b16 %v3967
        %v4000 = vunpack.c.l.b16 %v3968
        %v4001 = vunpack.c.l.b16 %v3969
        %v4002 = vunpack.c.l.b16 %v3970
        %v4003 = vpack.c.b16 %v3988, %v3987
        %v4004 = vpack.c.b16 %v3990, %v3989
        %v4005 = vpack.c.b16 %v3992, %v3991
        %v4006 = vpack.c.b16 %v3994, %v3993
        %v4007 = vpack.c.b16 %v3996, %v3995
        %v4008 = vpack.c.b16 %v3998, %v3997
        %v4009 = vpack.c.b16 %v4000, %v3999
        %v4010 = vpack.c.b16 %v4002, %v4001
        %4019 = vmatprep.subr.bf16.mxu0 0
        %4020 = vmatpush1.bf16.msra.mxu0 %v4003
        %4021 = vmatprep.subr.bf16.mxu0 0
        %4022 = vmatpush1.bf16.msra.mxu0 %v4004
        %4023 = vmatprep.subr.bf16.mxu0 0
        %4024 = vmatpush1.bf16.msra.mxu0 %v4005
        %4025 = vmatprep.subr.bf16.mxu0 0
        %4026 = vmatpush1.bf16.msra.mxu0 %v4006
        %4027 = vmatprep.subr.bf16.mxu0 0
        %4028 = vmatpush1.bf16.msra.mxu0 %v4007
        %4029 = vmatprep.subr.bf16.mxu0 0
        %4030 = vmatpush1.bf16.msra.mxu0 %v4008
        %4031 = vmatprep.subr.bf16.mxu0 0
        %4032 = vmatpush1.bf16.msra.mxu0 %v4009
        %4033 = vmatprep.subr.bf16.mxu0 0
        %4034 = vmatpush1.bf16.msra.mxu0 %v4010
        %4035 = vmatprep.subr.bf16.mxu0 0
        %4036 = vmatpush1.bf16.msra.mxu0 0
        %4037 = vmatprep.subr.bf16.mxu0 0
        %4038 = vmatpush1.bf16.msra.mxu0 0
        %4039 = vmatprep.subr.bf16.mxu0 0
        %4040 = vmatpush1.bf16.msra.mxu0 0
        %4041 = vmatprep.subr.bf16.mxu0 0
        %4042 = vmatpush1.bf16.msra.mxu0 0
        %4043 = vmatprep.subr.bf16.mxu0 0
        %4044 = vmatpush1.bf16.msra.mxu0 0
        %4045 = vmatprep.subr.bf16.mxu0 0
        %4046 = vmatpush1.bf16.msra.mxu0 0
        %4047 = vmatprep.subr.bf16.mxu0 0
        %4048 = vmatpush1.bf16.msra.mxu0 0
        %4049 = vmatprep.subr.bf16.mxu0 0
        %4050 = vmatpush1.bf16.msra.mxu0 0
        %4051 = vmatprep.mubr.bf16.mxu0 0
        %4052 = vmatmul.mubr.bf16.gmra.mrb[0].mxu0 %v3861
        %v4053 = vpop.f32.mrb[0].mxu0
        %v4054 = vadd.f32 0.0, %v4053
        %v4055 = vpop.f32.mrb[0].mxu0
        %v4056 = vpop.f32.mrb[0].mxu0
        %v4057 = vadd.f32 0.0, %v4056
        %v4058 = vpop.f32.mrb[0].mxu0
        %4059 = vmatprep.mubr.bf16.mxu0 0
        %4060 = vmatmul.mubr.bf16.gmra.mrb[0].mxu0 %v3873
        %v4061 = vpop.f32.mrb[0].mxu0
        %v4062 = vadd.f32 0.0, %v4061
        %v4063 = vpop.f32.mrb[0].mxu0
        %v4064 = vpop.f32.mrb[0].mxu0
        %v4065 = vadd.f32 0.0, %v4064
        %v4066 = vpop.f32.mrb[0].mxu0
        %4067 = vmatprep.mubr.bf16.mxu0 0
        %4068 = vmatmul.mubr.bf16.gmra.mrb[0].mxu0 %v3885
        %v4069 = vpop.f32.mrb[0].mxu0
        %v4070 = vadd.f32 0.0, %v4069
        %v4071 = vpop.f32.mrb[0].mxu0
        %v4072 = vpop.f32.mrb[0].mxu0
        %v4073 = vadd.f32 0.0, %v4072
        %v4074 = vpop.f32.mrb[0].mxu0
        %4075 = vmatprep.mubr.bf16.mxu0 0
        %4076 = vmatmul.mubr.bf16.gmra.mrb[0].mxu0 %v3897
        %v4077 = vpop.f32.mrb[0].mxu0
        %v4078 = vadd.f32 0.0, %v4077
        %v4079 = vpop.f32.mrb[0].mxu0
        %v4080 = vpop.f32.mrb[0].mxu0
        %v4081 = vadd.f32 0.0, %v4080
        %v4082 = vpop.f32.mrb[0].mxu0
        %4083 = vmatprep.mubr.bf16.mxu0 0
        %4084 = vmatmul.mubr.bf16.gmra.mrb[0].mxu0 %v3909
        %v4085 = vpop.f32.mrb[0].mxu0
        %v4086 = vadd.f32 0.0, %v4085
        %v4087 = vpop.f32.mrb[0].mxu0
        %v4088 = vpop.f32.mrb[0].mxu0
        %v4089 = vadd.f32 0.0, %v4088
        %v4090 = vpop.f32.mrb[0].mxu0
        %4091 = vmatprep.mubr.bf16.mxu0 0
        %4092 = vmatmul.mubr.bf16.gmra.mrb[0].mxu0 %v3921
        %v4093 = vpop.f32.mrb[0].mxu0
        %v4094 = vadd.f32 0.0, %v4093
        %v4095 = vpop.f32.mrb[0].mxu0
        %v4096 = vpop.f32.mrb[0].mxu0
        %v4097 = vadd.f32 0.0, %v4096
        %v4098 = vpop.f32.mrb[0].mxu0
        %4099 = vmatprep.mubr.bf16.mxu0 0
        %4100 = vmatmul.mubr.bf16.gmra.mrb[0].mxu0 %v3933
        %v4101 = vpop.f32.mrb[0].mxu0
        %v4102 = vadd.f32 0.0, %v4101
        %v4103 = vpop.f32.mrb[0].mxu0
        %v4104 = vpop.f32.mrb[0].mxu0
        %v4105 = vadd.f32 0.0, %v4104
        %v4106 = vpop.f32.mrb[0].mxu0
        %4107 = vmatprep.mubr.bf16.mxu0 0
        %4108 = vmatmul.mubr.bf16.gmra.mrb[0].mxu0 %v3945
        %v4109 = vpop.f32.mrb[0].mxu0
        %v4110 = vadd.f32 0.0, %v4109
        %v4111 = vpop.f32.mrb[0].mxu0
        %v4112 = vpop.f32.mrb[0].mxu0
        %v4113 = vadd.f32 0.0, %v4112
        %v4114 = vpop.f32.mrb[0].mxu0
        %4115 = vdwg.mxu0
        %v4132 = vunpack.c.l.b16 %v3833
        %v4133 = vunpack.c.l.b16 %v3834
        %v4134 = vunpack.c.l.b16 %v3835
        %v4135 = vunpack.c.l.b16 %v3836
        %v4136 = vunpack.c.l.b16 %v3837
        %v4137 = vunpack.c.l.b16 %v3838
        %v4138 = vunpack.c.l.b16 %v3839
        %v4139 = vunpack.c.l.b16 %v3840
        %v4140 = vunpack.c.l.b16 %v3841
        %v4141 = vunpack.c.l.b16 %v3842
        %v4142 = vunpack.c.l.b16 %v3843
        %v4143 = vunpack.c.l.b16 %v3844
        %v4144 = vunpack.c.l.b16 %v3845
        %v4145 = vunpack.c.l.b16 %v3846
        %v4146 = vunpack.c.l.b16 %v3847
        %v4147 = vunpack.c.l.b16 %v3848
        %v4148 = vpack.c.b16 %v4133, %v4132
        %v4149 = vpack.c.b16 %v4135, %v4134
        %v4150 = vpack.c.b16 %v4137, %v4136
        %v4151 = vpack.c.b16 %v4139, %v4138
        %v4152 = vpack.c.b16 %v4141, %v4140
        %v4153 = vpack.c.b16 %v4143, %v4142
        %v4154 = vpack.c.b16 %v4145, %v4144
        %v4155 = vpack.c.b16 %v4147, %v4146
        %4164 = vmatprep.subr.bf16.mxu0 0
        %4165 = vmatpush1.bf16.msra.mxu0 %v4148
        %4166 = vmatprep.subr.bf16.mxu0 0
        %4167 = vmatpush1.bf16.msra.mxu0 %v4149
        %4168 = vmatprep.subr.bf16.mxu0 0
        %4169 = vmatpush1.bf16.msra.mxu0 %v4150
        %4170 = vmatprep.subr.bf16.mxu0 0
        %4171 = vmatpush1.bf16.msra.mxu0 %v4151
        %4172 = vmatprep.subr.bf16.mxu0 0
        %4173 = vmatpush1.bf16.msra.mxu0 %v4152
        %4174 = vmatprep.subr.bf16.mxu0 0
        %4175 = vmatpush1.bf16.msra.mxu0 %v4153
        %4176 = vmatprep.subr.bf16.mxu0 0
        %4177 = vmatpush1.bf16.msra.mxu0 %v4154
        %4178 = vmatprep.subr.bf16.mxu0 0
        %4179 = vmatpush1.bf16.msra.mxu0 %v4155
        %4180 = vmatprep.subr.bf16.mxu0 0
        %4181 = vmatpush1.bf16.msra.mxu0 0
        %4182 = vmatprep.subr.bf16.mxu0 0
        %4183 = vmatpush1.bf16.msra.mxu0 0
        %4184 = vmatprep.subr.bf16.mxu0 0
        %4185 = vmatpush1.bf16.msra.mxu0 0
        %4186 = vmatprep.subr.bf16.mxu0 0
        %4187 = vmatpush1.bf16.msra.mxu0 0
        %4188 = vmatprep.subr.bf16.mxu0 0
        %4189 = vmatpush1.bf16.msra.mxu0 0
        %4190 = vmatprep.subr.bf16.mxu0 0
        %4191 = vmatpush1.bf16.msra.mxu0 0
        %4192 = vmatprep.subr.bf16.mxu0 0
        %4193 = vmatpush1.bf16.msra.mxu0 0
        %4194 = vmatprep.subr.bf16.mxu0 0
        %4195 = vmatpush1.bf16.msra.mxu0 0
        %4196 = vmatprep.mubr.bf16.mxu0 0
        %4197 = vmatmul.mubr.bf16.gmra.mrb[0].mxu0 %v3813
        %v4198 = vpop.f32.mrb[0].mxu0
        %v4199 = vadd.f32 %v4054, %v4198
        %v4200 = vpop.f32.mrb[0].mxu0
        %v4201 = vpop.f32.mrb[0].mxu0
        %v4202 = vadd.f32 %v4057, %v4201
        %v4203 = vpop.f32.mrb[0].mxu0
        %4204 = vmatprep.mubr.bf16.mxu0 0
        %4205 = vmatmul.mubr.bf16.gmra.mrb[0].mxu0 %v3815
        %v4206 = vpop.f32.mrb[0].mxu0
        %v4207 = vadd.f32 %v4062, %v4206
        %v4208 = vpop.f32.mrb[0].mxu0
        %v4209 = vpop.f32.mrb[0].mxu0
        %v4210 = vadd.f32 %v4065, %v4209
        %v4211 = vpop.f32.mrb[0].mxu0
        %4212 = vmatprep.mubr.bf16.mxu0 0
        %4213 = vmatmul.mubr.bf16.gmra.mrb[0].mxu0 %v3817
        %v4214 = vpop.f32.mrb[0].mxu0
        %v4215 = vadd.f32 %v4070, %v4214
        %v4216 = vpop.f32.mrb[0].mxu0
        %v4217 = vpop.f32.mrb[0].mxu0
        %v4218 = vadd.f32 %v4073, %v4217
        %v4219 = vpop.f32.mrb[0].mxu0
        %4220 = vmatprep.mubr.bf16.mxu0 0
        %4221 = vmatmul.mubr.bf16.gmra.mrb[0].mxu0 %v3819
        %v4222 = vpop.f32.mrb[0].mxu0
        %v4223 = vadd.f32 %v4078, %v4222
        %v4224 = vpop.f32.mrb[0].mxu0
        %v4225 = vpop.f32.mrb[0].mxu0
        %v4226 = vadd.f32 %v4081, %v4225
        %v4227 = vpop.f32.mrb[0].mxu0
        %4228 = vmatprep.mubr.bf16.mxu0 0
        %4229 = vmatmul.mubr.bf16.gmra.mrb[0].mxu0 %v3821
        %v4230 = vpop.f32.mrb[0].mxu0
        %v4231 = vadd.f32 %v4086, %v4230
        %v4232 = vpop.f32.mrb[0].mxu0
        %v4233 = vpop.f32.mrb[0].mxu0
        %v4234 = vadd.f32 %v4089, %v4233
        %v4235 = vpop.f32.mrb[0].mxu0
        %4236 = vmatprep.mubr.bf16.mxu0 0
        %4237 = vmatmul.mubr.bf16.gmra.mrb[0].mxu0 %v3823
        %v4238 = vpop.f32.mrb[0].mxu0
        %v4239 = vadd.f32 %v4094, %v4238
        %v4240 = vpop.f32.mrb[0].mxu0
        %v4241 = vpop.f32.mrb[0].mxu0
        %v4242 = vadd.f32 %v4097, %v4241
        %v4243 = vpop.f32.mrb[0].mxu0
        %4244 = vmatprep.mubr.bf16.mxu0 0
        %4245 = vmatmul.mubr.bf16.gmra.mrb[0].mxu0 %v3825
        %v4246 = vpop.f32.mrb[0].mxu0
        %v4247 = vadd.f32 %v4102, %v4246
        %v4248 = vpop.f32.mrb[0].mxu0
        %v4249 = vpop.f32.mrb[0].mxu0
        %v4250 = vadd.f32 %v4105, %v4249
        %v4251 = vpop.f32.mrb[0].mxu0
        %4252 = vmatprep.mubr.bf16.mxu0 0
        %4253 = vmatmul.mubr.bf16.gmra.mrb[0].mxu0 %v3827
        %v4254 = vpop.f32.mrb[0].mxu0
        %v4255 = vadd.f32 %v4110, %v4254
        %v4256 = vpop.f32.mrb[0].mxu0
        %v4257 = vpop.f32.mrb[0].mxu0
        %v4258 = vadd.f32 %v4113, %v4257
        %v4259 = vpop.f32.mrb[0].mxu0
        %4260 = vdwg.mxu0
        %vm4277 = vcmask 1046528
        %v4278 = vrot.slane %v3813, 1
        %v4279 = vrot.slane %v3814, 1
        %v4280 = vsel %vm4277, %v4278, %v4279
        %v4281 = vrot.slane %v3815, 1
        %v4282 = vrot.slane %v3816, 1
        %v4283 = vsel %vm4277, %v4281, %v4282
        %v4284 = vrot.slane %v3817, 1
        %v4285 = vrot.slane %v3818, 1
        %v4286 = vsel %vm4277, %v4284, %v4285
        %v4287 = vrot.slane %v3819, 1
        %v4288 = vrot.slane %v3820, 1
        %v4289 = vsel %vm4277, %v4287, %v4288
        %v4290 = vrot.slane %v3821, 1
        %v4291 = vrot.slane %v3822, 1
        %v4292 = vsel %vm4277, %v4290, %v4291
        %v4293 = vrot.slane %v3823, 1
        %v4294 = vrot.slane %v3824, 1
        %v4295 = vsel %vm4277, %v4293, %v4294
        %v4296 = vrot.slane %v3825, 1
        %v4297 = vrot.slane %v3826, 1
        %v4298 = vsel %vm4277, %v4296, %v4297
        %v4299 = vrot.slane %v3827, 1
        %v4300 = vrot.slane %v3828, 1
        %v4301 = vsel %vm4277, %v4299, %v4300
        %s4310 = scalar_lea.vmem [#allocation7], 128
        %v4311 = vld [vmem:[%s4310] sm:$0xf]
        %v4312 = vld [vmem:[%s4310 + $0x4] sm:$0xf]
        %v4313 = vld [vmem:[%s4310 + $0x8] sm:$0xf]
        %v4314 = vld [vmem:[%s4310 + $0xc] sm:$0xf]
        %v4315 = vld [vmem:[%s4310 + $0x10] sm:$0xf]
        %v4316 = vld [vmem:[%s4310 + $0x14] sm:$0xf]
        %v4317 = vld [vmem:[%s4310 + $0x18] sm:$0xf]
        %v4318 = vld [vmem:[%s4310 + $0x1c] sm:$0xf]
        %v4319 = vld [vmem:[%s4310 + $0x20] sm:$0xf]
        %v4320 = vld [vmem:[%s4310 + $0x24] sm:$0xf]
        %v4321 = vld [vmem:[%s4310 + $0x28] sm:$0xf]
        %v4322 = vld [vmem:[%s4310 + $0x2c] sm:$0xf]
        %v4323 = vld [vmem:[%s4310 + $0x30] sm:$0xf]
        %v4324 = vld [vmem:[%s4310 + $0x34] sm:$0xf]
        %v4325 = vld [vmem:[%s4310 + $0x38] sm:$0xf]
        %v4326 = vld [vmem:[%s4310 + $0x3c] sm:$0xf]
        %v4343 = vunpack.c.l.b16 %v4311
        %v4344 = vunpack.c.l.b16 %v4312
        %v4345 = vunpack.c.l.b16 %v4313
        %v4346 = vunpack.c.l.b16 %v4314
        %v4347 = vunpack.c.l.b16 %v4315
        %v4348 = vunpack.c.l.b16 %v4316
        %v4349 = vunpack.c.l.b16 %v4317
        %v4350 = vunpack.c.l.b16 %v4318
        %v4351 = vunpack.c.l.b16 %v4319
        %v4352 = vunpack.c.l.b16 %v4320
        %v4353 = vunpack.c.l.b16 %v4321
        %v4354 = vunpack.c.l.b16 %v4322
        %v4355 = vunpack.c.l.b16 %v4323
        %v4356 = vunpack.c.l.b16 %v4324
        %v4357 = vunpack.c.l.b16 %v4325
        %v4358 = vunpack.c.l.b16 %v4326
        %v4359 = vpack.c.b16 %v4344, %v4343
        %v4360 = vpack.c.b16 %v4346, %v4345
        %v4361 = vpack.c.b16 %v4348, %v4347
        %v4362 = vpack.c.b16 %v4350, %v4349
        %v4363 = vpack.c.b16 %v4352, %v4351
        %v4364 = vpack.c.b16 %v4354, %v4353
        %v4365 = vpack.c.b16 %v4356, %v4355
        %v4366 = vpack.c.b16 %v4358, %v4357
        %4375 = vmatprep.subr.bf16.mxu0 0
        %4376 = vmatpush1.bf16.msra.mxu0 %v4359
        %4377 = vmatprep.subr.bf16.mxu0 0
        %4378 = vmatpush1.bf16.msra.mxu0 %v4360
        %4379 = vmatprep.subr.bf16.mxu0 0
        %4380 = vmatpush1.bf16.msra.mxu0 %v4361
        %4381 = vmatprep.subr.bf16.mxu0 0
        %4382 = vmatpush1.bf16.msra.mxu0 %v4362
        %4383 = vmatprep.subr.bf16.mxu0 0
        %4384 = vmatpush1.bf16.msra.mxu0 %v4363
        %4385 = vmatprep.subr.bf16.mxu0 0
        %4386 = vmatpush1.bf16.msra.mxu0 %v4364
        %4387 = vmatprep.subr.bf16.mxu0 0
        %4388 = vmatpush1.bf16.msra.mxu0 %v4365
        %4389 = vmatprep.subr.bf16.mxu0 0
        %4390 = vmatpush1.bf16.msra.mxu0 %v4366
        %4391 = vmatprep.subr.bf16.mxu0 0
        %4392 = vmatpush1.bf16.msra.mxu0 0
        %4393 = vmatprep.subr.bf16.mxu0 0
        %4394 = vmatpush1.bf16.msra.mxu0 0
        %4395 = vmatprep.subr.bf16.mxu0 0
        %4396 = vmatpush1.bf16.msra.mxu0 0
        %4397 = vmatprep.subr.bf16.mxu0 0
        %4398 = vmatpush1.bf16.msra.mxu0 0
        %4399 = vmatprep.subr.bf16.mxu0 0
        %4400 = vmatpush1.bf16.msra.mxu0 0
        %4401 = vmatprep.subr.bf16.mxu0 0
        %4402 = vmatpush1.bf16.msra.mxu0 0
        %4403 = vmatprep.subr.bf16.mxu0 0
        %4404 = vmatpush1.bf16.msra.mxu0 0
        %4405 = vmatprep.subr.bf16.mxu0 0
        %4406 = vmatpush1.bf16.msra.mxu0 0
        %4407 = vmatprep.mubr.bf16.mxu0 0
        %4408 = vmatmul.mubr.bf16.gmra.mrb[0].mxu0 %v4280
        %v4409 = vpop.f32.mrb[0].mxu0
        %v4410 = vadd.f32 0.0, %v4409
        %v4411 = vpop.f32.mrb[0].mxu0
        %v4412 = vpop.f32.mrb[0].mxu0
        %v4413 = vadd.f32 0.0, %v4412
        %v4414 = vpop.f32.mrb[0].mxu0
        %4415 = vmatprep.mubr.bf16.mxu0 0
        %4416 = vmatmul.mubr.bf16.gmra.mrb[0].mxu0 %v4283
        %v4417 = vpop.f32.mrb[0].mxu0
        %v4418 = vadd.f32 0.0, %v4417
        %v4419 = vpop.f32.mrb[0].mxu0
        %v4420 = vpop.f32.mrb[0].mxu0
        %v4421 = vadd.f32 0.0, %v4420
        %v4422 = vpop.f32.mrb[0].mxu0
        %4423 = vmatprep.mubr.bf16.mxu0 0
        %4424 = vmatmul.mubr.bf16.gmra.mrb[0].mxu0 %v4286
        %v4425 = vpop.f32.mrb[0].mxu0
        %v4426 = vadd.f32 0.0, %v4425
        %v4427 = vpop.f32.mrb[0].mxu0
        %v4428 = vpop.f32.mrb[0].mxu0
        %v4429 = vadd.f32 0.0, %v4428
        %v4430 = vpop.f32.mrb[0].mxu0
        %4431 = vmatprep.mubr.bf16.mxu0 0
        %4432 = vmatmul.mubr.bf16.gmra.mrb[0].mxu0 %v4289
        %v4433 = vpop.f32.mrb[0].mxu0
        %v4434 = vadd.f32 0.0, %v4433
        %v4435 = vpop.f32.mrb[0].mxu0
        %v4436 = vpop.f32.mrb[0].mxu0
        %v4437 = vadd.f32 0.0, %v4436
        %v4438 = vpop.f32.mrb[0].mxu0
        %4439 = vmatprep.mubr.bf16.mxu0 0
        %4440 = vmatmul.mubr.bf16.gmra.mrb[0].mxu0 %v4292
        %v4441 = vpop.f32.mrb[0].mxu0
        %v4442 = vadd.f32 0.0, %v4441
        %v4443 = vpop.f32.mrb[0].mxu0
        %v4444 = vpop.f32.mrb[0].mxu0
        %v4445 = vadd.f32 0.0, %v4444
        %v4446 = vpop.f32.mrb[0].mxu0
        %4447 = vmatprep.mubr.bf16.mxu0 0
        %4448 = vmatmul.mubr.bf16.gmra.mrb[0].mxu0 %v4295
        %v4449 = vpop.f32.mrb[0].mxu0
        %v4450 = vadd.f32 0.0, %v4449
        %v4451 = vpop.f32.mrb[0].mxu0
        %v4452 = vpop.f32.mrb[0].mxu0
        %v4453 = vadd.f32 0.0, %v4452
        %v4454 = vpop.f32.mrb[0].mxu0
        %4455 = vmatprep.mubr.bf16.mxu0 0
        %4456 = vmatmul.mubr.bf16.gmra.mrb[0].mxu0 %v4298
        %v4457 = vpop.f32.mrb[0].mxu0
        %v4458 = vadd.f32 0.0, %v4457
        %v4459 = vpop.f32.mrb[0].mxu0
        %v4460 = vpop.f32.mrb[0].mxu0
        %v4461 = vadd.f32 0.0, %v4460
        %v4462 = vpop.f32.mrb[0].mxu0
        %4463 = vmatprep.mubr.bf16.mxu0 0
        %4464 = vmatmul.mubr.bf16.gmra.mrb[0].mxu0 %v4301
        %v4465 = vpop.f32.mrb[0].mxu0
        %v4466 = vadd.f32 0.0, %v4465
        %v4467 = vpop.f32.mrb[0].mxu0
        %v4468 = vpop.f32.mrb[0].mxu0
        %v4469 = vadd.f32 0.0, %v4468
        %v4470 = vpop.f32.mrb[0].mxu0
        %4471 = vdwg.mxu0
        %v4472 = vadd.f32 %v4199, %v4410
        %v4473 = vadd.f32 %v4202, %v4413
        %v4474 = vadd.f32 %v4207, %v4418
        %v4475 = vadd.f32 %v4210, %v4421
        %v4476 = vadd.f32 %v4215, %v4426
        %v4477 = vadd.f32 %v4218, %v4429
        %v4478 = vadd.f32 %v4223, %v4434
        %v4479 = vadd.f32 %v4226, %v4437
        %v4480 = vadd.f32 %v4231, %v4442
        %v4481 = vadd.f32 %v4234, %v4445
        %v4482 = vadd.f32 %v4239, %v4450
        %v4483 = vadd.f32 %v4242, %v4453
        %v4484 = vadd.f32 %v4247, %v4458
        %v4485 = vadd.f32 %v4250, %v4461
        %v4486 = vadd.f32 %v4255, %v4466
        %v4487 = vadd.f32 %v4258, %v4469
        %s4488 = scalar_lea.vmem [#allocation7], 192
        %v4489 = vld [vmem:[%s4488] sm:$0xf]
        %v4490 = vld [vmem:[%s4488 + $0x4] sm:$0xf]
        %v4491 = vld [vmem:[%s4488 + $0x8] sm:$0xf]
        %v4492 = vld [vmem:[%s4488 + $0xc] sm:$0xf]
        %v4493 = vld [vmem:[%s4488 + $0x10] sm:$0xf]
        %v4494 = vld [vmem:[%s4488 + $0x14] sm:$0xf]
        %v4495 = vld [vmem:[%s4488 + $0x18] sm:$0xf]
        %v4496 = vld [vmem:[%s4488 + $0x1c] sm:$0xf]
        %v4497 = vld [vmem:[%s4488 + $0x20] sm:$0xf]
        %v4498 = vld [vmem:[%s4488 + $0x24] sm:$0xf]
        %v4499 = vld [vmem:[%s4488 + $0x28] sm:$0xf]
        %v4500 = vld [vmem:[%s4488 + $0x2c] sm:$0xf]
        %v4501 = vld [vmem:[%s4488 + $0x30] sm:$0xf]
        %v4502 = vld [vmem:[%s4488 + $0x34] sm:$0xf]
        %v4503 = vld [vmem:[%s4488 + $0x38] sm:$0xf]
        %v4504 = vld [vmem:[%s4488 + $0x3c] sm:$0xf]
        %v4521 = vunpack.c.l.b16 %v4489
        %v4522 = vunpack.c.l.b16 %v4490
        %v4523 = vunpack.c.l.b16 %v4491
        %v4524 = vunpack.c.l.b16 %v4492
        %v4525 = vunpack.c.l.b16 %v4493
        %v4526 = vunpack.c.l.b16 %v4494
        %v4527 = vunpack.c.l.b16 %v4495
        %v4528 = vunpack.c.l.b16 %v4496
        %v4529 = vunpack.c.l.b16 %v4497
        %v4530 = vunpack.c.l.b16 %v4498
        %v4531 = vunpack.c.l.b16 %v4499
        %v4532 = vunpack.c.l.b16 %v4500
        %v4533 = vunpack.c.l.b16 %v4501
        %v4534 = vunpack.c.l.b16 %v4502
        %v4535 = vunpack.c.l.b16 %v4503
        %v4536 = vunpack.c.l.b16 %v4504
        %v4537 = vpack.c.b16 %v4522, %v4521
        %v4538 = vpack.c.b16 %v4524, %v4523
        %v4539 = vpack.c.b16 %v4526, %v4525
        %v4540 = vpack.c.b16 %v4528, %v4527
        %v4541 = vpack.c.b16 %v4530, %v4529
        %v4542 = vpack.c.b16 %v4532, %v4531
        %v4543 = vpack.c.b16 %v4534, %v4533
        %v4544 = vpack.c.b16 %v4536, %v4535
        %4553 = vmatprep.subr.bf16.mxu0 0
        %4554 = vmatpush1.bf16.msra.mxu0 %v4537
        %4555 = vmatprep.subr.bf16.mxu0 0
        %4556 = vmatpush1.bf16.msra.mxu0 %v4538
        %4557 = vmatprep.subr.bf16.mxu0 0
        %4558 = vmatpush1.bf16.msra.mxu0 %v4539
        %4559 = vmatprep.subr.bf16.mxu0 0
        %4560 = vmatpush1.bf16.msra.mxu0 %v4540
        %4561 = vmatprep.subr.bf16.mxu0 0
        %4562 = vmatpush1.bf16.msra.mxu0 %v4541
        %4563 = vmatprep.subr.bf16.mxu0 0
        %4564 = vmatpush1.bf16.msra.mxu0 %v4542
        %4565 = vmatprep.subr.bf16.mxu0 0
        %4566 = vmatpush1.bf16.msra.mxu0 %v4543
        %4567 = vmatprep.subr.bf16.mxu0 0
        %4568 = vmatpush1.bf16.msra.mxu0 %v4544
        %4569 = vmatprep.subr.bf16.mxu0 0
        %4570 = vmatpush1.bf16.msra.mxu0 0
        %4571 = vmatprep.subr.bf16.mxu0 0
        %4572 = vmatpush1.bf16.msra.mxu0 0
        %4573 = vmatprep.subr.bf16.mxu0 0
        %4574 = vmatpush1.bf16.msra.mxu0 0
        %4575 = vmatprep.subr.bf16.mxu0 0
        %4576 = vmatpush1.bf16.msra.mxu0 0
        %4577 = vmatprep.subr.bf16.mxu0 0
        %4578 = vmatpush1.bf16.msra.mxu0 0
        %4579 = vmatprep.subr.bf16.mxu0 0
        %4580 = vmatpush1.bf16.msra.mxu0 0
        %4581 = vmatprep.subr.bf16.mxu0 0
        %4582 = vmatpush1.bf16.msra.mxu0 0
        %4583 = vmatprep.subr.bf16.mxu0 0
        %4584 = vmatpush1.bf16.msra.mxu0 0
        %4585 = vmatprep.mubr.bf16.mxu0 0
        %4586 = vmatmul.mubr.bf16.gmra.mrb[0].mxu0 %v3815
        %v4587 = vpop.f32.mrb[0].mxu0
        %v4588 = vadd.f32 0.0, %v4587
        %v4589 = vpop.f32.mrb[0].mxu0
        %v4590 = vpop.f32.mrb[0].mxu0
        %v4591 = vadd.f32 0.0, %v4590
        %v4592 = vpop.f32.mrb[0].mxu0
        %4593 = vmatprep.mubr.bf16.mxu0 0
        %4594 = vmatmul.mubr.bf16.gmra.mrb[0].mxu0 %v3817
        %v4595 = vpop.f32.mrb[0].mxu0
        %v4596 = vadd.f32 0.0, %v4595
        %v4597 = vpop.f32.mrb[0].mxu0
        %v4598 = vpop.f32.mrb[0].mxu0
        %v4599 = vadd.f32 0.0, %v4598
        %v4600 = vpop.f32.mrb[0].mxu0
        %4601 = vmatprep.mubr.bf16.mxu0 0
        %4602 = vmatmul.mubr.bf16.gmra.mrb[0].mxu0 %v3819
        %v4603 = vpop.f32.mrb[0].mxu0
        %v4604 = vadd.f32 0.0, %v4603
        %v4605 = vpop.f32.mrb[0].mxu0
        %v4606 = vpop.f32.mrb[0].mxu0
        %v4607 = vadd.f32 0.0, %v4606
        %v4608 = vpop.f32.mrb[0].mxu0
        %4609 = vmatprep.mubr.bf16.mxu0 0
        %4610 = vmatmul.mubr.bf16.gmra.mrb[0].mxu0 %v3821
        %v4611 = vpop.f32.mrb[0].mxu0
        %v4612 = vadd.f32 0.0, %v4611
        %v4613 = vpop.f32.mrb[0].mxu0
        %v4614 = vpop.f32.mrb[0].mxu0
        %v4615 = vadd.f32 0.0, %v4614
        %v4616 = vpop.f32.mrb[0].mxu0
        %4617 = vmatprep.mubr.bf16.mxu0 0
        %4618 = vmatmul.mubr.bf16.gmra.mrb[0].mxu0 %v3823
        %v4619 = vpop.f32.mrb[0].mxu0
        %v4620 = vadd.f32 0.0, %v4619
        %v4621 = vpop.f32.mrb[0].mxu0
        %v4622 = vpop.f32.mrb[0].mxu0
        %v4623 = vadd.f32 0.0, %v4622
        %v4624 = vpop.f32.mrb[0].mxu0
        %4625 = vmatprep.mubr.bf16.mxu0 0
        %4626 = vmatmul.mubr.bf16.gmra.mrb[0].mxu0 %v3825
        %v4627 = vpop.f32.mrb[0].mxu0
        %v4628 = vadd.f32 0.0, %v4627
        %v4629 = vpop.f32.mrb[0].mxu0
        %v4630 = vpop.f32.mrb[0].mxu0
        %v4631 = vadd.f32 0.0, %v4630
        %v4632 = vpop.f32.mrb[0].mxu0
        %4633 = vmatprep.mubr.bf16.mxu0 0
        %4634 = vmatmul.mubr.bf16.gmra.mrb[0].mxu0 %v3827
        %v4635 = vpop.f32.mrb[0].mxu0
        %v4636 = vadd.f32 0.0, %v4635
        %v4637 = vpop.f32.mrb[0].mxu0
        %v4638 = vpop.f32.mrb[0].mxu0
        %v4639 = vadd.f32 0.0, %v4638
        %v4640 = vpop.f32.mrb[0].mxu0
        %4641 = vmatprep.mubr.bf16.mxu0 0
        %4642 = vmatmul.mubr.bf16.gmra.mrb[0].mxu0 %v3829
        %v4643 = vpop.f32.mrb[0].mxu0
        %v4644 = vadd.f32 0.0, %v4643
        %v4645 = vpop.f32.mrb[0].mxu0
        %v4646 = vpop.f32.mrb[0].mxu0
        %v4647 = vadd.f32 0.0, %v4646
        %v4648 = vpop.f32.mrb[0].mxu0
        %4649 = vdwg.mxu0
        %v4650 = vadd.f32 %v4472, %v4588
        %v4651 = vadd.f32 %v4473, %v4591
        %v4652 = vadd.f32 %v4474, %v4596
        %v4653 = vadd.f32 %v4475, %v4599
        %v4654 = vadd.f32 %v4476, %v4604
        %v4655 = vadd.f32 %v4477, %v4607
        %v4656 = vadd.f32 %v4478, %v4612
        %v4657 = vadd.f32 %v4479, %v4615
        %v4658 = vadd.f32 %v4480, %v4620
        %v4659 = vadd.f32 %v4481, %v4623
        %v4660 = vadd.f32 %v4482, %v4628
        %v4661 = vadd.f32 %v4483, %v4631
        %v4662 = vadd.f32 %v4484, %v4636
        %v4663 = vadd.f32 %v4485, %v4639
        %v4664 = vadd.f32 %v4486, %v4644
        %v4665 = vadd.f32 %v4487, %v4647
        %v4667 = vshrl.u32 %v3829, 16
        %v4669 = vshll.u32 %v3829, 16
        %v4671 = vrot.slane %v4669, 1
        %v4672 = vor.u32 %v4667, %v4671
        %v4674 = vshll.u32 %v3830, 16
        %v4676 = vrot.slane %v4674, 1
        %v4677 = vsel %vm3849, %v4672, %v4676
        %s4679 = scalar_lea.vmem [#allocation7], 256
        %v4680 = vld [vmem:[%s4679] sm:$0xf]
        %v4681 = vld [vmem:[%s4679 + $0x4] sm:$0xf]
        %v4682 = vld [vmem:[%s4679 + $0x8] sm:$0xf]
        %v4683 = vld [vmem:[%s4679 + $0xc] sm:$0xf]
        %v4684 = vld [vmem:[%s4679 + $0x10] sm:$0xf]
        %v4685 = vld [vmem:[%s4679 + $0x14] sm:$0xf]
        %v4686 = vld [vmem:[%s4679 + $0x18] sm:$0xf]
        %v4687 = vld [vmem:[%s4679 + $0x1c] sm:$0xf]
        %v4688 = vld [vmem:[%s4679 + $0x20] sm:$0xf]
        %v4689 = vld [vmem:[%s4679 + $0x24] sm:$0xf]
        %v4690 = vld [vmem:[%s4679 + $0x28] sm:$0xf]
        %v4691 = vld [vmem:[%s4679 + $0x2c] sm:$0xf]
        %v4692 = vld [vmem:[%s4679 + $0x30] sm:$0xf]
        %v4693 = vld [vmem:[%s4679 + $0x34] sm:$0xf]
        %v4694 = vld [vmem:[%s4679 + $0x38] sm:$0xf]
        %v4695 = vld [vmem:[%s4679 + $0x3c] sm:$0xf]
        %v4712 = vunpack.c.l.b16 %v4680
        %v4713 = vunpack.c.l.b16 %v4681
        %v4714 = vunpack.c.l.b16 %v4682
        %v4715 = vunpack.c.l.b16 %v4683
        %v4716 = vunpack.c.l.b16 %v4684
        %v4717 = vunpack.c.l.b16 %v4685
        %v4718 = vunpack.c.l.b16 %v4686
        %v4719 = vunpack.c.l.b16 %v4687
        %v4720 = vunpack.c.l.b16 %v4688
        %v4721 = vunpack.c.l.b16 %v4689
        %v4722 = vunpack.c.l.b16 %v4690
        %v4723 = vunpack.c.l.b16 %v4691
        %v4724 = vunpack.c.l.b16 %v4692
        %v4725 = vunpack.c.l.b16 %v4693
        %v4726 = vunpack.c.l.b16 %v4694
        %v4727 = vunpack.c.l.b16 %v4695
        %v4728 = vpack.c.b16 %v4713, %v4712
        %v4729 = vpack.c.b16 %v4715, %v4714
        %v4730 = vpack.c.b16 %v4717, %v4716
        %v4731 = vpack.c.b16 %v4719, %v4718
        %v4732 = vpack.c.b16 %v4721, %v4720
        %v4733 = vpack.c.b16 %v4723, %v4722
        %v4734 = vpack.c.b16 %v4725, %v4724
        %v4735 = vpack.c.b16 %v4727, %v4726
        %4744 = vmatprep.subr.bf16.mxu0 0
        %4745 = vmatpush1.bf16.msra.mxu0 %v4728
        %4746 = vmatprep.subr.bf16.mxu0 0
        %4747 = vmatpush1.bf16.msra.mxu0 %v4729
        %4748 = vmatprep.subr.bf16.mxu0 0
        %4749 = vmatpush1.bf16.msra.mxu0 %v4730
        %4750 = vmatprep.subr.bf16.mxu0 0
        %4751 = vmatpush1.bf16.msra.mxu0 %v4731
        %4752 = vmatprep.subr.bf16.mxu0 0
        %4753 = vmatpush1.bf16.msra.mxu0 %v4732
        %4754 = vmatprep.subr.bf16.mxu0 0
        %4755 = vmatpush1.bf16.msra.mxu0 %v4733
        %4756 = vmatprep.subr.bf16.mxu0 0
        %4757 = vmatpush1.bf16.msra.mxu0 %v4734
        %4758 = vmatprep.subr.bf16.mxu0 0
        %4759 = vmatpush1.bf16.msra.mxu0 %v4735
        %4760 = vmatprep.subr.bf16.mxu0 0
        %4761 = vmatpush1.bf16.msra.mxu0 0
        %4762 = vmatprep.subr.bf16.mxu0 0
        %4763 = vmatpush1.bf16.msra.mxu0 0
        %4764 = vmatprep.subr.bf16.mxu0 0
        %4765 = vmatpush1.bf16.msra.mxu0 0
        %4766 = vmatprep.subr.bf16.mxu0 0
        %4767 = vmatpush1.bf16.msra.mxu0 0
        %4768 = vmatprep.subr.bf16.mxu0 0
        %4769 = vmatpush1.bf16.msra.mxu0 0
        %4770 = vmatprep.subr.bf16.mxu0 0
        %4771 = vmatpush1.bf16.msra.mxu0 0
        %4772 = vmatprep.subr.bf16.mxu0 0
        %4773 = vmatpush1.bf16.msra.mxu0 0
        %4774 = vmatprep.subr.bf16.mxu0 0
        %4775 = vmatpush1.bf16.msra.mxu0 0
        %4776 = vmatprep.mubr.bf16.mxu0 0
        %4777 = vmatmul.mubr.bf16.gmra.mrb[0].mxu0 %v3873
        %v4778 = vpop.f32.mrb[0].mxu0
        %v4779 = vadd.f32 0.0, %v4778
        %v4780 = vpop.f32.mrb[0].mxu0
        %v4781 = vpop.f32.mrb[0].mxu0
        %v4782 = vadd.f32 0.0, %v4781
        %v4783 = vpop.f32.mrb[0].mxu0
        %4784 = vmatprep.mubr.bf16.mxu0 0
        %4785 = vmatmul.mubr.bf16.gmra.mrb[0].mxu0 %v3885
        %v4786 = vpop.f32.mrb[0].mxu0
        %v4787 = vadd.f32 0.0, %v4786
        %v4788 = vpop.f32.mrb[0].mxu0
        %v4789 = vpop.f32.mrb[0].mxu0
        %v4790 = vadd.f32 0.0, %v4789
        %v4791 = vpop.f32.mrb[0].mxu0
        %4792 = vmatprep.mubr.bf16.mxu0 0
        %4793 = vmatmul.mubr.bf16.gmra.mrb[0].mxu0 %v3897
        %v4794 = vpop.f32.mrb[0].mxu0
        %v4795 = vadd.f32 0.0, %v4794
        %v4796 = vpop.f32.mrb[0].mxu0
        %v4797 = vpop.f32.mrb[0].mxu0
        %v4798 = vadd.f32 0.0, %v4797
        %v4799 = vpop.f32.mrb[0].mxu0
        %4800 = vmatprep.mubr.bf16.mxu0 0
        %4801 = vmatmul.mubr.bf16.gmra.mrb[0].mxu0 %v3909
        %v4802 = vpop.f32.mrb[0].mxu0
        %v4803 = vadd.f32 0.0, %v4802
        %v4804 = vpop.f32.mrb[0].mxu0
        %v4805 = vpop.f32.mrb[0].mxu0
        %v4806 = vadd.f32 0.0, %v4805
        %v4807 = vpop.f32.mrb[0].mxu0
        %4808 = vmatprep.mubr.bf16.mxu0 0
        %4809 = vmatmul.mubr.bf16.gmra.mrb[0].mxu0 %v3921
        %v4810 = vpop.f32.mrb[0].mxu0
        %v4811 = vadd.f32 0.0, %v4810
        %v4812 = vpop.f32.mrb[0].mxu0
        %v4813 = vpop.f32.mrb[0].mxu0
        %v4814 = vadd.f32 0.0, %v4813
        %v4815 = vpop.f32.mrb[0].mxu0
        %4816 = vmatprep.mubr.bf16.mxu0 0
        %4817 = vmatmul.mubr.bf16.gmra.mrb[0].mxu0 %v3933
        %v4818 = vpop.f32.mrb[0].mxu0
        %v4819 = vadd.f32 0.0, %v4818
        %v4820 = vpop.f32.mrb[0].mxu0
        %v4821 = vpop.f32.mrb[0].mxu0
        %v4822 = vadd.f32 0.0, %v4821
        %v4823 = vpop.f32.mrb[0].mxu0
        %4824 = vmatprep.mubr.bf16.mxu0 0
        %4825 = vmatmul.mubr.bf16.gmra.mrb[0].mxu0 %v3945
        %v4826 = vpop.f32.mrb[0].mxu0
        %v4827 = vadd.f32 0.0, %v4826
        %v4828 = vpop.f32.mrb[0].mxu0
        %v4829 = vpop.f32.mrb[0].mxu0
        %v4830 = vadd.f32 0.0, %v4829
        %v4831 = vpop.f32.mrb[0].mxu0
        %4832 = vmatprep.mubr.bf16.mxu0 0
        %4833 = vmatmul.mubr.bf16.gmra.mrb[0].mxu0 %v4677
        %v4834 = vpop.f32.mrb[0].mxu0
        %v4835 = vadd.f32 0.0, %v4834
        %v4836 = vpop.f32.mrb[0].mxu0
        %v4837 = vpop.f32.mrb[0].mxu0
        %v4838 = vadd.f32 0.0, %v4837
        %v4839 = vpop.f32.mrb[0].mxu0
        %4840 = vdwg.mxu0
        %v4841 = vadd.f32 %v4650, %v4779
        %v4842 = vadd.f32 %v4651, %v4782
        %v4843 = vadd.f32 %v4652, %v4787
        %v4844 = vadd.f32 %v4653, %v4790
        %v4845 = vadd.f32 %v4654, %v4795
        %v4846 = vadd.f32 %v4655, %v4798
        %v4847 = vadd.f32 %v4656, %v4803
        %v4848 = vadd.f32 %v4657, %v4806
        %v4849 = vadd.f32 %v4658, %v4811
        %v4850 = vadd.f32 %v4659, %v4814
        %v4851 = vadd.f32 %v4660, %v4819
        %v4852 = vadd.f32 %v4661, %v4822
        %v4853 = vadd.f32 %v4662, %v4827
        %v4854 = vadd.f32 %v4663, %v4830
        %v4855 = vadd.f32 %v4664, %v4835
        %v4856 = vadd.f32 %v4665, %v4838
        %v4859 = vrot.slane %v3829, 1
        %v4860 = vrot.slane %v3830, 1
        %v4861 = vsel %vm4277, %v4859, %v4860
        %s4863 = scalar_lea.vmem [#allocation7], 320
        %v4864 = vld [vmem:[%s4863] sm:$0xf]
        %v4865 = vld [vmem:[%s4863 + $0x4] sm:$0xf]
        %v4866 = vld [vmem:[%s4863 + $0x8] sm:$0xf]
        %v4867 = vld [vmem:[%s4863 + $0xc] sm:$0xf]
        %v4868 = vld [vmem:[%s4863 + $0x10] sm:$0xf]
        %v4869 = vld [vmem:[%s4863 + $0x14] sm:$0xf]
        %v4870 = vld [vmem:[%s4863 + $0x18] sm:$0xf]
        %v4871 = vld [vmem:[%s4863 + $0x1c] sm:$0xf]
        %v4872 = vld [vmem:[%s4863 + $0x20] sm:$0xf]
        %v4873 = vld [vmem:[%s4863 + $0x24] sm:$0xf]
        %v4874 = vld [vmem:[%s4863 + $0x28] sm:$0xf]
        %v4875 = vld [vmem:[%s4863 + $0x2c] sm:$0xf]
        %v4876 = vld [vmem:[%s4863 + $0x30] sm:$0xf]
        %v4877 = vld [vmem:[%s4863 + $0x34] sm:$0xf]
        %v4878 = vld [vmem:[%s4863 + $0x38] sm:$0xf]
        %v4879 = vld [vmem:[%s4863 + $0x3c] sm:$0xf]
        %v4896 = vunpack.c.l.b16 %v4864
        %v4897 = vunpack.c.l.b16 %v4865
        %v4898 = vunpack.c.l.b16 %v4866
        %v4899 = vunpack.c.l.b16 %v4867
        %v4900 = vunpack.c.l.b16 %v4868
        %v4901 = vunpack.c.l.b16 %v4869
        %v4902 = vunpack.c.l.b16 %v4870
        %v4903 = vunpack.c.l.b16 %v4871
        %v4904 = vunpack.c.l.b16 %v4872
        %v4905 = vunpack.c.l.b16 %v4873
        %v4906 = vunpack.c.l.b16 %v4874
        %v4907 = vunpack.c.l.b16 %v4875
        %v4908 = vunpack.c.l.b16 %v4876
        %v4909 = vunpack.c.l.b16 %v4877
        %v4910 = vunpack.c.l.b16 %v4878
        %v4911 = vunpack.c.l.b16 %v4879
        %v4912 = vpack.c.b16 %v4897, %v4896
        %v4913 = vpack.c.b16 %v4899, %v4898
        %v4914 = vpack.c.b16 %v4901, %v4900
        %v4915 = vpack.c.b16 %v4903, %v4902
        %v4916 = vpack.c.b16 %v4905, %v4904
        %v4917 = vpack.c.b16 %v4907, %v4906
        %v4918 = vpack.c.b16 %v4909, %v4908
        %v4919 = vpack.c.b16 %v4911, %v4910
        %4928 = vmatprep.subr.bf16.mxu0 0
        %4929 = vmatpush1.bf16.msra.mxu0 %v4912
        %4930 = vmatprep.subr.bf16.mxu0 0
        %4931 = vmatpush1.bf16.msra.mxu0 %v4913
        %4932 = vmatprep.subr.bf16.mxu0 0
        %4933 = vmatpush1.bf16.msra.mxu0 %v4914
        %4934 = vmatprep.subr.bf16.mxu0 0
        %4935 = vmatpush1.bf16.msra.mxu0 %v4915
        %4936 = vmatprep.subr.bf16.mxu0 0
        %4937 = vmatpush1.bf16.msra.mxu0 %v4916
        %4938 = vmatprep.subr.bf16.mxu0 0
        %4939 = vmatpush1.bf16.msra.mxu0 %v4917
        %4940 = vmatprep.subr.bf16.mxu0 0
        %4941 = vmatpush1.bf16.msra.mxu0 %v4918
        %4942 = vmatprep.subr.bf16.mxu0 0
        %4943 = vmatpush1.bf16.msra.mxu0 %v4919
        %4944 = vmatprep.subr.bf16.mxu0 0
        %4945 = vmatpush1.bf16.msra.mxu0 0
        %4946 = vmatprep.subr.bf16.mxu0 0
        %4947 = vmatpush1.bf16.msra.mxu0 0
        %4948 = vmatprep.subr.bf16.mxu0 0
        %4949 = vmatpush1.bf16.msra.mxu0 0
        %4950 = vmatprep.subr.bf16.mxu0 0
        %4951 = vmatpush1.bf16.msra.mxu0 0
        %4952 = vmatprep.subr.bf16.mxu0 0
        %4953 = vmatpush1.bf16.msra.mxu0 0
        %4954 = vmatprep.subr.bf16.mxu0 0
        %4955 = vmatpush1.bf16.msra.mxu0 0
        %4956 = vmatprep.subr.bf16.mxu0 0
        %4957 = vmatpush1.bf16.msra.mxu0 0
        %4958 = vmatprep.subr.bf16.mxu0 0
        %4959 = vmatpush1.bf16.msra.mxu0 0
        %4960 = vmatprep.mubr.bf16.mxu0 0
        %4961 = vmatmul.mubr.bf16.gmra.mrb[0].mxu0 %v4283
        %v4962 = vpop.f32.mrb[0].mxu0
        %v4963 = vadd.f32 0.0, %v4962
        %v4964 = vpop.f32.mrb[0].mxu0
        %v4965 = vpop.f32.mrb[0].mxu0
        %v4966 = vadd.f32 0.0, %v4965
        %v4967 = vpop.f32.mrb[0].mxu0
        %4968 = vmatprep.mubr.bf16.mxu0 0
        %4969 = vmatmul.mubr.bf16.gmra.mrb[0].mxu0 %v4286
        %v4970 = vpop.f32.mrb[0].mxu0
        %v4971 = vadd.f32 0.0, %v4970
        %v4972 = vpop.f32.mrb[0].mxu0
        %v4973 = vpop.f32.mrb[0].mxu0
        %v4974 = vadd.f32 0.0, %v4973
        %v4975 = vpop.f32.mrb[0].mxu0
        %4976 = vmatprep.mubr.bf16.mxu0 0
        %4977 = vmatmul.mubr.bf16.gmra.mrb[0].mxu0 %v4289
        %v4978 = vpop.f32.mrb[0].mxu0
        %v4979 = vadd.f32 0.0, %v4978
        %v4980 = vpop.f32.mrb[0].mxu0
        %v4981 = vpop.f32.mrb[0].mxu0
        %v4982 = vadd.f32 0.0, %v4981
        %v4983 = vpop.f32.mrb[0].mxu0
        %4984 = vmatprep.mubr.bf16.mxu0 0
        %4985 = vmatmul.mubr.bf16.gmra.mrb[0].mxu0 %v4292
        %v4986 = vpop.f32.mrb[0].mxu0
        %v4987 = vadd.f32 0.0, %v4986
        %v4988 = vpop.f32.mrb[0].mxu0
        %v4989 = vpop.f32.mrb[0].mxu0
        %v4990 = vadd.f32 0.0, %v4989
        %v4991 = vpop.f32.mrb[0].mxu0
        %4992 = vmatprep.mubr.bf16.mxu0 0
        %4993 = vmatmul.mubr.bf16.gmra.mrb[0].mxu0 %v4295
        %v4994 = vpop.f32.mrb[0].mxu0
        %v4995 = vadd.f32 0.0, %v4994
        %v4996 = vpop.f32.mrb[0].mxu0
        %v4997 = vpop.f32.mrb[0].mxu0
        %v4998 = vadd.f32 0.0, %v4997
        %v4999 = vpop.f32.mrb[0].mxu0
        %5000 = vmatprep.mubr.bf16.mxu0 0
        %5001 = vmatmul.mubr.bf16.gmra.mrb[0].mxu0 %v4298
        %v5002 = vpop.f32.mrb[0].mxu0
        %v5003 = vadd.f32 0.0, %v5002
        %v5004 = vpop.f32.mrb[0].mxu0
        %v5005 = vpop.f32.mrb[0].mxu0
        %v5006 = vadd.f32 0.0, %v5005
        %v5007 = vpop.f32.mrb[0].mxu0
        %5008 = vmatprep.mubr.bf16.mxu0 0
        %5009 = vmatmul.mubr.bf16.gmra.mrb[0].mxu0 %v4301
        %v5010 = vpop.f32.mrb[0].mxu0
        %v5011 = vadd.f32 0.0, %v5010
        %v5012 = vpop.f32.mrb[0].mxu0
        %v5013 = vpop.f32.mrb[0].mxu0
        %v5014 = vadd.f32 0.0, %v5013
        %v5015 = vpop.f32.mrb[0].mxu0
        %5016 = vmatprep.mubr.bf16.mxu0 0
        %5017 = vmatmul.mubr.bf16.gmra.mrb[0].mxu0 %v4861
        %v5018 = vpop.f32.mrb[0].mxu0
        %v5019 = vadd.f32 0.0, %v5018
        %v5020 = vpop.f32.mrb[0].mxu0
        %v5021 = vpop.f32.mrb[0].mxu0
        %v5022 = vadd.f32 0.0, %v5021
        %v5023 = vpop.f32.mrb[0].mxu0
        %5024 = vdwg.mxu0
        %v5025 = vadd.f32 %v4841, %v4963
        %v5026 = vadd.f32 %v4842, %v4966
        %v5027 = vadd.f32 %v4843, %v4971
        %v5028 = vadd.f32 %v4844, %v4974
        %v5029 = vadd.f32 %v4845, %v4979
        %v5030 = vadd.f32 %v4846, %v4982
        %v5031 = vadd.f32 %v4847, %v4987
        %v5032 = vadd.f32 %v4848, %v4990
        %v5033 = vadd.f32 %v4849, %v4995
        %v5034 = vadd.f32 %v4850, %v4998
        %v5035 = vadd.f32 %v4851, %v5003
        %v5036 = vadd.f32 %v4852, %v5006
        %v5037 = vadd.f32 %v4853, %v5011
        %v5038 = vadd.f32 %v4854, %v5014
        %v5039 = vadd.f32 %v4855, %v5019
        %v5040 = vadd.f32 %v4856, %v5022
        %s5041 = scalar_lea.vmem [#allocation7], 384
        %v5042 = vld [vmem:[%s5041] sm:$0xf]
        %v5043 = vld [vmem:[%s5041 + $0x4] sm:$0xf]
        %v5044 = vld [vmem:[%s5041 + $0x8] sm:$0xf]
        %v5045 = vld [vmem:[%s5041 + $0xc] sm:$0xf]
        %v5046 = vld [vmem:[%s5041 + $0x10] sm:$0xf]
        %v5047 = vld [vmem:[%s5041 + $0x14] sm:$0xf]
        %v5048 = vld [vmem:[%s5041 + $0x18] sm:$0xf]
        %v5049 = vld [vmem:[%s5041 + $0x1c] sm:$0xf]
        %v5050 = vld [vmem:[%s5041 + $0x20] sm:$0xf]
        %v5051 = vld [vmem:[%s5041 + $0x24] sm:$0xf]
        %v5052 = vld [vmem:[%s5041 + $0x28] sm:$0xf]
        %v5053 = vld [vmem:[%s5041 + $0x2c] sm:$0xf]
        %v5054 = vld [vmem:[%s5041 + $0x30] sm:$0xf]
        %v5055 = vld [vmem:[%s5041 + $0x34] sm:$0xf]
        %v5056 = vld [vmem:[%s5041 + $0x38] sm:$0xf]
        %v5057 = vld [vmem:[%s5041 + $0x3c] sm:$0xf]
        %v5074 = vunpack.c.l.b16 %v5042
        %v5075 = vunpack.c.l.b16 %v5043
        %v5076 = vunpack.c.l.b16 %v5044
        %v5077 = vunpack.c.l.b16 %v5045
        %v5078 = vunpack.c.l.b16 %v5046
        %v5079 = vunpack.c.l.b16 %v5047
        %v5080 = vunpack.c.l.b16 %v5048
        %v5081 = vunpack.c.l.b16 %v5049
        %v5082 = vunpack.c.l.b16 %v5050
        %v5083 = vunpack.c.l.b16 %v5051
        %v5084 = vunpack.c.l.b16 %v5052
        %v5085 = vunpack.c.l.b16 %v5053
        %v5086 = vunpack.c.l.b16 %v5054
        %v5087 = vunpack.c.l.b16 %v5055
        %v5088 = vunpack.c.l.b16 %v5056
        %v5089 = vunpack.c.l.b16 %v5057
        %v5090 = vpack.c.b16 %v5075, %v5074
        %v5091 = vpack.c.b16 %v5077, %v5076
        %v5092 = vpack.c.b16 %v5079, %v5078
        %v5093 = vpack.c.b16 %v5081, %v5080
        %v5094 = vpack.c.b16 %v5083, %v5082
        %v5095 = vpack.c.b16 %v5085, %v5084
        %v5096 = vpack.c.b16 %v5087, %v5086
        %v5097 = vpack.c.b16 %v5089, %v5088
        %5106 = vmatprep.subr.bf16.mxu0 0
        %5107 = vmatpush1.bf16.msra.mxu0 %v5090
        %5108 = vmatprep.subr.bf16.mxu0 0
        %5109 = vmatpush1.bf16.msra.mxu0 %v5091
        %5110 = vmatprep.subr.bf16.mxu0 0
        %5111 = vmatpush1.bf16.msra.mxu0 %v5092
        %5112 = vmatprep.subr.bf16.mxu0 0
        %5113 = vmatpush1.bf16.msra.mxu0 %v5093
        %5114 = vmatprep.subr.bf16.mxu0 0
        %5115 = vmatpush1.bf16.msra.mxu0 %v5094
        %5116 = vmatprep.subr.bf16.mxu0 0
        %5117 = vmatpush1.bf16.msra.mxu0 %v5095
        %5118 = vmatprep.subr.bf16.mxu0 0
        %5119 = vmatpush1.bf16.msra.mxu0 %v5096
        %5120 = vmatprep.subr.bf16.mxu0 0
        %5121 = vmatpush1.bf16.msra.mxu0 %v5097
        %5122 = vmatprep.subr.bf16.mxu0 0
        %5123 = vmatpush1.bf16.msra.mxu0 0
        %5124 = vmatprep.subr.bf16.mxu0 0
        %5125 = vmatpush1.bf16.msra.mxu0 0
        %5126 = vmatprep.subr.bf16.mxu0 0
        %5127 = vmatpush1.bf16.msra.mxu0 0
        %5128 = vmatprep.subr.bf16.mxu0 0
        %5129 = vmatpush1.bf16.msra.mxu0 0
        %5130 = vmatprep.subr.bf16.mxu0 0
        %5131 = vmatpush1.bf16.msra.mxu0 0
        %5132 = vmatprep.subr.bf16.mxu0 0
        %5133 = vmatpush1.bf16.msra.mxu0 0
        %5134 = vmatprep.subr.bf16.mxu0 0
        %5135 = vmatpush1.bf16.msra.mxu0 0
        %5136 = vmatprep.subr.bf16.mxu0 0
        %5137 = vmatpush1.bf16.msra.mxu0 0
        %5138 = vmatprep.mubr.bf16.mxu0 0
        %5139 = vmatmul.mubr.bf16.gmra.mrb[0].mxu0 %v3817
        %v5140 = vpop.f32.mrb[0].mxu0
        %v5141 = vadd.f32 0.0, %v5140
        %v5142 = vpop.f32.mrb[0].mxu0
        %v5143 = vpop.f32.mrb[0].mxu0
        %v5144 = vadd.f32 0.0, %v5143
        %v5145 = vpop.f32.mrb[0].mxu0
        %5146 = vmatprep.mubr.bf16.mxu0 0
        %5147 = vmatmul.mubr.bf16.gmra.mrb[0].mxu0 %v3819
        %v5148 = vpop.f32.mrb[0].mxu0
        %v5149 = vadd.f32 0.0, %v5148
        %v5150 = vpop.f32.mrb[0].mxu0
        %v5151 = vpop.f32.mrb[0].mxu0
        %v5152 = vadd.f32 0.0, %v5151
        %v5153 = vpop.f32.mrb[0].mxu0
        %5154 = vmatprep.mubr.bf16.mxu0 0
        %5155 = vmatmul.mubr.bf16.gmra.mrb[0].mxu0 %v3821
        %v5156 = vpop.f32.mrb[0].mxu0
        %v5157 = vadd.f32 0.0, %v5156
        %v5158 = vpop.f32.mrb[0].mxu0
        %v5159 = vpop.f32.mrb[0].mxu0
        %v5160 = vadd.f32 0.0, %v5159
        %v5161 = vpop.f32.mrb[0].mxu0
        %5162 = vmatprep.mubr.bf16.mxu0 0
        %5163 = vmatmul.mubr.bf16.gmra.mrb[0].mxu0 %v3823
        %v5164 = vpop.f32.mrb[0].mxu0
        %v5165 = vadd.f32 0.0, %v5164
        %v5166 = vpop.f32.mrb[0].mxu0
        %v5167 = vpop.f32.mrb[0].mxu0
        %v5168 = vadd.f32 0.0, %v5167
        %v5169 = vpop.f32.mrb[0].mxu0
        %5170 = vmatprep.mubr.bf16.mxu0 0
        %5171 = vmatmul.mubr.bf16.gmra.mrb[0].mxu0 %v3825
        %v5172 = vpop.f32.mrb[0].mxu0
        %v5173 = vadd.f32 0.0, %v5172
        %v5174 = vpop.f32.mrb[0].mxu0
        %v5175 = vpop.f32.mrb[0].mxu0
        %v5176 = vadd.f32 0.0, %v5175
        %v5177 = vpop.f32.mrb[0].mxu0
        %5178 = vmatprep.mubr.bf16.mxu0 0
        %5179 = vmatmul.mubr.bf16.gmra.mrb[0].mxu0 %v3827
        %v5180 = vpop.f32.mrb[0].mxu0
        %v5181 = vadd.f32 0.0, %v5180
        %v5182 = vpop.f32.mrb[0].mxu0
        %v5183 = vpop.f32.mrb[0].mxu0
        %v5184 = vadd.f32 0.0, %v5183
        %v5185 = vpop.f32.mrb[0].mxu0
        %5186 = vmatprep.mubr.bf16.mxu0 0
        %5187 = vmatmul.mubr.bf16.gmra.mrb[0].mxu0 %v3829
        %v5188 = vpop.f32.mrb[0].mxu0
        %v5189 = vadd.f32 0.0, %v5188
        %v5190 = vpop.f32.mrb[0].mxu0
        %v5191 = vpop.f32.mrb[0].mxu0
        %v5192 = vadd.f32 0.0, %v5191
        %v5193 = vpop.f32.mrb[0].mxu0
        %5194 = vmatprep.mubr.bf16.mxu0 0
        %5195 = vmatmul.mubr.bf16.gmra.mrb[0].mxu0 %v3831
        %v5196 = vpop.f32.mrb[0].mxu0
        %v5197 = vadd.f32 0.0, %v5196
        %v5198 = vpop.f32.mrb[0].mxu0
        %v5199 = vpop.f32.mrb[0].mxu0
        %v5200 = vadd.f32 0.0, %v5199
        %v5201 = vpop.f32.mrb[0].mxu0
        %5202 = vdwg.mxu0
        %v5203 = vadd.f32 %v5025, %v5141
        %v5204 = vadd.f32 %v5026, %v5144
        %v5205 = vadd.f32 %v5027, %v5149
        %v5206 = vadd.f32 %v5028, %v5152
        %v5207 = vadd.f32 %v5029, %v5157
        %v5208 = vadd.f32 %v5030, %v5160
        %v5209 = vadd.f32 %v5031, %v5165
        %v5210 = vadd.f32 %v5032, %v5168
        %v5211 = vadd.f32 %v5033, %v5173
        %v5212 = vadd.f32 %v5034, %v5176
        %v5213 = vadd.f32 %v5035, %v5181
        %v5214 = vadd.f32 %v5036, %v5184
        %v5215 = vadd.f32 %v5037, %v5189
        %v5216 = vadd.f32 %v5038, %v5192
        %v5217 = vadd.f32 %v5039, %v5197
        %v5218 = vadd.f32 %v5040, %v5200
        %v5220 = vshrl.u32 %v3831, 16
        %v5222 = vshll.u32 %v3831, 16
        %v5224 = vrot.slane %v5222, 1
        %v5225 = vor.u32 %v5220, %v5224
        %v5227 = vshll.u32 %v3832, 16
        %v5229 = vrot.slane %v5227, 1
        %v5230 = vsel %vm3849, %v5225, %v5229
        %s5232 = scalar_lea.vmem [#allocation7], 448
        %v5233 = vld [vmem:[%s5232] sm:$0xf]
        %v5234 = vld [vmem:[%s5232 + $0x4] sm:$0xf]
        %v5235 = vld [vmem:[%s5232 + $0x8] sm:$0xf]
        %v5236 = vld [vmem:[%s5232 + $0xc] sm:$0xf]
        %v5237 = vld [vmem:[%s5232 + $0x10] sm:$0xf]
        %v5238 = vld [vmem:[%s5232 + $0x14] sm:$0xf]
        %v5239 = vld [vmem:[%s5232 + $0x18] sm:$0xf]
        %v5240 = vld [vmem:[%s5232 + $0x1c] sm:$0xf]
        %v5241 = vld [vmem:[%s5232 + $0x20] sm:$0xf]
        %v5242 = vld [vmem:[%s5232 + $0x24] sm:$0xf]
        %v5243 = vld [vmem:[%s5232 + $0x28] sm:$0xf]
        %v5244 = vld [vmem:[%s5232 + $0x2c] sm:$0xf]
        %v5245 = vld [vmem:[%s5232 + $0x30] sm:$0xf]
        %v5246 = vld [vmem:[%s5232 + $0x34] sm:$0xf]
        %v5247 = vld [vmem:[%s5232 + $0x38] sm:$0xf]
        %v5248 = vld [vmem:[%s5232 + $0x3c] sm:$0xf]
        %v5265 = vunpack.c.l.b16 %v5233
        %v5266 = vunpack.c.l.b16 %v5234
        %v5267 = vunpack.c.l.b16 %v5235
        %v5268 = vunpack.c.l.b16 %v5236
        %v5269 = vunpack.c.l.b16 %v5237
        %v5270 = vunpack.c.l.b16 %v5238
        %v5271 = vunpack.c.l.b16 %v5239
        %v5272 = vunpack.c.l.b16 %v5240
        %v5273 = vunpack.c.l.b16 %v5241
        %v5274 = vunpack.c.l.b16 %v5242
        %v5275 = vunpack.c.l.b16 %v5243
        %v5276 = vunpack.c.l.b16 %v5244
        %v5277 = vunpack.c.l.b16 %v5245
        %v5278 = vunpack.c.l.b16 %v5246
        %v5279 = vunpack.c.l.b16 %v5247
        %v5280 = vunpack.c.l.b16 %v5248
        %v5281 = vpack.c.b16 %v5266, %v5265
        %v5282 = vpack.c.b16 %v5268, %v5267
        %v5283 = vpack.c.b16 %v5270, %v5269
        %v5284 = vpack.c.b16 %v5272, %v5271
        %v5285 = vpack.c.b16 %v5274, %v5273
        %v5286 = vpack.c.b16 %v5276, %v5275
        %v5287 = vpack.c.b16 %v5278, %v5277
        %v5288 = vpack.c.b16 %v5280, %v5279
        %5297 = vmatprep.subr.bf16.mxu0 0
        %5298 = vmatpush1.bf16.msra.mxu0 %v5281
        %5299 = vmatprep.subr.bf16.mxu0 0
        %5300 = vmatpush1.bf16.msra.mxu0 %v5282
        %5301 = vmatprep.subr.bf16.mxu0 0
        %5302 = vmatpush1.bf16.msra.mxu0 %v5283
        %5303 = vmatprep.subr.bf16.mxu0 0
        %5304 = vmatpush1.bf16.msra.mxu0 %v5284
        %5305 = vmatprep.subr.bf16.mxu0 0
        %5306 = vmatpush1.bf16.msra.mxu0 %v5285
        %5307 = vmatprep.subr.bf16.mxu0 0
        %5308 = vmatpush1.bf16.msra.mxu0 %v5286
        %5309 = vmatprep.subr.bf16.mxu0 0
        %5310 = vmatpush1.bf16.msra.mxu0 %v5287
        %5311 = vmatprep.subr.bf16.mxu0 0
        %5312 = vmatpush1.bf16.msra.mxu0 %v5288
        %5313 = vmatprep.subr.bf16.mxu0 0
        %5314 = vmatpush1.bf16.msra.mxu0 0
        %5315 = vmatprep.subr.bf16.mxu0 0
        %5316 = vmatpush1.bf16.msra.mxu0 0
        %5317 = vmatprep.subr.bf16.mxu0 0
        %5318 = vmatpush1.bf16.msra.mxu0 0
        %5319 = vmatprep.subr.bf16.mxu0 0
        %5320 = vmatpush1.bf16.msra.mxu0 0
        %5321 = vmatprep.subr.bf16.mxu0 0
        %5322 = vmatpush1.bf16.msra.mxu0 0
        %5323 = vmatprep.subr.bf16.mxu0 0
        %5324 = vmatpush1.bf16.msra.mxu0 0
        %5325 = vmatprep.subr.bf16.mxu0 0
        %5326 = vmatpush1.bf16.msra.mxu0 0
        %5327 = vmatprep.subr.bf16.mxu0 0
        %5328 = vmatpush1.bf16.msra.mxu0 0
        %5329 = vmatprep.mubr.bf16.mxu0 0
        %5330 = vmatmul.mubr.bf16.gmra.mrb[0].mxu0 %v3885
        %v5331 = vpop.f32.mrb[0].mxu0
        %v5332 = vadd.f32 0.0, %v5331
        %v5333 = vpop.f32.mrb[0].mxu0
        %v5334 = vpop.f32.mrb[0].mxu0
        %v5335 = vadd.f32 0.0, %v5334
        %v5336 = vpop.f32.mrb[0].mxu0
        %5337 = vmatprep.mubr.bf16.mxu0 0
        %5338 = vmatmul.mubr.bf16.gmra.mrb[0].mxu0 %v3897
        %v5339 = vpop.f32.mrb[0].mxu0
        %v5340 = vadd.f32 0.0, %v5339
        %v5341 = vpop.f32.mrb[0].mxu0
        %v5342 = vpop.f32.mrb[0].mxu0
        %v5343 = vadd.f32 0.0, %v5342
        %v5344 = vpop.f32.mrb[0].mxu0
        %5345 = vmatprep.mubr.bf16.mxu0 0
        %5346 = vmatmul.mubr.bf16.gmra.mrb[0].mxu0 %v3909
        %v5347 = vpop.f32.mrb[0].mxu0
        %v5348 = vadd.f32 0.0, %v5347
        %v5349 = vpop.f32.mrb[0].mxu0
        %v5350 = vpop.f32.mrb[0].mxu0
        %v5351 = vadd.f32 0.0, %v5350
        %v5352 = vpop.f32.mrb[0].mxu0
        %5353 = vmatprep.mubr.bf16.mxu0 0
        %5354 = vmatmul.mubr.bf16.gmra.mrb[0].mxu0 %v3921
        %v5355 = vpop.f32.mrb[0].mxu0
        %v5356 = vadd.f32 0.0, %v5355
        %v5357 = vpop.f32.mrb[0].mxu0
        %v5358 = vpop.f32.mrb[0].mxu0
        %v5359 = vadd.f32 0.0, %v5358
        %v5360 = vpop.f32.mrb[0].mxu0
        %5361 = vmatprep.mubr.bf16.mxu0 0
        %5362 = vmatmul.mubr.bf16.gmra.mrb[0].mxu0 %v3933
        %v5363 = vpop.f32.mrb[0].mxu0
        %v5364 = vadd.f32 0.0, %v5363
        %v5365 = vpop.f32.mrb[0].mxu0
        %v5366 = vpop.f32.mrb[0].mxu0
        %v5367 = vadd.f32 0.0, %v5366
        %v5368 = vpop.f32.mrb[0].mxu0
        %5369 = vmatprep.mubr.bf16.mxu0 0
        %5370 = vmatmul.mubr.bf16.gmra.mrb[0].mxu0 %v3945
        %v5371 = vpop.f32.mrb[0].mxu0
        %v5372 = vadd.f32 0.0, %v5371
        %v5373 = vpop.f32.mrb[0].mxu0
        %v5374 = vpop.f32.mrb[0].mxu0
        %v5375 = vadd.f32 0.0, %v5374
        %v5376 = vpop.f32.mrb[0].mxu0
        %5377 = vmatprep.mubr.bf16.mxu0 0
        %5378 = vmatmul.mubr.bf16.gmra.mrb[0].mxu0 %v4677
        %v5379 = vpop.f32.mrb[0].mxu0
        %v5380 = vadd.f32 0.0, %v5379
        %v5381 = vpop.f32.mrb[0].mxu0
        %v5382 = vpop.f32.mrb[0].mxu0
        %v5383 = vadd.f32 0.0, %v5382
        %v5384 = vpop.f32.mrb[0].mxu0
        %5385 = vmatprep.mubr.bf16.mxu0 0
        %5386 = vmatmul.mubr.bf16.gmra.mrb[0].mxu0 %v5230
        %v5387 = vpop.f32.mrb[0].mxu0
        %v5388 = vadd.f32 0.0, %v5387
        %v5389 = vpop.f32.mrb[0].mxu0
        %v5390 = vpop.f32.mrb[0].mxu0
        %v5391 = vadd.f32 0.0, %v5390
        %v5392 = vpop.f32.mrb[0].mxu0
        %5393 = vdwg.mxu0
        %v5394 = vadd.f32 %v5203, %v5332
        %v5395 = vadd.f32 %v5204, %v5335
        %v5396 = vadd.f32 %v5205, %v5340
        %v5397 = vadd.f32 %v5206, %v5343
        %v5398 = vadd.f32 %v5207, %v5348
        %v5399 = vadd.f32 %v5208, %v5351
        %v5400 = vadd.f32 %v5209, %v5356
        %v5401 = vadd.f32 %v5210, %v5359
        %v5402 = vadd.f32 %v5211, %v5364
        %v5403 = vadd.f32 %v5212, %v5367
        %v5404 = vadd.f32 %v5213, %v5372
        %v5405 = vadd.f32 %v5214, %v5375
        %v5406 = vadd.f32 %v5215, %v5380
        %v5407 = vadd.f32 %v5216, %v5383
        %v5408 = vadd.f32 %v5217, %v5388
        %v5409 = vadd.f32 %v5218, %v5391
        %v5412 = vrot.slane %v3831, 1
        %v5413 = vrot.slane %v3832, 1
        %v5414 = vsel %vm4277, %v5412, %v5413
        %s5416 = scalar_lea.vmem [#allocation7], 512
        %v5417 = vld [vmem:[%s5416] sm:$0xf]
        %v5418 = vld [vmem:[%s5416 + $0x4] sm:$0xf]
        %v5419 = vld [vmem:[%s5416 + $0x8] sm:$0xf]
        %v5420 = vld [vmem:[%s5416 + $0xc] sm:$0xf]
        %v5421 = vld [vmem:[%s5416 + $0x10] sm:$0xf]
        %v5422 = vld [vmem:[%s5416 + $0x14] sm:$0xf]
        %v5423 = vld [vmem:[%s5416 + $0x18] sm:$0xf]
        %v5424 = vld [vmem:[%s5416 + $0x1c] sm:$0xf]
        %v5425 = vld [vmem:[%s5416 + $0x20] sm:$0xf]
        %v5426 = vld [vmem:[%s5416 + $0x24] sm:$0xf]
        %v5427 = vld [vmem:[%s5416 + $0x28] sm:$0xf]
        %v5428 = vld [vmem:[%s5416 + $0x2c] sm:$0xf]
        %v5429 = vld [vmem:[%s5416 + $0x30] sm:$0xf]
        %v5430 = vld [vmem:[%s5416 + $0x34] sm:$0xf]
        %v5431 = vld [vmem:[%s5416 + $0x38] sm:$0xf]
        %v5432 = vld [vmem:[%s5416 + $0x3c] sm:$0xf]
        %v5449 = vunpack.c.l.b16 %v5417
        %v5450 = vunpack.c.l.b16 %v5418
        %v5451 = vunpack.c.l.b16 %v5419
        %v5452 = vunpack.c.l.b16 %v5420
        %v5453 = vunpack.c.l.b16 %v5421
        %v5454 = vunpack.c.l.b16 %v5422
        %v5455 = vunpack.c.l.b16 %v5423
        %v5456 = vunpack.c.l.b16 %v5424
        %v5457 = vunpack.c.l.b16 %v5425
        %v5458 = vunpack.c.l.b16 %v5426
        %v5459 = vunpack.c.l.b16 %v5427
        %v5460 = vunpack.c.l.b16 %v5428
        %v5461 = vunpack.c.l.b16 %v5429
        %v5462 = vunpack.c.l.b16 %v5430
        %v5463 = vunpack.c.l.b16 %v5431
        %v5464 = vunpack.c.l.b16 %v5432
        %v5465 = vpack.c.b16 %v5450, %v5449
        %v5466 = vpack.c.b16 %v5452, %v5451
        %v5467 = vpack.c.b16 %v5454, %v5453
        %v5468 = vpack.c.b16 %v5456, %v5455
        %v5469 = vpack.c.b16 %v5458, %v5457
        %v5470 = vpack.c.b16 %v5460, %v5459
        %v5471 = vpack.c.b16 %v5462, %v5461
        %v5472 = vpack.c.b16 %v5464, %v5463
        %5481 = vmatprep.subr.bf16.mxu0 0
        %5482 = vmatpush1.bf16.msra.mxu0 %v5465
        %5483 = vmatprep.subr.bf16.mxu0 0
        %5484 = vmatpush1.bf16.msra.mxu0 %v5466
        %5485 = vmatprep.subr.bf16.mxu0 0
        %5486 = vmatpush1.bf16.msra.mxu0 %v5467
        %5487 = vmatprep.subr.bf16.mxu0 0
        %5488 = vmatpush1.bf16.msra.mxu0 %v5468
        %5489 = vmatprep.subr.bf16.mxu0 0
        %5490 = vmatpush1.bf16.msra.mxu0 %v5469
        %5491 = vmatprep.subr.bf16.mxu0 0
        %5492 = vmatpush1.bf16.msra.mxu0 %v5470
        %5493 = vmatprep.subr.bf16.mxu0 0
        %5494 = vmatpush1.bf16.msra.mxu0 %v5471
        %5495 = vmatprep.subr.bf16.mxu0 0
        %5496 = vmatpush1.bf16.msra.mxu0 %v5472
        %5497 = vmatprep.subr.bf16.mxu0 0
        %5498 = vmatpush1.bf16.msra.mxu0 0
        %5499 = vmatprep.subr.bf16.mxu0 0
        %5500 = vmatpush1.bf16.msra.mxu0 0
        %5501 = vmatprep.subr.bf16.mxu0 0
        %5502 = vmatpush1.bf16.msra.mxu0 0
        %5503 = vmatprep.subr.bf16.mxu0 0
        %5504 = vmatpush1.bf16.msra.mxu0 0
        %5505 = vmatprep.subr.bf16.mxu0 0
        %5506 = vmatpush1.bf16.msra.mxu0 0
        %5507 = vmatprep.subr.bf16.mxu0 0
        %5508 = vmatpush1.bf16.msra.mxu0 0
        %5509 = vmatprep.subr.bf16.mxu0 0
        %5510 = vmatpush1.bf16.msra.mxu0 0
        %5511 = vmatprep.subr.bf16.mxu0 0
        %5512 = vmatpush1.bf16.msra.mxu0 0
        %5513 = vmatprep.mubr.bf16.mxu0 0
        %5514 = vmatmul.mubr.bf16.gmra.mrb[0].mxu0 %v4286
        %v5515 = vpop.f32.mrb[0].mxu0
        %v5516 = vadd.f32 0.0, %v5515
        %v5517 = vpop.f32.mrb[0].mxu0
        %v5518 = vpop.f32.mrb[0].mxu0
        %v5519 = vadd.f32 0.0, %v5518
        %v5520 = vpop.f32.mrb[0].mxu0
        %5521 = vmatprep.mubr.bf16.mxu0 0
        %5522 = vmatmul.mubr.bf16.gmra.mrb[0].mxu0 %v4289
        %v5523 = vpop.f32.mrb[0].mxu0
        %v5524 = vadd.f32 0.0, %v5523
        %v5525 = vpop.f32.mrb[0].mxu0
        %v5526 = vpop.f32.mrb[0].mxu0
        %v5527 = vadd.f32 0.0, %v5526
        %v5528 = vpop.f32.mrb[0].mxu0
        %5529 = vmatprep.mubr.bf16.mxu0 0
        %5530 = vmatmul.mubr.bf16.gmra.mrb[0].mxu0 %v4292
        %v5531 = vpop.f32.mrb[0].mxu0
        %v5532 = vadd.f32 0.0, %v5531
        %v5533 = vpop.f32.mrb[0].mxu0
        %v5534 = vpop.f32.mrb[0].mxu0
        %v5535 = vadd.f32 0.0, %v5534
        %v5536 = vpop.f32.mrb[0].mxu0
        %5537 = vmatprep.mubr.bf16.mxu0 0
        %5538 = vmatmul.mubr.bf16.gmra.mrb[0].mxu0 %v4295
        %v5539 = vpop.f32.mrb[0].mxu0
        %v5540 = vadd.f32 0.0, %v5539
        %v5541 = vpop.f32.mrb[0].mxu0
        %v5542 = vpop.f32.mrb[0].mxu0
        %v5543 = vadd.f32 0.0, %v5542
        %v5544 = vpop.f32.mrb[0].mxu0
        %5545 = vmatprep.mubr.bf16.mxu0 0
        %5546 = vmatmul.mubr.bf16.gmra.mrb[0].mxu0 %v4298
        %v5547 = vpop.f32.mrb[0].mxu0
        %v5548 = vadd.f32 0.0, %v5547
        %v5549 = vpop.f32.mrb[0].mxu0
        %v5550 = vpop.f32.mrb[0].mxu0
        %v5551 = vadd.f32 0.0, %v5550
        %v5552 = vpop.f32.mrb[0].mxu0
        %5553 = vmatprep.mubr.bf16.mxu0 0
        %5554 = vmatmul.mubr.bf16.gmra.mrb[0].mxu0 %v4301
        %v5555 = vpop.f32.mrb[0].mxu0
        %v5556 = vadd.f32 0.0, %v5555
        %v5557 = vpop.f32.mrb[0].mxu0
        %v5558 = vpop.f32.mrb[0].mxu0
        %v5559 = vadd.f32 0.0, %v5558
        %v5560 = vpop.f32.mrb[0].mxu0
        %5561 = vmatprep.mubr.bf16.mxu0 0
        %5562 = vmatmul.mubr.bf16.gmra.mrb[0].mxu0 %v4861
        %v5563 = vpop.f32.mrb[0].mxu0
        %v5564 = vadd.f32 0.0, %v5563
        %v5565 = vpop.f32.mrb[0].mxu0
        %v5566 = vpop.f32.mrb[0].mxu0
        %v5567 = vadd.f32 0.0, %v5566
        %v5568 = vpop.f32.mrb[0].mxu0
        %5569 = vmatprep.mubr.bf16.mxu0 0
        %5570 = vmatmul.mubr.bf16.gmra.mrb[0].mxu0 %v5414
        %v5571 = vpop.f32.mrb[0].mxu0
        %v5572 = vadd.f32 0.0, %v5571
        %v5573 = vpop.f32.mrb[0].mxu0
        %v5574 = vpop.f32.mrb[0].mxu0
        %v5575 = vadd.f32 0.0, %v5574
        %v5576 = vpop.f32.mrb[0].mxu0
        %5577 = vdwg.mxu0
        %v5578 = vadd.f32 %v5394, %v5516
        %v5579 = vadd.f32 %v5395, %v5519
        %v5580 = vadd.f32 %v5396, %v5524
        %v5581 = vadd.f32 %v5397, %v5527
        %v5582 = vadd.f32 %v5398, %v5532
        %v5583 = vadd.f32 %v5399, %v5535
        %v5584 = vadd.f32 %v5400, %v5540
        %v5585 = vadd.f32 %v5401, %v5543
        %v5586 = vadd.f32 %v5402, %v5548
        %v5587 = vadd.f32 %v5403, %v5551
        %v5588 = vadd.f32 %v5404, %v5556
        %v5589 = vadd.f32 %v5405, %v5559
        %v5590 = vadd.f32 %v5406, %v5564
        %v5591 = vadd.f32 %v5407, %v5567
        %v5592 = vadd.f32 %v5408, %v5572
        %v5593 = vadd.f32 %v5409, %v5575
        %v5594 = vld [vmem:[%s2449] sm:$0xf]
        %v5595 = vld [vmem:[%s2449 + $0x4] sm:$0xf]
        %v5596 = vld [vmem:[%s2449 + $0x8] sm:$0x1]
        %v5597 = vld [vmem:[%s2449 + $0xc] sm:$0xf]
        %v5598 = vld [vmem:[%s2449 + $0x10] sm:$0xf]
        %v5599 = vld [vmem:[%s2449 + $0x14] sm:$0x1]
        %v5600 = vld [vmem:[%s2449 + $0x18] sm:$0xf]
        %v5601 = vld [vmem:[%s2449 + $0x1c] sm:$0xf]
        %v5602 = vld [vmem:[%s2449 + $0x20] sm:$0x1]
        %v5603 = vld [vmem:[%s2449 + $0x24] sm:$0xf]
        %v5604 = vld [vmem:[%s2449 + $0x28] sm:$0xf]
        %v5605 = vld [vmem:[%s2449 + $0x2c] sm:$0x1]
        %v5606 = vld [vmem:[%s2449 + $0x30] sm:$0xf]
        %v5607 = vld [vmem:[%s2449 + $0x34] sm:$0xf]
        %v5608 = vld [vmem:[%s2449 + $0x38] sm:$0x1]
        %v5609 = vld [vmem:[%s2449 + $0x3c] sm:$0xf]
        %v5610 = vld [vmem:[%s2449 + $0x40] sm:$0xf]
        %v5611 = vld [vmem:[%s2449 + $0x44] sm:$0x1]
        %v5612 = vld [vmem:[%s2449 + $0x48] sm:$0xf]
        %v5613 = vld [vmem:[%s2449 + $0x4c] sm:$0xf]
        %v5614 = vld [vmem:[%s2449 + $0x50] sm:$0x1]
        %v5615 = vld [vmem:[%s2449 + $0x54] sm:$0xf]
        %v5616 = vld [vmem:[%s2449 + $0x58] sm:$0xf]
        %v5617 = vld [vmem:[%s2449 + $0x5c] sm:$0x1]
        %v5618 = vunpack.c.l.bf16 %v5594
        %v5619 = vunpack.c.l.bf16 %v5595
        %v5620 = vunpack.c.l.bf16 %v5596
        %v5621 = vunpack.c.l.bf16 %v5597
        %v5622 = vunpack.c.l.bf16 %v5598
        %v5623 = vunpack.c.l.bf16 %v5599
        %v5624 = vunpack.c.l.bf16 %v5600
        %v5625 = vunpack.c.l.bf16 %v5601
        %v5626 = vunpack.c.l.bf16 %v5602
        %v5627 = vunpack.c.l.bf16 %v5603
        %v5628 = vunpack.c.l.bf16 %v5604
        %v5629 = vunpack.c.l.bf16 %v5605
        %v5630 = vunpack.c.l.bf16 %v5606
        %v5631 = vunpack.c.l.bf16 %v5607
        %v5632 = vunpack.c.l.bf16 %v5608
        %v5633 = vunpack.c.l.bf16 %v5609
        %v5634 = vunpack.c.l.bf16 %v5610
        %v5635 = vunpack.c.l.bf16 %v5611
        %v5636 = vunpack.c.l.bf16 %v5612
        %v5637 = vunpack.c.l.bf16 %v5613
        %v5638 = vunpack.c.l.bf16 %v5614
        %v5639 = vunpack.c.l.bf16 %v5615
        %v5640 = vunpack.c.l.bf16 %v5616
        %v5641 = vunpack.c.l.bf16 %v5617
        %vm5666 = vcmask 1046528
        %v5667 = vrot.slane %v5618, 1
        %v5668 = vrot.slane %v5619, 1
        %v5669 = vsel %vm5666, %v5667, %v5668
        %v5670 = vrot.slane %v5620, 1
        %v5671 = vsel %vm5666, %v5668, %v5670
        %v5672 = vrot.slane %v5621, 1
        %v5673 = vrot.slane %v5622, 1
        %v5674 = vsel %vm5666, %v5672, %v5673
        %v5675 = vrot.slane %v5623, 1
        %v5676 = vsel %vm5666, %v5673, %v5675
        %v5677 = vrot.slane %v5624, 1
        %v5678 = vrot.slane %v5625, 1
        %v5679 = vsel %vm5666, %v5677, %v5678
        %v5680 = vrot.slane %v5626, 1
        %v5681 = vsel %vm5666, %v5678, %v5680
        %v5682 = vrot.slane %v5627, 1
        %v5683 = vrot.slane %v5628, 1
        %v5684 = vsel %vm5666, %v5682, %v5683
        %v5685 = vrot.slane %v5629, 1
        %v5686 = vsel %vm5666, %v5683, %v5685
        %v5687 = vrot.slane %v5630, 1
        %v5688 = vrot.slane %v5631, 1
        %v5689 = vsel %vm5666, %v5687, %v5688
        %v5690 = vrot.slane %v5632, 1
        %v5691 = vsel %vm5666, %v5688, %v5690
        %v5692 = vrot.slane %v5633, 1
        %v5693 = vrot.slane %v5634, 1
        %v5694 = vsel %vm5666, %v5692, %v5693
        %v5695 = vrot.slane %v5635, 1
        %v5696 = vsel %vm5666, %v5693, %v5695
        %v5697 = vrot.slane %v5636, 1
        %v5698 = vrot.slane %v5637, 1
        %v5699 = vsel %vm5666, %v5697, %v5698
        %v5700 = vrot.slane %v5638, 1
        %v5701 = vsel %vm5666, %v5698, %v5700
        %v5702 = vrot.slane %v5639, 1
        %v5703 = vrot.slane %v5640, 1
        %v5704 = vsel %vm5666, %v5702, %v5703
        %v5705 = vrot.slane %v5641, 1
        %v5706 = vsel %vm5666, %v5703, %v5705
        %v5723 = vld [vmem:[%s4] sm:$0x1]
        %v5725 = vlaneseq
        %v5726 = vshrl.u32 %v5725, 7
        %v5727 = vsub.s32 0, %v5726
        %v5728 = vrot.slane %v5723, %v5727
        %v5730 = vadd.f32 %v5578, %v5728
        %v5731 = vadd.f32 %v5579, %v5728
        %v5732 = vadd.f32 %v5580, %v5728
        %v5733 = vadd.f32 %v5581, %v5728
        %v5734 = vadd.f32 %v5582, %v5728
        %v5735 = vadd.f32 %v5583, %v5728
        %v5736 = vadd.f32 %v5584, %v5728
        %v5737 = vadd.f32 %v5585, %v5728
        %v5738 = vadd.f32 %v5586, %v5728
        %v5739 = vadd.f32 %v5587, %v5728
        %v5740 = vadd.f32 %v5588, %v5728
        %v5741 = vadd.f32 %v5589, %v5728
        %v5742 = vadd.f32 %v5590, %v5728
        %v5743 = vadd.f32 %v5591, %v5728
        %v5744 = vadd.f32 %v5592, %v5728
        %v5745 = vadd.f32 %v5593, %v5728
        %v5746 = vadd.f32 %v5730, %v5669
        %v5747 = vadd.f32 %v5731, %v5671
        %v5748 = vadd.f32 %v5732, %v5674
        %v5749 = vadd.f32 %v5733, %v5676
        %v5750 = vadd.f32 %v5734, %v5679
        %v5751 = vadd.f32 %v5735, %v5681
        %v5752 = vadd.f32 %v5736, %v5684
        %v5753 = vadd.f32 %v5737, %v5686
        %v5754 = vadd.f32 %v5738, %v5689
        %v5755 = vadd.f32 %v5739, %v5691
        %v5756 = vadd.f32 %v5740, %v5694
        %v5757 = vadd.f32 %v5741, %v5696
        %v5758 = vadd.f32 %v5742, %v5699
        %v5759 = vadd.f32 %v5743, %v5701
        %v5760 = vadd.f32 %v5744, %v5704
        %v5761 = vadd.f32 %v5745, %v5706
        %v5762 = vmax.f32 %v5746, 0.0
        %v5763 = vmax.f32 %v5747, 0.0
        %v5764 = vmax.f32 %v5748, 0.0
        %v5765 = vmax.f32 %v5749, 0.0
        %v5766 = vmax.f32 %v5750, 0.0
        %v5767 = vmax.f32 %v5751, 0.0
        %v5768 = vmax.f32 %v5752, 0.0
        %v5769 = vmax.f32 %v5753, 0.0
        %v5770 = vmax.f32 %v5754, 0.0
        %v5771 = vmax.f32 %v5755, 0.0
        %v5772 = vmax.f32 %v5756, 0.0
        %v5773 = vmax.f32 %v5757, 0.0
        %v5774 = vmax.f32 %v5758, 0.0
        %v5775 = vmax.f32 %v5759, 0.0
        %v5776 = vmax.f32 %v5760, 0.0
        %v5777 = vmax.f32 %v5761, 0.0
        %5778 = vst [vmem:[%s220] sm:$0xff] %v5762
        %5779 = vst [vmem:[%s220 + $0x8] sm:$0xff] %v5763
        %5780 = vst [vmem:[%s220 + $0x10] sm:$0xff] %v5764
        %5781 = vst [vmem:[%s220 + $0x18] sm:$0xff] %v5765
        %5782 = vst [vmem:[%s220 + $0x20] sm:$0xff] %v5766
        %5783 = vst [vmem:[%s220 + $0x28] sm:$0xff] %v5767
        %5784 = vst [vmem:[%s220 + $0x30] sm:$0xff] %v5768
        %5785 = vst [vmem:[%s220 + $0x38] sm:$0xff] %v5769
        %5786 = vst [vmem:[%s220 + $0x40] sm:$0xff] %v5770
        %5787 = vst [vmem:[%s220 + $0x48] sm:$0xff] %v5771
        %5788 = vst [vmem:[%s220 + $0x50] sm:$0xff] %v5772
        %5789 = vst [vmem:[%s220 + $0x58] sm:$0xff] %v5773
        %5790 = vst [vmem:[%s220 + $0x60] sm:$0xff] %v5774
        %5791 = vst [vmem:[%s220 + $0x68] sm:$0xff] %v5775
        %5792 = vst [vmem:[%s220 + $0x70] sm:$0xff] %v5776
        %5793 = vst [vmem:[%s220 + $0x78] sm:$0xff] %v5777
        %s5794 = sand.u32 %s127, 1
        %s5795 = scalar_lea.sflag [#allocation6], %s5794
        %s5796 = sand.u32 %s127, 1
        %s5797 = smul.addr %s5796, 128
        %s5798 = scalar_lea.vmem [#allocation9], %s5797
        // Predicated region
        $region49: #{tpu_custom_call.1} parent=35 // pred_check
          %p5799 = pneg %p137
        $region50: #{tpu_custom_call.1} parent=35 // pred_check_branch
          %5801 = sbr.rel (%p5799) target = $region52
        $region51: #{tpu_custom_call.1} parent=35 // pred_region
          %s5802 = smul.u32 8, %s26
          %s5804 = ssub.s32 2048, 2048
          %5805 = vsyncadd %s5795, %s5804
          %s5806 = smul.addr %s5802, 2
          %s5807 = smul.addr %s25, 32
          %s5808 = sadd.s32 %s5806, %s5807
          %s5809 = smul.addr %s5808, 128
          %s5810 = scalar_lea.hbm %s5, %s5809
          %s5811 = sshll.u32 %s5798, 4
          %s5812 = int_to_ptr.vmem [resolvable:$true] %s5811
          %5817 = dma.vmem_to_hbm [thread:$0]  %s5812, 2048, %s5810, %s5795, 128, 128, 8
        $region52: #{tpu_custom_call.1} parent=35 // pred_fallthru
          _
      $region36: #{tpu_custom_call.1} parent=5 // pred_fallthru
        _
      %p5818 = scmp.le.s32.totalorder 2, %s16
      // Predicated region
      $region53: #{tpu_custom_call.1} parent=5 // pred_check
        %p5819 = pneg %p5818
      $region54: #{tpu_custom_call.1} parent=5 // pred_check_branch
        %5821 = sbr.rel (%p5819) target = $region56
      $region55: #{tpu_custom_call.1} parent=5 // pred_region
        %s5822 = ssub.s32 %s16, 2
        // Predicated region
        $region57: #{tpu_custom_call.1} parent=55 // pred_check
          %p5823 = pneg %p143
        $region58: #{tpu_custom_call.1} parent=55 // pred_check_branch
          %5825 = sbr.rel (%p5823) target = $region60
        $region59: #{tpu_custom_call.1} parent=55 // pred_region
          %s5826 = sand.u32 %s128, 1
          %s5827 = scalar_lea.sflag [#allocation6], %s5826
          %s5828 = sand.u32 %s128, 1
          %s5829 = smul.addr %s5828, 128
          %s5830 = scalar_lea.vmem [#allocation9], %s5829
          %5831 = dma.done %s5827, 2048
        $region60: #{tpu_custom_call.1} parent=55 // pred_fallthru
          _
      $region56: #{tpu_custom_call.1} parent=5 // pred_fallthru
        _
    $region6: #{tpu_custom_call.1} parent=1 // loop_footer
      %s20 = sadd.s32 1, %s16
    $region7: #{tpu_custom_call.1} parent=1 // loop_footer_branch
      %15 = sbr.rel target = $region3
    $region8: #{tpu_custom_call.1} parent=1 // loop_exit
      _
    %5832 = vsyncpa [#allocation5], 1
    %s5833 = scalar_lea.sflag [#allocation5], 1
    %5834 = vsyncpa %s5833, 1
    %5835 = vsyncpa [#allocation8], 1
    %5836 = vsyncpa [#allocation6], 1
    %s5837 = scalar_lea.sflag [#allocation6], 1
    %5838 = vsyncpa %s5837, 1
  %5839 = vsyncmov [#allocation3]
  %s5840 = vpop.sfrf %5839
  %p5841 = scmp.eq.s32.totalorder %s5840, 0
  %p5842 = pneg %p5841
  %5844 = shalt.err (%p5842)

</llo_original>
